<compile_context>
chip_gen: v7x
topology: tpu7x:2x2x1
jax: 0.10.0
libtpu: 0.0.40
codegen_flags: <defaults>
</compile_context>

<pallas_src>
import jax
import jax.numpy as jnp
from jax.experimental import pallas as pl
from jax.experimental.pallas import tpu as pltpu

# ---------------------------- model hyper-params -----------------------------
BATCH = 2
TEXT_LEN = 8
IMG_NUM = 6
INPUT_DIM = 48            # divisible by head_num=3
HEAD_NUM = 3
HEAD_DIM = INPUT_DIM // HEAD_NUM
FFN_DIM = 4 * INPUT_DIM
FEATURE_WEIGHT_NUM = 16
LN_EPS = 1e-5

# ------------------------------ packing layout --------------------------------
W_PAD = 192               # every weight matrix is padded into a (192,192) slot
VEC_PAD = 192             # every bias / LN vector is padded to 192 lanes
OUT_PAD = 128             # lane-dense output width (sliced back to 16)

(W_TEXT_QKV, W_IMG_QKV, W_O0, W_O1, W_FFN1_0, W_FFN1_1, W_FFN2_0, W_FFN2_1,
 W_OUT, W_BIAS0, W_BIAS1, W_POOL_T, W_POOL_I) = range(13)

(V_B_TEXT_QKV, V_B_IMG_QKV, V_BO0, V_BO1, V_BF1_0, V_BF1_1, V_BF2_0, V_BF2_1,
 V_LN00_G, V_LN00_B, V_LN01_G, V_LN01_B,
 V_LN10_G, V_LN10_B, V_LN11_G, V_LN11_B,
 V_B_OUT) = range(17)


# --------------------------------- kernel ------------------------------------
def early_filter_kernel(text_ref, img_ref, w_ref, v_ref, out_ref):
    D = INPUT_DIM
    text = text_ref[...]          # (B*T, D)  stacked batch rows
    imgs = img_ref[...]           # (B*N, D)

    def vrow(idx, width):
        return v_ref[idx:idx + 1, 0:width]            # (1, width)

    def wmat(idx, rows, cols):
        return w_ref[idx, 0:rows, 0:cols]

    def layer_norm(x, g, b):
        mu = jnp.mean(x, axis=-1, keepdims=True)
        var = jnp.mean((x - mu) ** 2, axis=-1, keepdims=True)
        return (x - mu) * jax.lax.rsqrt(var + LN_EPS) * g + b

    scale = 1.0 / (HEAD_DIM ** 0.5)

    # Fused QKV projections: one wide matmul per input stream.
    #   text_proj cols: [q(layer0) | k(layer1) | v(layer1)]
    #   img_proj  cols: [k(layer0) | v(layer0) | q(layer1)]
    text_proj = jnp.dot(text, wmat(W_TEXT_QKV, D, 3 * D),
                        preferred_element_type=jnp.float32) + vrow(V_B_TEXT_QKV, 3 * D)
    img_proj = jnp.dot(imgs, wmat(W_IMG_QKV, D, 3 * D),
                       preferred_element_type=jnp.float32) + vrow(V_B_IMG_QKV, 3 * D)

    def fusion(x_q, q, k, v, bias, wo, bo, w1, b1, w2, b2, g1, be1, g2, be2):
        # Multi-head cross attention on stacked-batch rows; `bias` is the
        # precomputed block-diagonal mask (0 same-batch / -1e30 cross-batch).
        attn = jnp.zeros((q.shape[0], D), jnp.float32)
        for h in range(HEAD_NUM):
            lo, hi = h * HEAD_DIM, (h + 1) * HEAD_DIM
            qh, kh, vh = q[:, lo:hi], k[:, lo:hi], v[:, lo:hi]
            # contract last dims of qh/kh (no materialized transpose)
            s = jax.lax.dot_general(qh, kh, (((1,), (1,)), ((), ())),
                                    preferred_element_type=jnp.float32)
            s = s * scale + bias
            s = s - jnp.max(s, axis=-1, keepdims=True)
            p = jnp.exp(s)
            p = p * pl.reciprocal(jnp.sum(p, axis=-1, keepdims=True), approx=True)
            oh = jnp.dot(p, vh, preferred_element_type=jnp.float32)      # (Sq, hd)
            # accumulate through output projection (no head concat)
            attn = attn + jnp.dot(oh, wo[lo:hi, :],
                                  preferred_element_type=jnp.float32)
        attn = attn + bo

        x = layer_norm(x_q + attn, g1, be1)
        h1 = jnp.dot(x, w1, preferred_element_type=jnp.float32) + b1
        h1 = jnp.maximum(h1, 0.0)
        h2 = jnp.dot(h1, w2, preferred_element_type=jnp.float32) + b2
        return layer_norm(x + h2, g2, be2)

    # layer 0: text queries attend over images
    t2i = fusion(
        text,
        text_proj[:, 0:D], img_proj[:, 0:D], img_proj[:, D:2 * D],
        wmat(W_BIAS0, BATCH * TEXT_LEN, BATCH * IMG_NUM),
        wmat(W_O0, D, D), vrow(V_BO0, D),
        wmat(W_FFN1_0, D, FFN_DIM), vrow(V_BF1_0, FFN_DIM),
        wmat(W_FFN2_0, FFN_DIM, D), vrow(V_BF2_0, D),
        vrow(V_LN00_G, D), vrow(V_LN00_B, D),
        vrow(V_LN01_G, D), vrow(V_LN01_B, D))

    # layer 1: image queries attend over text
    i2t = fusion(
        imgs,
        img_proj[:, 2 * D:3 * D], text_proj[:, D:2 * D], text_proj[:, 2 * D:3 * D],
        wmat(W_BIAS1, BATCH * IMG_NUM, BATCH * TEXT_LEN),
        wmat(W_O1, D, D), vrow(V_BO1, D),
        wmat(W_FFN1_1, D, FFN_DIM), vrow(V_BF1_1, FFN_DIM),
        wmat(W_FFN2_1, FFN_DIM, D), vrow(V_BF2_1, D),
        vrow(V_LN10_G, D), vrow(V_LN10_B, D),
        vrow(V_LN11_G, D), vrow(V_LN11_B, D))

    # Per-batch mean pooling as tiny matmuls with precomputed pooling matrices.
    pooled_t = jnp.dot(wmat(W_POOL_T, BATCH, BATCH * TEXT_LEN), t2i,
                       preferred_element_type=jnp.float32)               # (B, D)
    pooled_i = jnp.dot(wmat(W_POOL_I, BATCH, BATCH * IMG_NUM), i2t,
                       preferred_element_type=jnp.float32)               # (B, D)

    # Final linear on the concatenated pooled vectors, done as a split matmul
    # (avoids an in-kernel concat); output is lane-dense (B, 128).
    logits = (jnp.dot(pooled_t, w_ref[W_OUT, 0:D, 0:OUT_PAD],
                      preferred_element_type=jnp.float32)
              + jnp.dot(pooled_i, w_ref[W_OUT, D:2 * D, 0:OUT_PAD],
                        preferred_element_type=jnp.float32)
              + vrow(V_B_OUT, OUT_PAD))
    out_ref[...] = jax.nn.sigmoid(logits)


# ------------------------------ param packing ---------------------------------
def pack_params(params):
    D = INPUT_DIM
    wa, ba = params["w_attn"], params["b_attn"]
    ln = params["ln"]

    def pad_w(m):
        r, c = m.shape
        return jnp.pad(m, ((0, W_PAD - r), (0, W_PAD - c)))

    def pad_v(v):
        v = v.reshape(1, -1)
        return jnp.pad(v, ((0, 0), (0, VEC_PAD - v.shape[1])))

    # fused QKV weight / bias packing
    w_text_qkv = jnp.concatenate([wa[0, 0], wa[1, 1], wa[1, 2]], axis=1)   # (D, 3D)
    w_img_qkv = jnp.concatenate([wa[0, 1], wa[0, 2], wa[1, 0]], axis=1)    # (D, 3D)
    b_text_qkv = jnp.concatenate([ba[0, 0], ba[1, 1], ba[1, 2]], axis=1)   # (1, 3D)
    b_img_qkv = jnp.concatenate([ba[0, 1], ba[0, 2], ba[1, 0]], axis=1)    # (1, 3D)

    w_out_pad = jnp.pad(params["w_out"],
                        ((0, 0), (0, OUT_PAD - FEATURE_WEIGHT_NUM)))       # (2D, 128)
    b_out_pad = jnp.pad(params["b_out"],
                        ((0, 0), (0, OUT_PAD - FEATURE_WEIGHT_NUM)))       # (1, 128)

    # block-diagonal attention bias + per-batch mean-pooling matrices,
    # built host-side so the kernel does no iota / integer-divide work.
    t_batch = jnp.arange(BATCH * TEXT_LEN) // TEXT_LEN
    i_batch = jnp.arange(BATCH * IMG_NUM) // IMG_NUM
    bias0 = jnp.where(t_batch[:, None] == i_batch[None, :],
                      0.0, -1e30).astype(jnp.float32)                      # (BT, BN)
    bias1 = bias0.T                                                        # (BN, BT)
    pool_t = (jnp.arange(BATCH)[:, None] == t_batch[None, :]
              ).astype(jnp.float32) / TEXT_LEN                             # (B, BT)
    pool_i = (jnp.arange(BATCH)[:, None] == i_batch[None, :]
              ).astype(jnp.float32) / IMG_NUM                              # (B, BN)

    w_slab = jnp.stack([
        pad_w(w_text_qkv), pad_w(w_img_qkv),
        pad_w(wa[0, 3]), pad_w(wa[1, 3]),
        pad_w(params["w_ffn1"][0]), pad_w(params["w_ffn1"][1]),
        pad_w(params["w_ffn2"][0]), pad_w(params["w_ffn2"][1]),
        pad_w(w_out_pad),
        pad_w(bias0), pad_w(bias1),
        pad_w(pool_t), pad_w(pool_i),
    ])                                                                     # (13,192,192)

    v_slab = jnp.concatenate([
        pad_v(b_text_qkv), pad_v(b_img_qkv),
        pad_v(ba[0, 3]), pad_v(ba[1, 3]),
        pad_v(params["b_ffn1"][0]), pad_v(params["b_ffn1"][1]),
        pad_v(params["b_ffn2"][0]), pad_v(params["b_ffn2"][1]),
        pad_v(ln[0, 0, 0]), pad_v(ln[0, 0, 1]),
        pad_v(ln[0, 1, 0]), pad_v(ln[0, 1, 1]),
        pad_v(ln[1, 0, 0]), pad_v(ln[1, 0, 1]),
        pad_v(ln[1, 1, 0]), pad_v(ln[1, 1, 1]),
        pad_v(b_out_pad),
    ], axis=0)                                                             # (17,192)
    return w_slab, v_slab


# -------------------------------- wrapper -------------------------------------
def early_filter(text_inputs, img_inputs, params):
    B, T, D = text_inputs.shape
    _, N, _ = img_inputs.shape
    w_slab, v_slab = pack_params(params)

    text_stack = text_inputs.reshape(B * T, D)
    img_stack = img_inputs.reshape(B * N, D)

    out_padded = pl.pallas_call(
        early_filter_kernel,
        out_shape=jax.ShapeDtypeStruct((B, OUT_PAD), jnp.float32),
        grid_spec=pltpu.PrefetchScalarGridSpec(
            num_scalar_prefetch=0,
            grid=(1,),                                   # single step: whole batch
            in_specs=[
                pl.BlockSpec((B * T, D), lambda i: (0, 0)),
                pl.BlockSpec((B * N, D), lambda i: (0, 0)),
                pl.BlockSpec(w_slab.shape, lambda i: (0, 0, 0)),
                pl.BlockSpec(v_slab.shape, lambda i: (0, 0)),
            ],
            out_specs=pl.BlockSpec((B, OUT_PAD), lambda i: (0, 0)),
        ),
        compiler_params=pltpu.CompilerParams(
            dimension_semantics=("arbitrary",)),
    )(text_stack, img_stack, w_slab, v_slab)
    return out_padded[:, :FEATURE_WEIGHT_NUM]


# ---------------------------- pure-JAX reference ------------------------------
def _ref_single(text, imgs, params):
    def layer_norm(x, g, b):
        mu = x.mean(-1, keepdims=True)
        var = ((x - mu) ** 2).mean(-1, keepdims=True)
        return (x - mu) * jax.lax.rsqrt(var + LN_EPS) * g + b

    def fusion(layer, q_in, kv_in):
        wq, wk, wv, wo = [params["w_attn"][layer, i] for i in range(4)]
        bq, bk, bv, bo = [params["b_attn"][layer, i] for i in range(4)]
        q = q_in @ wq + bq
        k = kv_in @ wk + bk
        v = kv_in @ wv + bv
        scale = 1.0 / (HEAD_DIM ** 0.5)
        heads = []
        for h in range(HEAD_NUM):
            lo, hi = h * HEAD_DIM, (h + 1) * HEAD_DIM
            s = (q[:, lo:hi] @ k[:, lo:hi].T) * scale
            p = jax.nn.softmax(s, axis=-1)
            heads.append(p @ v[:, lo:hi])
        attn = jnp.concatenate(heads, axis=-1) @ wo + bo
        x = layer_norm(q_in + attn,
                       params["ln"][layer, 0, 0], params["ln"][layer, 0, 1])
        h1 = jax.nn.relu(x @ params["w_ffn1"][layer] + params["b_ffn1"][layer])
        h2 = h1 @ params["w_ffn2"][layer] + params["b_ffn2"][layer]
        return layer_norm(x + h2,
                          params["ln"][layer, 1, 0], params["ln"][layer, 1, 1])

    t2i = fusion(0, text, imgs).mean(axis=0)
    i2t = fusion(1, imgs, text).mean(axis=0)
    fused = jnp.concatenate([t2i, i2t], axis=-1)[None, :]
    return jax.nn.sigmoid(fused @ params["w_out"] + params["b_out"])[0]


def ref_forward(text_inputs, img_inputs, params):
    return jax.vmap(lambda t, i: _ref_single(t, i, params))(
        text_inputs, img_inputs)


# ------------------------------ param init ------------------------------------
def init_params(key):
    ks = jax.random.split(key, 10)
    scale = 0.02
    w_attn = scale * jax.random.normal(
        ks[0], (2, 4, INPUT_DIM, INPUT_DIM), jnp.float32)
    b_attn = scale * jax.random.normal(
        ks[1], (2, 4, 1, INPUT_DIM), jnp.float32)
    # ln[layer, which_ln, {gamma, beta}, 1, D]  (perturbed so packing bugs show)
    gamma = 1.0 + 0.1 * jax.random.normal(ks[2], (2, 2, 1, INPUT_DIM), jnp.float32)
    beta = 0.1 * jax.random.normal(ks[3], (2, 2, 1, INPUT_DIM), jnp.float32)
    ln = jnp.stack([gamma, beta], axis=2)
    w_ffn1 = scale * jax.random.normal(
        ks[4], (2, INPUT_DIM, FFN_DIM), jnp.float32)
    b_ffn1 = scale * jax.random.normal(ks[5], (2, 1, FFN_DIM), jnp.float32)
    w_ffn2 = scale * jax.random.normal(
        ks[6], (2, FFN_DIM, INPUT_DIM), jnp.float32)
    b_ffn2 = scale * jax.random.normal(ks[7], (2, 1, INPUT_DIM), jnp.float32)
    w_out = scale * jax.random.normal(
        ks[8], (2 * INPUT_DIM, FEATURE_WEIGHT_NUM), jnp.float32)
    b_out = scale * jax.random.normal(
        ks[9], (1, FEATURE_WEIGHT_NUM), jnp.float32)
    return dict(w_attn=w_attn, b_attn=b_attn, ln=ln,
                w_ffn1=w_ffn1, b_ffn1=b_ffn1,
                w_ffn2=w_ffn2, b_ffn2=b_ffn2,
                w_out=w_out, b_out=b_out)


# ---------------------------------- main --------------------------------------
if __name__ == "__main__":
    key = jax.random.PRNGKey(0)
    k_text, k_img, k_param = jax.random.split(key, 3)

    text_inputs = jax.random.normal(
        k_text, (BATCH, TEXT_LEN, INPUT_DIM), jnp.float32)
    img_inputs = jax.random.normal(
        k_img, (BATCH, IMG_NUM, INPUT_DIM), jnp.float32)
    params = init_params(k_param)

    out = early_filter(text_inputs, img_inputs, params)
    out = jax.block_until_ready(out)

    ref = jax.block_until_ready(ref_forward(text_inputs, img_inputs, params))
    assert out.shape == (BATCH, FEATURE_WEIGHT_NUM)
    # tolerance loosened slightly (approx EUP reciprocal in the softmax).
    assert jnp.allclose(out, ref, atol=2e-3, rtol=2e-3), (
        f"max abs diff {jnp.max(jnp.abs(out - ref))}")

    print("KERNEL_OK")
</pallas_src>

<mosaic_0001>
module attributes {stable_mosaic.version = 11 : i64} {
  func.func @early_filter_kernel(%arg0: i32, %arg1: memref<16x48xf32, #tpu.memory_space<vmem>>, %arg2: memref<12x48xf32, #tpu.memory_space<vmem>>, %arg3: memref<13x192x192xf32, #tpu.memory_space<vmem>>, %arg4: memref<17x192xf32, #tpu.memory_space<vmem>>, %arg5: memref<2x128xf32, #tpu.memory_space<vmem>>) attributes {dimension_semantics = [#tpu.dimension_semantics<arbitrary>], iteration_bounds = array<i64: 1>, scalar_prefetch = 0 : i64, scratch_operands = 0 : i64, tpu.core_type = #tpu.core_type<tc>, window_params = [{pipeline_mode = #tpu.pipeline_mode<synchronous>, transform_indices = @transform_0, window_bounds = array<i64: 16, 48>}, {pipeline_mode = #tpu.pipeline_mode<synchronous>, transform_indices = @transform_1, window_bounds = array<i64: 12, 48>}, {pipeline_mode = #tpu.pipeline_mode<synchronous>, transform_indices = @transform_2, window_bounds = array<i64: 13, 192, 192>}, {pipeline_mode = #tpu.pipeline_mode<synchronous>, transform_indices = @transform_3, window_bounds = array<i64: 17, 192>}, {pipeline_mode = #tpu.pipeline_mode<synchronous>, transform_indices = @transform_4, window_bounds = array<i64: 2, 128>}]} {
    %c0 = arith.constant 0 : index
    %c0_0 = arith.constant 0 : index
    %0 = vector.load %arg1[%c0, %c0_0] : memref<16x48xf32, #tpu.memory_space<vmem>>, vector<16x48xf32>
    %c0_1 = arith.constant 0 : index
    %c0_2 = arith.constant 0 : index
    %1 = vector.load %arg2[%c0_1, %c0_2] : memref<12x48xf32, #tpu.memory_space<vmem>>, vector<12x48xf32>
    %c0_3 = arith.constant 0 : index
    %c0_4 = arith.constant 0 : index
    %c0_5 = arith.constant 0 : index
    %2 = vector.load %arg3[%c0_3, %c0_4, %c0_5] : memref<13x192x192xf32, #tpu.memory_space<vmem>>, vector<1x48x144xf32>
    %3 = vector.shape_cast %2 : vector<1x48x144xf32> to vector<48x144xf32>
    %cst = arith.constant dense<0.000000e+00> : vector<16x144xf32>
    %4 = tpu.matmul %0, %3, %cst {dimension_numbers = #tpu.dot_dimension_numbers<[1], [0], [0], [1], [0, 0, 1, 1], [], []>} : vector<16x48xf32>, vector<48x144xf32>, vector<16x144xf32> -> vector<16x144xf32>
    %c0_6 = arith.constant 0 : index
    %c0_7 = arith.constant 0 : index
    %5 = vector.load %arg4[%c0_6, %c0_7] : memref<17x192xf32, #tpu.memory_space<vmem>>, vector<1x144xf32>
    %6 = vector.broadcast %5 : vector<1x144xf32> to vector<16x144xf32>
    %7 = arith.addf %4, %6 : vector<16x144xf32>
    %c1 = arith.constant 1 : index
    %c0_8 = arith.constant 0 : index
    %c0_9 = arith.constant 0 : index
    %8 = vector.load %arg3[%c1, %c0_8, %c0_9] : memref<13x192x192xf32, #tpu.memory_space<vmem>>, vector<1x48x144xf32>
    %9 = vector.shape_cast %8 : vector<1x48x144xf32> to vector<48x144xf32>
    %cst_10 = arith.constant dense<0.000000e+00> : vector<12x144xf32>
    %10 = tpu.matmul %1, %9, %cst_10 {dimension_numbers = #tpu.dot_dimension_numbers<[1], [0], [0], [1], [0, 0, 1, 1], [], []>} : vector<12x48xf32>, vector<48x144xf32>, vector<12x144xf32> -> vector<12x144xf32>
    %c1_11 = arith.constant 1 : index
    %c0_12 = arith.constant 0 : index
    %11 = vector.load %arg4[%c1_11, %c0_12] : memref<17x192xf32, #tpu.memory_space<vmem>>, vector<1x144xf32>
    %12 = vector.broadcast %11 : vector<1x144xf32> to vector<12x144xf32>
    %13 = arith.addf %10, %12 : vector<12x144xf32>
    %14 = vector.extract_strided_slice %7 {offsets = [0, 0], sizes = [16, 48], strides = [1, 1]} : vector<16x144xf32> to vector<16x48xf32>
    %15 = vector.extract_strided_slice %13 {offsets = [0, 0], sizes = [12, 48], strides = [1, 1]} : vector<12x144xf32> to vector<12x48xf32>
    %16 = vector.extract_strided_slice %13 {offsets = [0, 48], sizes = [12, 48], strides = [1, 1]} : vector<12x144xf32> to vector<12x48xf32>
    %c9 = arith.constant 9 : index
    %c0_13 = arith.constant 0 : index
    %c0_14 = arith.constant 0 : index
    %17 = vector.load %arg3[%c9, %c0_13, %c0_14] : memref<13x192x192xf32, #tpu.memory_space<vmem>>, vector<1x16x12xf32>
    %18 = vector.shape_cast %17 : vector<1x16x12xf32> to vector<16x12xf32>
    %c2 = arith.constant 2 : index
    %c0_15 = arith.constant 0 : index
    %c0_16 = arith.constant 0 : index
    %19 = vector.load %arg3[%c2, %c0_15, %c0_16] : memref<13x192x192xf32, #tpu.memory_space<vmem>>, vector<1x48x48xf32>
    %20 = vector.shape_cast %19 : vector<1x48x48xf32> to vector<48x48xf32>
    %c2_17 = arith.constant 2 : index
    %c0_18 = arith.constant 0 : index
    %21 = vector.load %arg4[%c2_17, %c0_18] : memref<17x192xf32, #tpu.memory_space<vmem>>, vector<1x48xf32>
    %c4 = arith.constant 4 : index
    %c0_19 = arith.constant 0 : index
    %c0_20 = arith.constant 0 : index
    %22 = vector.load %arg3[%c4, %c0_19, %c0_20] : memref<13x192x192xf32, #tpu.memory_space<vmem>>, vector<1x48x192xf32>
    %23 = vector.shape_cast %22 : vector<1x48x192xf32> to vector<48x192xf32>
    %c4_21 = arith.constant 4 : index
    %c0_22 = arith.constant 0 : index
    %24 = vector.load %arg4[%c4_21, %c0_22] : memref<17x192xf32, #tpu.memory_space<vmem>>, vector<1x192xf32>
    %c6 = arith.constant 6 : index
    %c0_23 = arith.constant 0 : index
    %c0_24 = arith.constant 0 : index
    %25 = vector.load %arg3[%c6, %c0_23, %c0_24] : memref<13x192x192xf32, #tpu.memory_space<vmem>>, vector<1x192x48xf32>
    %26 = vector.shape_cast %25 : vector<1x192x48xf32> to vector<192x48xf32>
    %c6_25 = arith.constant 6 : index
    %c0_26 = arith.constant 0 : index
    %27 = vector.load %arg4[%c6_25, %c0_26] : memref<17x192xf32, #tpu.memory_space<vmem>>, vector<1x48xf32>
    %c8 = arith.constant 8 : index
    %c0_27 = arith.constant 0 : index
    %28 = vector.load %arg4[%c8, %c0_27] : memref<17x192xf32, #tpu.memory_space<vmem>>, vector<1x48xf32>
    %c9_28 = arith.constant 9 : index
    %c0_29 = arith.constant 0 : index
    %29 = vector.load %arg4[%c9_28, %c0_29] : memref<17x192xf32, #tpu.memory_space<vmem>>, vector<1x48xf32>
    %c10 = arith.constant 10 : index
    %c0_30 = arith.constant 0 : index
    %30 = vector.load %arg4[%c10, %c0_30] : memref<17x192xf32, #tpu.memory_space<vmem>>, vector<1x48xf32>
    %c11 = arith.constant 11 : index
    %c0_31 = arith.constant 0 : index
    %31 = vector.load %arg4[%c11, %c0_31] : memref<17x192xf32, #tpu.memory_space<vmem>>, vector<1x48xf32>
    %cst_32 = arith.constant 0.000000e+00 : f32
    %32 = vector.broadcast %cst_32 : f32 to vector<16x48xf32>
    %33 = vector.extract_strided_slice %14 {offsets = [0, 0], sizes = [16, 16], strides = [1, 1]} : vector<16x48xf32> to vector<16x16xf32>
    %34 = vector.extract_strided_slice %15 {offsets = [0, 0], sizes = [12, 16], strides = [1, 1]} : vector<12x48xf32> to vector<12x16xf32>
    %35 = vector.extract_strided_slice %16 {offsets = [0, 0], sizes = [12, 16], strides = [1, 1]} : vector<12x48xf32> to vector<12x16xf32>
    %cst_33 = arith.constant dense<0.000000e+00> : vector<16x12xf32>
    %36 = tpu.matmul %33, %34, %cst_33 {dimension_numbers = #tpu.dot_dimension_numbers<[1], [1], [0], [0], [0, 0, 1, 0], [], []>} : vector<16x16xf32>, vector<12x16xf32>, vector<16x12xf32> -> vector<16x12xf32>
    %cst_34 = arith.constant 2.500000e-01 : f32
    %37 = vector.broadcast %cst_34 : f32 to vector<16x12xf32>
    %38 = arith.mulf %36, %37 : vector<16x12xf32>
    %39 = arith.addf %38, %18 : vector<16x12xf32>
    %cst_35 = arith.constant dense<0xFF800000> : vector<16xf32>
    %40 = vector.multi_reduction <maximumf>, %39, %cst_35 [1] : vector<16x12xf32> to vector<16xf32>
    %41 = vector.shape_cast %40 : vector<16xf32> to vector<16x1xf32>
    %42 = vector.broadcast %41 : vector<16x1xf32> to vector<16x12xf32>
    %43 = arith.subf %39, %42 : vector<16x12xf32>
    %44 = math.exp %43 : vector<16x12xf32>
    %cst_36 = arith.constant dense<0.000000e+00> : vector<16xf32>
    %45 = vector.multi_reduction <add>, %44, %cst_36 [1] : vector<16x12xf32> to vector<16xf32>
    %46 = vector.shape_cast %45 : vector<16xf32> to vector<16x1xf32>
    %47 = tpu.reciprocal %46 {approx = true} : vector<16x1xf32> -> vector<16x1xf32>
    %48 = vector.broadcast %47 : vector<16x1xf32> to vector<16x12xf32>
    %49 = arith.mulf %44, %48 : vector<16x12xf32>
    %cst_37 = arith.constant dense<0.000000e+00> : vector<16x16xf32>
    %50 = tpu.matmul %49, %35, %cst_37 {dimension_numbers = #tpu.dot_dimension_numbers<[1], [0], [0], [1], [0, 0, 1, 1], [], []>} : vector<16x12xf32>, vector<12x16xf32>, vector<16x16xf32> -> vector<16x16xf32>
    %51 = vector.extract_strided_slice %20 {offsets = [0, 0], sizes = [16, 48], strides = [1, 1]} : vector<48x48xf32> to vector<16x48xf32>
    %cst_38 = arith.constant dense<0.000000e+00> : vector<16x48xf32>
    %52 = tpu.matmul %50, %51, %cst_38 {dimension_numbers = #tpu.dot_dimension_numbers<[1], [0], [0], [1], [0, 0, 1, 1], [], []>} : vector<16x16xf32>, vector<16x48xf32>, vector<16x48xf32> -> vector<16x48xf32>
    %53 = arith.addf %32, %52 : vector<16x48xf32>
    %54 = vector.extract_strided_slice %14 {offsets = [0, 16], sizes = [16, 16], strides = [1, 1]} : vector<16x48xf32> to vector<16x16xf32>
    %55 = vector.extract_strided_slice %15 {offsets = [0, 16], sizes = [12, 16], strides = [1, 1]} : vector<12x48xf32> to vector<12x16xf32>
    %56 = vector.extract_strided_slice %16 {offsets = [0, 16], sizes = [12, 16], strides = [1, 1]} : vector<12x48xf32> to vector<12x16xf32>
    %cst_39 = arith.constant dense<0.000000e+00> : vector<16x12xf32>
    %57 = tpu.matmul %54, %55, %cst_39 {dimension_numbers = #tpu.dot_dimension_numbers<[1], [1], [0], [0], [0, 0, 1, 0], [], []>} : vector<16x16xf32>, vector<12x16xf32>, vector<16x12xf32> -> vector<16x12xf32>
    %cst_40 = arith.constant 2.500000e-01 : f32
    %58 = vector.broadcast %cst_40 : f32 to vector<16x12xf32>
    %59 = arith.mulf %57, %58 : vector<16x12xf32>
    %60 = arith.addf %59, %18 : vector<16x12xf32>
    %cst_41 = arith.constant dense<0xFF800000> : vector<16xf32>
    %61 = vector.multi_reduction <maximumf>, %60, %cst_41 [1] : vector<16x12xf32> to vector<16xf32>
    %62 = vector.shape_cast %61 : vector<16xf32> to vector<16x1xf32>
    %63 = vector.broadcast %62 : vector<16x1xf32> to vector<16x12xf32>
    %64 = arith.subf %60, %63 : vector<16x12xf32>
    %65 = math.exp %64 : vector<16x12xf32>
    %cst_42 = arith.constant dense<0.000000e+00> : vector<16xf32>
    %66 = vector.multi_reduction <add>, %65, %cst_42 [1] : vector<16x12xf32> to vector<16xf32>
    %67 = vector.shape_cast %66 : vector<16xf32> to vector<16x1xf32>
    %68 = tpu.reciprocal %67 {approx = true} : vector<16x1xf32> -> vector<16x1xf32>
    %69 = vector.broadcast %68 : vector<16x1xf32> to vector<16x12xf32>
    %70 = arith.mulf %65, %69 : vector<16x12xf32>
    %cst_43 = arith.constant dense<0.000000e+00> : vector<16x16xf32>
    %71 = tpu.matmul %70, %56, %cst_43 {dimension_numbers = #tpu.dot_dimension_numbers<[1], [0], [0], [1], [0, 0, 1, 1], [], []>} : vector<16x12xf32>, vector<12x16xf32>, vector<16x16xf32> -> vector<16x16xf32>
    %72 = vector.extract_strided_slice %20 {offsets = [16, 0], sizes = [16, 48], strides = [1, 1]} : vector<48x48xf32> to vector<16x48xf32>
    %cst_44 = arith.constant dense<0.000000e+00> : vector<16x48xf32>
    %73 = tpu.matmul %71, %72, %cst_44 {dimension_numbers = #tpu.dot_dimension_numbers<[1], [0], [0], [1], [0, 0, 1, 1], [], []>} : vector<16x16xf32>, vector<16x48xf32>, vector<16x48xf32> -> vector<16x48xf32>
    %74 = arith.addf %53, %73 : vector<16x48xf32>
    %75 = vector.extract_strided_slice %14 {offsets = [0, 32], sizes = [16, 16], strides = [1, 1]} : vector<16x48xf32> to vector<16x16xf32>
    %76 = vector.extract_strided_slice %15 {offsets = [0, 32], sizes = [12, 16], strides = [1, 1]} : vector<12x48xf32> to vector<12x16xf32>
    %77 = vector.extract_strided_slice %16 {offsets = [0, 32], sizes = [12, 16], strides = [1, 1]} : vector<12x48xf32> to vector<12x16xf32>
    %cst_45 = arith.constant dense<0.000000e+00> : vector<16x12xf32>
    %78 = tpu.matmul %75, %76, %cst_45 {dimension_numbers = #tpu.dot_dimension_numbers<[1], [1], [0], [0], [0, 0, 1, 0], [], []>} : vector<16x16xf32>, vector<12x16xf32>, vector<16x12xf32> -> vector<16x12xf32>
    %cst_46 = arith.constant 2.500000e-01 : f32
    %79 = vector.broadcast %cst_46 : f32 to vector<16x12xf32>
    %80 = arith.mulf %78, %79 : vector<16x12xf32>
    %81 = arith.addf %80, %18 : vector<16x12xf32>
    %cst_47 = arith.constant dense<0xFF800000> : vector<16xf32>
    %82 = vector.multi_reduction <maximumf>, %81, %cst_47 [1] : vector<16x12xf32> to vector<16xf32>
    %83 = vector.shape_cast %82 : vector<16xf32> to vector<16x1xf32>
    %84 = vector.broadcast %83 : vector<16x1xf32> to vector<16x12xf32>
    %85 = arith.subf %81, %84 : vector<16x12xf32>
    %86 = math.exp %85 : vector<16x12xf32>
    %cst_48 = arith.constant dense<0.000000e+00> : vector<16xf32>
    %87 = vector.multi_reduction <add>, %86, %cst_48 [1] : vector<16x12xf32> to vector<16xf32>
    %88 = vector.shape_cast %87 : vector<16xf32> to vector<16x1xf32>
    %89 = tpu.reciprocal %88 {approx = true} : vector<16x1xf32> -> vector<16x1xf32>
    %90 = vector.broadcast %89 : vector<16x1xf32> to vector<16x12xf32>
    %91 = arith.mulf %86, %90 : vector<16x12xf32>
    %cst_49 = arith.constant dense<0.000000e+00> : vector<16x16xf32>
    %92 = tpu.matmul %91, %77, %cst_49 {dimension_numbers = #tpu.dot_dimension_numbers<[1], [0], [0], [1], [0, 0, 1, 1], [], []>} : vector<16x12xf32>, vector<12x16xf32>, vector<16x16xf32> -> vector<16x16xf32>
    %93 = vector.extract_strided_slice %20 {offsets = [32, 0], sizes = [16, 48], strides = [1, 1]} : vector<48x48xf32> to vector<16x48xf32>
    %cst_50 = arith.constant dense<0.000000e+00> : vector<16x48xf32>
    %94 = tpu.matmul %92, %93, %cst_50 {dimension_numbers = #tpu.dot_dimension_numbers<[1], [0], [0], [1], [0, 0, 1, 1], [], []>} : vector<16x16xf32>, vector<16x48xf32>, vector<16x48xf32> -> vector<16x48xf32>
    %95 = arith.addf %74, %94 : vector<16x48xf32>
    %96 = vector.broadcast %21 : vector<1x48xf32> to vector<16x48xf32>
    %97 = arith.addf %95, %96 : vector<16x48xf32>
    %98 = arith.addf %0, %97 : vector<16x48xf32>
    %cst_51 = arith.constant dense<0.000000e+00> : vector<16xf32>
    %99 = vector.multi_reduction <add>, %98, %cst_51 [1] : vector<16x48xf32> to vector<16xf32>
    %100 = vector.shape_cast %99 : vector<16xf32> to vector<16x1xf32>
    %cst_52 = arith.constant 4.800000e+01 : f32
    %101 = vector.broadcast %cst_52 : f32 to vector<16x1xf32>
    %102 = arith.divf %100, %101 : vector<16x1xf32>
    %103 = vector.broadcast %102 : vector<16x1xf32> to vector<16x48xf32>
    %104 = arith.subf %98, %103 : vector<16x48xf32>
    %105 = arith.mulf %104, %104 : vector<16x48xf32>
    %cst_53 = arith.constant dense<0.000000e+00> : vector<16xf32>
    %106 = vector.multi_reduction <add>, %105, %cst_53 [1] : vector<16x48xf32> to vector<16xf32>
    %107 = vector.shape_cast %106 : vector<16xf32> to vector<16x1xf32>
    %cst_54 = arith.constant 4.800000e+01 : f32
    %108 = vector.broadcast %cst_54 : f32 to vector<16x1xf32>
    %109 = arith.divf %107, %108 : vector<16x1xf32>
    %110 = vector.broadcast %102 : vector<16x1xf32> to vector<16x48xf32>
    %111 = arith.subf %98, %110 : vector<16x48xf32>
    %cst_55 = arith.constant 9.99999974E-6 : f32
    %112 = vector.broadcast %cst_55 : f32 to vector<16x1xf32>
    %113 = arith.addf %109, %112 : vector<16x1xf32>
    %114 = math.rsqrt %113 : vector<16x1xf32>
    %115 = vector.broadcast %114 : vector<16x1xf32> to vector<16x48xf32>
    %116 = arith.mulf %111, %115 : vector<16x48xf32>
    %117 = vector.broadcast %28 : vector<1x48xf32> to vector<16x48xf32>
    %118 = arith.mulf %116, %117 : vector<16x48xf32>
    %119 = vector.broadcast %29 : vector<1x48xf32> to vector<16x48xf32>
    %120 = arith.addf %118, %119 : vector<16x48xf32>
    %cst_56 = arith.constant dense<0.000000e+00> : vector<16x192xf32>
    %121 = tpu.matmul %120, %23, %cst_56 {dimension_numbers = #tpu.dot_dimension_numbers<[1], [0], [0], [1], [0, 0, 1, 1], [], []>} : vector<16x48xf32>, vector<48x192xf32>, vector<16x192xf32> -> vector<16x192xf32>
    %122 = vector.broadcast %24 : vector<1x192xf32> to vector<16x192xf32>
    %123 = arith.addf %121, %122 : vector<16x192xf32>
    %cst_57 = arith.constant 0.000000e+00 : f32
    %124 = vector.broadcast %cst_57 : f32 to vector<16x192xf32>
    %125 = arith.maximumf %123, %124 : vector<16x192xf32>
    %cst_58 = arith.constant dense<0.000000e+00> : vector<16x48xf32>
    %126 = tpu.matmul %125, %26, %cst_58 {dimension_numbers = #tpu.dot_dimension_numbers<[1], [0], [0], [1], [0, 0, 1, 1], [], []>} : vector<16x192xf32>, vector<192x48xf32>, vector<16x48xf32> -> vector<16x48xf32>
    %127 = vector.broadcast %27 : vector<1x48xf32> to vector<16x48xf32>
    %128 = arith.addf %126, %127 : vector<16x48xf32>
    %129 = arith.addf %120, %128 : vector<16x48xf32>
    %cst_59 = arith.constant dense<0.000000e+00> : vector<16xf32>
    %130 = vector.multi_reduction <add>, %129, %cst_59 [1] : vector<16x48xf32> to vector<16xf32>
    %131 = vector.shape_cast %130 : vector<16xf32> to vector<16x1xf32>
    %cst_60 = arith.constant 4.800000e+01 : f32
    %132 = vector.broadcast %cst_60 : f32 to vector<16x1xf32>
    %133 = arith.divf %131, %132 : vector<16x1xf32>
    %134 = vector.broadcast %133 : vector<16x1xf32> to vector<16x48xf32>
    %135 = arith.subf %129, %134 : vector<16x48xf32>
    %136 = arith.mulf %135, %135 : vector<16x48xf32>
    %cst_61 = arith.constant dense<0.000000e+00> : vector<16xf32>
    %137 = vector.multi_reduction <add>, %136, %cst_61 [1] : vector<16x48xf32> to vector<16xf32>
    %138 = vector.shape_cast %137 : vector<16xf32> to vector<16x1xf32>
    %cst_62 = arith.constant 4.800000e+01 : f32
    %139 = vector.broadcast %cst_62 : f32 to vector<16x1xf32>
    %140 = arith.divf %138, %139 : vector<16x1xf32>
    %141 = vector.broadcast %133 : vector<16x1xf32> to vector<16x48xf32>
    %142 = arith.subf %129, %141 : vector<16x48xf32>
    %cst_63 = arith.constant 9.99999974E-6 : f32
    %143 = vector.broadcast %cst_63 : f32 to vector<16x1xf32>
    %144 = arith.addf %140, %143 : vector<16x1xf32>
    %145 = math.rsqrt %144 : vector<16x1xf32>
    %146 = vector.broadcast %145 : vector<16x1xf32> to vector<16x48xf32>
    %147 = arith.mulf %142, %146 : vector<16x48xf32>
    %148 = vector.broadcast %30 : vector<1x48xf32> to vector<16x48xf32>
    %149 = arith.mulf %147, %148 : vector<16x48xf32>
    %150 = vector.broadcast %31 : vector<1x48xf32> to vector<16x48xf32>
    %151 = arith.addf %149, %150 : vector<16x48xf32>
    %152 = vector.extract_strided_slice %13 {offsets = [0, 96], sizes = [12, 48], strides = [1, 1]} : vector<12x144xf32> to vector<12x48xf32>
    %153 = vector.extract_strided_slice %7 {offsets = [0, 48], sizes = [16, 48], strides = [1, 1]} : vector<16x144xf32> to vector<16x48xf32>
    %154 = vector.extract_strided_slice %7 {offsets = [0, 96], sizes = [16, 48], strides = [1, 1]} : vector<16x144xf32> to vector<16x48xf32>
    %c10_64 = arith.constant 10 : index
    %c0_65 = arith.constant 0 : index
    %c0_66 = arith.constant 0 : index
    %155 = vector.load %arg3[%c10_64, %c0_65, %c0_66] : memref<13x192x192xf32, #tpu.memory_space<vmem>>, vector<1x12x16xf32>
    %156 = vector.shape_cast %155 : vector<1x12x16xf32> to vector<12x16xf32>
    %c3 = arith.constant 3 : index
    %c0_67 = arith.constant 0 : index
    %c0_68 = arith.constant 0 : index
    %157 = vector.load %arg3[%c3, %c0_67, %c0_68] : memref<13x192x192xf32, #tpu.memory_space<vmem>>, vector<1x48x48xf32>
    %158 = vector.shape_cast %157 : vector<1x48x48xf32> to vector<48x48xf32>
    %c3_69 = arith.constant 3 : index
    %c0_70 = arith.constant 0 : index
    %159 = vector.load %arg4[%c3_69, %c0_70] : memref<17x192xf32, #tpu.memory_space<vmem>>, vector<1x48xf32>
    %c5 = arith.constant 5 : index
    %c0_71 = arith.constant 0 : index
    %c0_72 = arith.constant 0 : index
    %160 = vector.load %arg3[%c5, %c0_71, %c0_72] : memref<13x192x192xf32, #tpu.memory_space<vmem>>, vector<1x48x192xf32>
    %161 = vector.shape_cast %160 : vector<1x48x192xf32> to vector<48x192xf32>
    %c5_73 = arith.constant 5 : index
    %c0_74 = arith.constant 0 : index
    %162 = vector.load %arg4[%c5_73, %c0_74] : memref<17x192xf32, #tpu.memory_space<vmem>>, vector<1x192xf32>
    %c7 = arith.constant 7 : index
    %c0_75 = arith.constant 0 : index
    %c0_76 = arith.constant 0 : index
    %163 = vector.load %arg3[%c7, %c0_75, %c0_76] : memref<13x192x192xf32, #tpu.memory_space<vmem>>, vector<1x192x48xf32>
    %164 = vector.shape_cast %163 : vector<1x192x48xf32> to vector<192x48xf32>
    %c7_77 = arith.constant 7 : index
    %c0_78 = arith.constant 0 : index
    %165 = vector.load %arg4[%c7_77, %c0_78] : memref<17x192xf32, #tpu.memory_space<vmem>>, vector<1x48xf32>
    %c12 = arith.constant 12 : index
    %c0_79 = arith.constant 0 : index
    %166 = vector.load %arg4[%c12, %c0_79] : memref<17x192xf32, #tpu.memory_space<vmem>>, vector<1x48xf32>
    %c13 = arith.constant 13 : index
    %c0_80 = arith.constant 0 : index
    %167 = vector.load %arg4[%c13, %c0_80] : memref<17x192xf32, #tpu.memory_space<vmem>>, vector<1x48xf32>
    %c14 = arith.constant 14 : index
    %c0_81 = arith.constant 0 : index
    %168 = vector.load %arg4[%c14, %c0_81] : memref<17x192xf32, #tpu.memory_space<vmem>>, vector<1x48xf32>
    %c15 = arith.constant 15 : index
    %c0_82 = arith.constant 0 : index
    %169 = vector.load %arg4[%c15, %c0_82] : memref<17x192xf32, #tpu.memory_space<vmem>>, vector<1x48xf32>
    %cst_83 = arith.constant 0.000000e+00 : f32
    %170 = vector.broadcast %cst_83 : f32 to vector<12x48xf32>
    %171 = vector.extract_strided_slice %152 {offsets = [0, 0], sizes = [12, 16], strides = [1, 1]} : vector<12x48xf32> to vector<12x16xf32>
    %172 = vector.extract_strided_slice %153 {offsets = [0, 0], sizes = [16, 16], strides = [1, 1]} : vector<16x48xf32> to vector<16x16xf32>
    %173 = vector.extract_strided_slice %154 {offsets = [0, 0], sizes = [16, 16], strides = [1, 1]} : vector<16x48xf32> to vector<16x16xf32>
    %cst_84 = arith.constant dense<0.000000e+00> : vector<12x16xf32>
    %174 = tpu.matmul %171, %172, %cst_84 {dimension_numbers = #tpu.dot_dimension_numbers<[1], [1], [0], [0], [0, 0, 1, 0], [], []>} : vector<12x16xf32>, vector<16x16xf32>, vector<12x16xf32> -> vector<12x16xf32>
    %cst_85 = arith.constant 2.500000e-01 : f32
    %175 = vector.broadcast %cst_85 : f32 to vector<12x16xf32>
    %176 = arith.mulf %174, %175 : vector<12x16xf32>
    %177 = arith.addf %176, %156 : vector<12x16xf32>
    %cst_86 = arith.constant dense<0xFF800000> : vector<12xf32>
    %178 = vector.multi_reduction <maximumf>, %177, %cst_86 [1] : vector<12x16xf32> to vector<12xf32>
    %179 = vector.shape_cast %178 : vector<12xf32> to vector<12x1xf32>
    %180 = vector.broadcast %179 : vector<12x1xf32> to vector<12x16xf32>
    %181 = arith.subf %177, %180 : vector<12x16xf32>
    %182 = math.exp %181 : vector<12x16xf32>
    %cst_87 = arith.constant dense<0.000000e+00> : vector<12xf32>
    %183 = vector.multi_reduction <add>, %182, %cst_87 [1] : vector<12x16xf32> to vector<12xf32>
    %184 = vector.shape_cast %183 : vector<12xf32> to vector<12x1xf32>
    %185 = tpu.reciprocal %184 {approx = true} : vector<12x1xf32> -> vector<12x1xf32>
    %186 = vector.broadcast %185 : vector<12x1xf32> to vector<12x16xf32>
    %187 = arith.mulf %182, %186 : vector<12x16xf32>
    %cst_88 = arith.constant dense<0.000000e+00> : vector<12x16xf32>
    %188 = tpu.matmul %187, %173, %cst_88 {dimension_numbers = #tpu.dot_dimension_numbers<[1], [0], [0], [1], [0, 0, 1, 1], [], []>} : vector<12x16xf32>, vector<16x16xf32>, vector<12x16xf32> -> vector<12x16xf32>
    %189 = vector.extract_strided_slice %158 {offsets = [0, 0], sizes = [16, 48], strides = [1, 1]} : vector<48x48xf32> to vector<16x48xf32>
    %cst_89 = arith.constant dense<0.000000e+00> : vector<12x48xf32>
    %190 = tpu.matmul %188, %189, %cst_89 {dimension_numbers = #tpu.dot_dimension_numbers<[1], [0], [0], [1], [0, 0, 1, 1], [], []>} : vector<12x16xf32>, vector<16x48xf32>, vector<12x48xf32> -> vector<12x48xf32>
    %191 = arith.addf %170, %190 : vector<12x48xf32>
    %192 = vector.extract_strided_slice %152 {offsets = [0, 16], sizes = [12, 16], strides = [1, 1]} : vector<12x48xf32> to vector<12x16xf32>
    %193 = vector.extract_strided_slice %153 {offsets = [0, 16], sizes = [16, 16], strides = [1, 1]} : vector<16x48xf32> to vector<16x16xf32>
    %194 = vector.extract_strided_slice %154 {offsets = [0, 16], sizes = [16, 16], strides = [1, 1]} : vector<16x48xf32> to vector<16x16xf32>
    %cst_90 = arith.constant dense<0.000000e+00> : vector<12x16xf32>
    %195 = tpu.matmul %192, %193, %cst_90 {dimension_numbers = #tpu.dot_dimension_numbers<[1], [1], [0], [0], [0, 0, 1, 0], [], []>} : vector<12x16xf32>, vector<16x16xf32>, vector<12x16xf32> -> vector<12x16xf32>
    %cst_91 = arith.constant 2.500000e-01 : f32
    %196 = vector.broadcast %cst_91 : f32 to vector<12x16xf32>
    %197 = arith.mulf %195, %196 : vector<12x16xf32>
    %198 = arith.addf %197, %156 : vector<12x16xf32>
    %cst_92 = arith.constant dense<0xFF800000> : vector<12xf32>
    %199 = vector.multi_reduction <maximumf>, %198, %cst_92 [1] : vector<12x16xf32> to vector<12xf32>
    %200 = vector.shape_cast %199 : vector<12xf32> to vector<12x1xf32>
    %201 = vector.broadcast %200 : vector<12x1xf32> to vector<12x16xf32>
    %202 = arith.subf %198, %201 : vector<12x16xf32>
    %203 = math.exp %202 : vector<12x16xf32>
    %cst_93 = arith.constant dense<0.000000e+00> : vector<12xf32>
    %204 = vector.multi_reduction <add>, %203, %cst_93 [1] : vector<12x16xf32> to vector<12xf32>
    %205 = vector.shape_cast %204 : vector<12xf32> to vector<12x1xf32>
    %206 = tpu.reciprocal %205 {approx = true} : vector<12x1xf32> -> vector<12x1xf32>
    %207 = vector.broadcast %206 : vector<12x1xf32> to vector<12x16xf32>
    %208 = arith.mulf %203, %207 : vector<12x16xf32>
    %cst_94 = arith.constant dense<0.000000e+00> : vector<12x16xf32>
    %209 = tpu.matmul %208, %194, %cst_94 {dimension_numbers = #tpu.dot_dimension_numbers<[1], [0], [0], [1], [0, 0, 1, 1], [], []>} : vector<12x16xf32>, vector<16x16xf32>, vector<12x16xf32> -> vector<12x16xf32>
    %210 = vector.extract_strided_slice %158 {offsets = [16, 0], sizes = [16, 48], strides = [1, 1]} : vector<48x48xf32> to vector<16x48xf32>
    %cst_95 = arith.constant dense<0.000000e+00> : vector<12x48xf32>
    %211 = tpu.matmul %209, %210, %cst_95 {dimension_numbers = #tpu.dot_dimension_numbers<[1], [0], [0], [1], [0, 0, 1, 1], [], []>} : vector<12x16xf32>, vector<16x48xf32>, vector<12x48xf32> -> vector<12x48xf32>
    %212 = arith.addf %191, %211 : vector<12x48xf32>
    %213 = vector.extract_strided_slice %152 {offsets = [0, 32], sizes = [12, 16], strides = [1, 1]} : vector<12x48xf32> to vector<12x16xf32>
    %214 = vector.extract_strided_slice %153 {offsets = [0, 32], sizes = [16, 16], strides = [1, 1]} : vector<16x48xf32> to vector<16x16xf32>
    %215 = vector.extract_strided_slice %154 {offsets = [0, 32], sizes = [16, 16], strides = [1, 1]} : vector<16x48xf32> to vector<16x16xf32>
    %cst_96 = arith.constant dense<0.000000e+00> : vector<12x16xf32>
    %216 = tpu.matmul %213, %214, %cst_96 {dimension_numbers = #tpu.dot_dimension_numbers<[1], [1], [0], [0], [0, 0, 1, 0], [], []>} : vector<12x16xf32>, vector<16x16xf32>, vector<12x16xf32> -> vector<12x16xf32>
    %cst_97 = arith.constant 2.500000e-01 : f32
    %217 = vector.broadcast %cst_97 : f32 to vector<12x16xf32>
    %218 = arith.mulf %216, %217 : vector<12x16xf32>
    %219 = arith.addf %218, %156 : vector<12x16xf32>
    %cst_98 = arith.constant dense<0xFF800000> : vector<12xf32>
    %220 = vector.multi_reduction <maximumf>, %219, %cst_98 [1] : vector<12x16xf32> to vector<12xf32>
    %221 = vector.shape_cast %220 : vector<12xf32> to vector<12x1xf32>
    %222 = vector.broadcast %221 : vector<12x1xf32> to vector<12x16xf32>
    %223 = arith.subf %219, %222 : vector<12x16xf32>
    %224 = math.exp %223 : vector<12x16xf32>
    %cst_99 = arith.constant dense<0.000000e+00> : vector<12xf32>
    %225 = vector.multi_reduction <add>, %224, %cst_99 [1] : vector<12x16xf32> to vector<12xf32>
    %226 = vector.shape_cast %225 : vector<12xf32> to vector<12x1xf32>
    %227 = tpu.reciprocal %226 {approx = true} : vector<12x1xf32> -> vector<12x1xf32>
    %228 = vector.broadcast %227 : vector<12x1xf32> to vector<12x16xf32>
    %229 = arith.mulf %224, %228 : vector<12x16xf32>
    %cst_100 = arith.constant dense<0.000000e+00> : vector<12x16xf32>
    %230 = tpu.matmul %229, %215, %cst_100 {dimension_numbers = #tpu.dot_dimension_numbers<[1], [0], [0], [1], [0, 0, 1, 1], [], []>} : vector<12x16xf32>, vector<16x16xf32>, vector<12x16xf32> -> vector<12x16xf32>
    %231 = vector.extract_strided_slice %158 {offsets = [32, 0], sizes = [16, 48], strides = [1, 1]} : vector<48x48xf32> to vector<16x48xf32>
    %cst_101 = arith.constant dense<0.000000e+00> : vector<12x48xf32>
    %232 = tpu.matmul %230, %231, %cst_101 {dimension_numbers = #tpu.dot_dimension_numbers<[1], [0], [0], [1], [0, 0, 1, 1], [], []>} : vector<12x16xf32>, vector<16x48xf32>, vector<12x48xf32> -> vector<12x48xf32>
    %233 = arith.addf %212, %232 : vector<12x48xf32>
    %234 = vector.broadcast %159 : vector<1x48xf32> to vector<12x48xf32>
    %235 = arith.addf %233, %234 : vector<12x48xf32>
    %236 = arith.addf %1, %235 : vector<12x48xf32>
    %cst_102 = arith.constant dense<0.000000e+00> : vector<12xf32>
    %237 = vector.multi_reduction <add>, %236, %cst_102 [1] : vector<12x48xf32> to vector<12xf32>
    %238 = vector.shape_cast %237 : vector<12xf32> to vector<12x1xf32>
    %cst_103 = arith.constant 4.800000e+01 : f32
    %239 = vector.broadcast %cst_103 : f32 to vector<12x1xf32>
    %240 = arith.divf %238, %239 : vector<12x1xf32>
    %241 = vector.broadcast %240 : vector<12x1xf32> to vector<12x48xf32>
    %242 = arith.subf %236, %241 : vector<12x48xf32>
    %243 = arith.mulf %242, %242 : vector<12x48xf32>
    %cst_104 = arith.constant dense<0.000000e+00> : vector<12xf32>
    %244 = vector.multi_reduction <add>, %243, %cst_104 [1] : vector<12x48xf32> to vector<12xf32>
    %245 = vector.shape_cast %244 : vector<12xf32> to vector<12x1xf32>
    %cst_105 = arith.constant 4.800000e+01 : f32
    %246 = vector.broadcast %cst_105 : f32 to vector<12x1xf32>
    %247 = arith.divf %245, %246 : vector<12x1xf32>
    %248 = vector.broadcast %240 : vector<12x1xf32> to vector<12x48xf32>
    %249 = arith.subf %236, %248 : vector<12x48xf32>
    %cst_106 = arith.constant 9.99999974E-6 : f32
    %250 = vector.broadcast %cst_106 : f32 to vector<12x1xf32>
    %251 = arith.addf %247, %250 : vector<12x1xf32>
    %252 = math.rsqrt %251 : vector<12x1xf32>
    %253 = vector.broadcast %252 : vector<12x1xf32> to vector<12x48xf32>
    %254 = arith.mulf %249, %253 : vector<12x48xf32>
    %255 = vector.broadcast %166 : vector<1x48xf32> to vector<12x48xf32>
    %256 = arith.mulf %254, %255 : vector<12x48xf32>
    %257 = vector.broadcast %167 : vector<1x48xf32> to vector<12x48xf32>
    %258 = arith.addf %256, %257 : vector<12x48xf32>
    %cst_107 = arith.constant dense<0.000000e+00> : vector<12x192xf32>
    %259 = tpu.matmul %258, %161, %cst_107 {dimension_numbers = #tpu.dot_dimension_numbers<[1], [0], [0], [1], [0, 0, 1, 1], [], []>} : vector<12x48xf32>, vector<48x192xf32>, vector<12x192xf32> -> vector<12x192xf32>
    %260 = vector.broadcast %162 : vector<1x192xf32> to vector<12x192xf32>
    %261 = arith.addf %259, %260 : vector<12x192xf32>
    %cst_108 = arith.constant 0.000000e+00 : f32
    %262 = vector.broadcast %cst_108 : f32 to vector<12x192xf32>
    %263 = arith.maximumf %261, %262 : vector<12x192xf32>
    %cst_109 = arith.constant dense<0.000000e+00> : vector<12x48xf32>
    %264 = tpu.matmul %263, %164, %cst_109 {dimension_numbers = #tpu.dot_dimension_numbers<[1], [0], [0], [1], [0, 0, 1, 1], [], []>} : vector<12x192xf32>, vector<192x48xf32>, vector<12x48xf32> -> vector<12x48xf32>
    %265 = vector.broadcast %165 : vector<1x48xf32> to vector<12x48xf32>
    %266 = arith.addf %264, %265 : vector<12x48xf32>
    %267 = arith.addf %258, %266 : vector<12x48xf32>
    %cst_110 = arith.constant dense<0.000000e+00> : vector<12xf32>
    %268 = vector.multi_reduction <add>, %267, %cst_110 [1] : vector<12x48xf32> to vector<12xf32>
    %269 = vector.shape_cast %268 : vector<12xf32> to vector<12x1xf32>
    %cst_111 = arith.constant 4.800000e+01 : f32
    %270 = vector.broadcast %cst_111 : f32 to vector<12x1xf32>
    %271 = arith.divf %269, %270 : vector<12x1xf32>
    %272 = vector.broadcast %271 : vector<12x1xf32> to vector<12x48xf32>
    %273 = arith.subf %267, %272 : vector<12x48xf32>
    %274 = arith.mulf %273, %273 : vector<12x48xf32>
    %cst_112 = arith.constant dense<0.000000e+00> : vector<12xf32>
    %275 = vector.multi_reduction <add>, %274, %cst_112 [1] : vector<12x48xf32> to vector<12xf32>
    %276 = vector.shape_cast %275 : vector<12xf32> to vector<12x1xf32>
    %cst_113 = arith.constant 4.800000e+01 : f32
    %277 = vector.broadcast %cst_113 : f32 to vector<12x1xf32>
    %278 = arith.divf %276, %277 : vector<12x1xf32>
    %279 = vector.broadcast %271 : vector<12x1xf32> to vector<12x48xf32>
    %280 = arith.subf %267, %279 : vector<12x48xf32>
    %cst_114 = arith.constant 9.99999974E-6 : f32
    %281 = vector.broadcast %cst_114 : f32 to vector<12x1xf32>
    %282 = arith.addf %278, %281 : vector<12x1xf32>
    %283 = math.rsqrt %282 : vector<12x1xf32>
    %284 = vector.broadcast %283 : vector<12x1xf32> to vector<12x48xf32>
    %285 = arith.mulf %280, %284 : vector<12x48xf32>
    %286 = vector.broadcast %168 : vector<1x48xf32> to vector<12x48xf32>
    %287 = arith.mulf %285, %286 : vector<12x48xf32>
    %288 = vector.broadcast %169 : vector<1x48xf32> to vector<12x48xf32>
    %289 = arith.addf %287, %288 : vector<12x48xf32>
    %c11_115 = arith.constant 11 : index
    %c0_116 = arith.constant 0 : index
    %c0_117 = arith.constant 0 : index
    %290 = vector.load %arg3[%c11_115, %c0_116, %c0_117] : memref<13x192x192xf32, #tpu.memory_space<vmem>>, vector<1x2x16xf32>
    %291 = vector.shape_cast %290 : vector<1x2x16xf32> to vector<2x16xf32>
    %cst_118 = arith.constant dense<0.000000e+00> : vector<2x48xf32>
    %292 = tpu.matmul %291, %151, %cst_118 {dimension_numbers = #tpu.dot_dimension_numbers<[1], [0], [0], [1], [0, 0, 1, 1], [], []>} : vector<2x16xf32>, vector<16x48xf32>, vector<2x48xf32> -> vector<2x48xf32>
    %c12_119 = arith.constant 12 : index
    %c0_120 = arith.constant 0 : index
    %c0_121 = arith.constant 0 : index
    %293 = vector.load %arg3[%c12_119, %c0_120, %c0_121] : memref<13x192x192xf32, #tpu.memory_space<vmem>>, vector<1x2x12xf32>
    %294 = vector.shape_cast %293 : vector<1x2x12xf32> to vector<2x12xf32>
    %cst_122 = arith.constant dense<0.000000e+00> : vector<2x48xf32>
    %295 = tpu.matmul %294, %289, %cst_122 {dimension_numbers = #tpu.dot_dimension_numbers<[1], [0], [0], [1], [0, 0, 1, 1], [], []>} : vector<2x12xf32>, vector<12x48xf32>, vector<2x48xf32> -> vector<2x48xf32>
    %c8_123 = arith.constant 8 : index
    %c0_124 = arith.constant 0 : index
    %c0_125 = arith.constant 0 : index
    %296 = vector.load %arg3[%c8_123, %c0_124, %c0_125] : memref<13x192x192xf32, #tpu.memory_space<vmem>>, vector<1x48x128xf32>
    %297 = vector.shape_cast %296 : vector<1x48x128xf32> to vector<48x128xf32>
    %cst_126 = arith.constant dense<0.000000e+00> : vector<2x128xf32>
    %298 = tpu.matmul %292, %297, %cst_126 {dimension_numbers = #tpu.dot_dimension_numbers<[1], [0], [0], [1], [0, 0, 1, 1], [], []>} : vector<2x48xf32>, vector<48x128xf32>, vector<2x128xf32> -> vector<2x128xf32>
    %c8_127 = arith.constant 8 : index
    %c48 = arith.constant 48 : index
    %c0_128 = arith.constant 0 : index
    %299 = vector.load %arg3[%c8_127, %c48, %c0_128] : memref<13x192x192xf32, #tpu.memory_space<vmem>>, vector<1x48x128xf32>
    %300 = vector.shape_cast %299 : vector<1x48x128xf32> to vector<48x128xf32>
    %cst_129 = arith.constant dense<0.000000e+00> : vector<2x128xf32>
    %301 = tpu.matmul %295, %300, %cst_129 {dimension_numbers = #tpu.dot_dimension_numbers<[1], [0], [0], [1], [0, 0, 1, 1], [], []>} : vector<2x48xf32>, vector<48x128xf32>, vector<2x128xf32> -> vector<2x128xf32>
    %302 = arith.addf %298, %301 : vector<2x128xf32>
    %c16 = arith.constant 16 : index
    %c0_130 = arith.constant 0 : index
    %303 = vector.load %arg4[%c16, %c0_130] : memref<17x192xf32, #tpu.memory_space<vmem>>, vector<1x128xf32>
    %304 = vector.broadcast %303 : vector<1x128xf32> to vector<2x128xf32>
    %305 = arith.addf %302, %304 : vector<2x128xf32>
    %306 = arith.negf %305 : vector<2x128xf32>
    %307 = math.exp %306 : vector<2x128xf32>
    %cst_131 = arith.constant 1.000000e+00 : f32
    %308 = vector.broadcast %cst_131 : f32 to vector<2x128xf32>
    %309 = arith.addf %308, %307 : vector<2x128xf32>
    %310 = arith.divf %308, %309 : vector<2x128xf32>
    %c0_132 = arith.constant 0 : index
    %c0_133 = arith.constant 0 : index
    %311 = vector.load %arg5[%c0_132, %c0_133] : memref<2x128xf32, #tpu.memory_space<vmem>>, vector<2x128xf32>
    tpu.vector_store %arg5[%c0_132, %c0_133], %310 {strides = array<i32>} : memref<2x128xf32, #tpu.memory_space<vmem>>, vector<2x128xf32>,
    return
  }
  func.func @transform_0(%arg0: i32) -> (i32, i32) {
    %c0_i32 = arith.constant 0 : i32
    %c0_i32_0 = arith.constant 0 : i32
    %c0_i32_1 = arith.constant 0 : i32
    return %c0_i32, %c0_i32_0 : i32, i32
  }
  func.func @transform_1(%arg0: i32) -> (i32, i32) {
    %c0_i32 = arith.constant 0 : i32
    %c0_i32_0 = arith.constant 0 : i32
    %c0_i32_1 = arith.constant 0 : i32
    return %c0_i32, %c0_i32_0 : i32, i32
  }
  func.func @transform_2(%arg0: i32) -> (i32, i32, i32) {
    %c0_i32 = arith.constant 0 : i32
    %c0_i32_0 = arith.constant 0 : i32
    %c0_i32_1 = arith.constant 0 : i32
    %c0_i32_2 = arith.constant 0 : i32
    return %c0_i32, %c0_i32_0, %c0_i32_1 : i32, i32, i32
  }
  func.func @transform_3(%arg0: i32) -> (i32, i32) {
    %c0_i32 = arith.constant 0 : i32
    %c0_i32_0 = arith.constant 0 : i32
    %c0_i32_1 = arith.constant 0 : i32
    return %c0_i32, %c0_i32_0 : i32, i32
  }
  func.func @transform_4(%arg0: i32) -> (i32, i32) {
    %c0_i32 = arith.constant 0 : i32
    %c0_i32_0 = arith.constant 0 : i32
    %c0_i32_1 = arith.constant 0 : i32
    return %c0_i32, %c0_i32_0 : i32, i32
  }
}

</mosaic_0001>

<llo_original>
// kernel: tpu_custom_call.1
$region0: #{tpu_custom_call.1}
  #allocation0 [shape = 'u32[]', space=smem, size = 0x4, offset = 0x4, fixed_abs, tag = 'smem constant byte address 0x4 - core index']
  #allocation1 [shape = 'u32[144,128]{1,0:T(1,128)}', space=vmem, size = 0x12000, scoped, tag = 'internal scratch']
  %s0 = inlined_call_operand.hbm [shape: f32[16,48], index: 0, kind: input, shape index: {}]
  %s1 = inlined_call_operand.hbm [shape: f32[12,48], index: 1, kind: input, shape index: {}]
  %s2 = inlined_call_operand.hbm [shape: f32[13,192,192], index: 2, kind: input, shape index: {}]
  %s3 = inlined_call_operand.hbm [shape: f32[17,192], index: 3, kind: input, shape index: {}]
  %s4 = inlined_call_operand.hbm [shape: f32[2,128], index: 4, kind: output, shape index: {}]
  %s5 = sld [smem:[#allocation0]]
  $region42: #{tpu_custom_call.1} parent=0
    _
  %s7 = ssub.s32 1, %s5
  %s8 = scalar_select 0, %s7, %s5
  $region1: #{tpu_custom_call.1} parent=0
    #allocation2 [shape = 'u8[8192]{0}', space=vmem, size = 0x2000, scoped, tag = 'input window, operand 0, single buffered']
    #allocation3 [shape = 's32[1]{0}', space=sflag, size = 0x4, scoped, tag = 'scoped memory for tpu_custom_call.1']
    #allocation4 [shape = 's32[1]{0}', space=sflag, size = 0x4, scoped, tag = 'scoped memory for tpu_custom_call.1']
    #allocation5 [shape = 'u8[8192]{0}', space=vmem, size = 0x2000, scoped, tag = 'input window, operand 1, single buffered']
    #allocation6 [shape = 's32[1]{0}', space=sflag, size = 0x4, scoped, tag = 'scoped memory for tpu_custom_call.1']
    #allocation7 [shape = 'u8[2555904]{0}', space=vmem, size = 0x270000, scoped, tag = 'input window, operand 2, single buffered']
    #allocation8 [shape = 'u8[24576]{0}', space=vmem, size = 0x6000, scoped, tag = 'input window, operand 3, single buffered']
    #allocation9 [shape = 's32[1]{0}', space=sflag, size = 0x4, scoped, tag = 'scoped memory for tpu_custom_call.1']
    #allocation10 [shape = 'u8[1024]{0}', space=vmem, size = 0x400, scoped, tag = 'output window, operand 0, single buffered']
    %9 = vsyncpa [#allocation3], 0
    %10 = vsyncpa [#allocation6], 0
    %11 = vsyncpa [#allocation9], 0
    %12 = vsyncpa [#allocation4], 0
    // Predicated region
    $region2: #{tpu_custom_call.1} parent=1 // pred_check
      _
    $region3: #{tpu_custom_call.1} parent=1 // pred_check_branch
      %14 = sbr.rel (0) target = $region5
    $region4: #{tpu_custom_call.1} parent=1 // pred_region
      %s16 = ssub.s32 256, 256
      %17 = vsyncadd [#allocation3], %s16
      %s18 = sshll.u32 [#allocation2], 4
      %s19 = int_to_ptr.vmem [resolvable:$true] %s18
      %24 = dma.hbm_to_vmem [thread:$0]  %s0, 256, %s19, [#allocation3], 128, 128, 8
    $region5: #{tpu_custom_call.1} parent=1 // pred_fallthru
      _
    // Predicated region
    $region6: #{tpu_custom_call.1} parent=1 // pred_check
      _
    $region7: #{tpu_custom_call.1} parent=1 // pred_check_branch
      %26 = sbr.rel (0) target = $region9
    $region8: #{tpu_custom_call.1} parent=1 // pred_region
      %s28 = ssub.s32 256, 256
      %29 = vsyncadd [#allocation6], %s28
      %s30 = sshll.u32 [#allocation5], 4
      %s31 = int_to_ptr.vmem [resolvable:$true] %s30
      %36 = dma.hbm_to_vmem [thread:$0]  %s1, 256, %s31, [#allocation6], 128, 128, 8
    $region9: #{tpu_custom_call.1} parent=1 // pred_fallthru
      _
    // Predicated region
    $region10: #{tpu_custom_call.1} parent=1 // pred_check
      _
    $region11: #{tpu_custom_call.1} parent=1 // pred_check_branch
      %38 = sbr.rel (0) target = $region13
    $region12: #{tpu_custom_call.1} parent=1 // pred_region
      %s40 = ssub.s32 79872, 79872
      %41 = vsyncadd [#allocation6], %s40
      %s42 = sshll.u32 [#allocation7], 4
      %s43 = int_to_ptr.vmem [resolvable:$true] %s42
      %48 = dma.hbm_to_vmem [thread:$0]  %s2, 79872, %s43, [#allocation6], 256, 256, 16
    $region13: #{tpu_custom_call.1} parent=1 // pred_fallthru
      _
    // Predicated region
    $region14: #{tpu_custom_call.1} parent=1 // pred_check
      _
    $region15: #{tpu_custom_call.1} parent=1 // pred_check_branch
      %50 = sbr.rel (0) target = $region17
    $region16: #{tpu_custom_call.1} parent=1 // pred_region
      %s52 = ssub.s32 768, 768
      %53 = vsyncadd [#allocation9], %s52
      %s54 = sshll.u32 [#allocation8], 4
      %s55 = int_to_ptr.vmem [resolvable:$true] %s54
      %60 = dma.hbm_to_vmem [thread:$0]  %s3, 768, %s55, [#allocation9], 256, 256, 16
    $region17: #{tpu_custom_call.1} parent=1 // pred_fallthru
      _
    // Predicated region
    $region18: #{tpu_custom_call.1} parent=1 // pred_check
      _
    $region19: #{tpu_custom_call.1} parent=1 // pred_check_branch
      %62 = sbr.rel (0) target = $region21
    $region20: #{tpu_custom_call.1} parent=1 // pred_region
      %63 = dma.done [#allocation3], 256
    $region21: #{tpu_custom_call.1} parent=1 // pred_fallthru
      _
    // Predicated region
    $region22: #{tpu_custom_call.1} parent=1 // pred_check
      _
    $region23: #{tpu_custom_call.1} parent=1 // pred_check_branch
      %65 = sbr.rel (0) target = $region25
    $region24: #{tpu_custom_call.1} parent=1 // pred_region
      %66 = dma.done [#allocation6], 256
    $region25: #{tpu_custom_call.1} parent=1 // pred_fallthru
      _
    // Predicated region
    $region26: #{tpu_custom_call.1} parent=1 // pred_check
      _
    $region27: #{tpu_custom_call.1} parent=1 // pred_check_branch
      %68 = sbr.rel (0) target = $region29
    $region28: #{tpu_custom_call.1} parent=1 // pred_region
      %69 = dma.done [#allocation6], 79872
    $region29: #{tpu_custom_call.1} parent=1 // pred_fallthru
      _
    // Predicated region
    $region30: #{tpu_custom_call.1} parent=1 // pred_check
      _
    $region31: #{tpu_custom_call.1} parent=1 // pred_check_branch
      %71 = sbr.rel (0) target = $region33
    $region32: #{tpu_custom_call.1} parent=1 // pred_region
      %72 = dma.done [#allocation9], 768
    $region33: #{tpu_custom_call.1} parent=1 // pred_fallthru
      _
    %v73 = vld [vmem:[#allocation2] sm:$0xff]
    %v74 = vld [vmem:[#allocation2 + $0x8] sm:$0xff]
    %v75 = vld [vmem:[#allocation5] sm:$0xff]
    %v76 = vld [vmem:[#allocation5 + $0x8] sm:$0xf]
    %v77 = vld [vmem:[#allocation7] sm:$0xff]
    %v78 = vld [vmem:[#allocation7 + $0x8] sm:$0xff]
    %v79 = vld [vmem:[#allocation7 + $0x10] sm:$0xff]
    %v80 = vld [vmem:[#allocation7 + $0x18] sm:$0xff]
    %v81 = vld [vmem:[#allocation7 + $0x20] sm:$0xff]
    %v82 = vld [vmem:[#allocation7 + $0x28] sm:$0xff]
    %v83 = vld [vmem:[#allocation7 + $0x30] sm:$0xff]
    %v84 = vld [vmem:[#allocation7 + $0x38] sm:$0xff]
    %v85 = vld [vmem:[#allocation7 + $0x40] sm:$0xff]
    %v86 = vld [vmem:[#allocation7 + $0x48] sm:$0xff]
    %v87 = vld [vmem:[#allocation7 + $0x50] sm:$0xff]
    %v88 = vld [vmem:[#allocation7 + $0x58] sm:$0xff]
    %v89 = vld [vmem:[#allocation8] ss:$8 sm:$0x3]
    %v91 = vlaneseq
    %v92 = vshrl.u32 %v91, 7
    %v93 = vsub.s32 0, %v92
    %v94 = vrot.slane %v89, %v93
    %v95 = vlaneseq
    %v96 = vshrl.u32 %v95, 7
    %v97 = vsub.s32 1, %v96
    %v98 = vrot.slane %v89, %v97
    %vm101 = vcmask 392192
    %v103 = vsel %vm101, %v73, 0
    %v106 = vsel %vm101, %v74, 0
    %108 = vmatprep.subr.mxu0 %v78
    %109 = vmatpush1.msra.mxu0 %v77
    %110 = vmatprep.subr.mxu0 %v80
    %111 = vmatpush1.msra.mxu0 %v79
    %112 = vmatprep.subr.mxu0 %v82
    %113 = vmatpush1.msra.mxu0 %v81
    %114 = vmatprep.subr.mxu0 %v84
    %115 = vmatpush1.msra.mxu0 %v83
    %116 = vmatprep.subr.mxu0 %v86
    %117 = vmatpush1.msra.mxu0 %v85
    %118 = vmatprep.subr.mxu0 %v88
    %119 = vmatpush1.msra.mxu0 %v87
    %120 = vmatprep.subr.mxu0 0.0
    %121 = vmatpush1.msra.mxu0 0.0
    %122 = vmatprep.subr.mxu0 0.0
    %123 = vmatpush1.msra.mxu0 0.0
    %124 = vmatprep.subr.mxu0 0.0
    %125 = vmatpush1.msra.mxu0 0.0
    %126 = vmatprep.subr.mxu0 0.0
    %127 = vmatpush1.msra.mxu0 0.0
    %128 = vmatprep.subr.mxu0 0.0
    %129 = vmatpush1.msra.mxu0 0.0
    %130 = vmatprep.subr.mxu0 0.0
    %131 = vmatpush1.msra.mxu0 0.0
    %132 = vmatprep.subr.mxu0 0.0
    %133 = vmatpush1.msra.mxu0 0.0
    %134 = vmatprep.subr.mxu0 0.0
    %135 = vmatpush1.msra.mxu0 0.0
    %136 = vmatprep.subr.mxu0 0.0
    %137 = vmatpush1.msra.mxu0 0.0
    %138 = vmatprep.subr.mxu0 0.0
    %139 = vmatpush1.msra.mxu0 0.0
    %140 = vmatprep.subr.mxu0 0.0
    %141 = vmatpush1.msra.mxu0 0.0
    %142 = vmatprep.subr.mxu0 0.0
    %143 = vmatpush1.msra.mxu0 0.0
    %144 = vmatprep.subr.mxu0 0.0
    %145 = vmatpush1.msra.mxu0 0.0
    %146 = vmatprep.subr.mxu0 0.0
    %147 = vmatpush1.msra.mxu0 0.0
    %148 = vmatprep.subr.mxu0 0.0
    %149 = vmatpush1.msra.mxu0 0.0
    %150 = vmatprep.subr.mxu0 0.0
    %151 = vmatpush1.msra.mxu0 0.0
    %152 = vmatprep.subr.mxu0 0.0
    %153 = vmatpush1.msra.mxu0 0.0
    %154 = vmatprep.subr.mxu0 0.0
    %155 = vmatpush1.msra.mxu0 0.0
    %156 = vmatprep.subr.mxu0 0.0
    %157 = vmatpush1.msra.mxu0 0.0
    %158 = vmatprep.subr.mxu0 0.0
    %159 = vmatpush1.msra.mxu0 0.0
    %160 = vmatprep.subr.mxu0 0.0
    %161 = vmatpush1.msra.mxu0 0.0
    %162 = vmatprep.subr.mxu0 0.0
    %163 = vmatpush1.msra.mxu0 0.0
    %164 = vmatprep.subr.mxu0 0.0
    %165 = vmatpush1.msra.mxu0 0.0
    %166 = vmatprep.subr.mxu0 0.0
    %167 = vmatpush1.msra.mxu0 0.0
    %168 = vmatprep.subr.mxu0 0.0
    %169 = vmatpush1.msra.mxu0 0.0
    %170 = vmatprep.subr.mxu0 0.0
    %171 = vmatpush1.msra.mxu0 0.0
    %172 = vmatprep.mubr.f32.mxu0 0.0
    %173 = vmatmul.mubr.f32.gmra.mrb[0].mxu0 %v103
    %v174 = vpop.f32.mrb[0].mxu0
    %v175 = vadd.f32 %v94, %v174
    %v176 = vpop.f32.mrb[0].mxu0
    %v177 = vadd.f32 %v98, %v176
    %178 = vmatprep.mubr.f32.mxu0 0.0
    %179 = vmatmul.mubr.f32.gmra.mrb[0].mxu0 %v106
    %v180 = vpop.f32.mrb[0].mxu0
    %v181 = vadd.f32 %v94, %v180
    %v182 = vpop.f32.mrb[0].mxu0
    %v183 = vadd.f32 %v98, %v182
    %184 = vdwg.mxu0
    %s185 = scalar_lea.vmem [#allocation7], 384
    %v186 = vld [vmem:[%s185] sm:$0xff]
    %v187 = vld [vmem:[%s185 + $0x8] sm:$0xff]
    %v188 = vld [vmem:[%s185 + $0x10] sm:$0xff]
    %v189 = vld [vmem:[%s185 + $0x18] sm:$0xff]
    %v190 = vld [vmem:[%s185 + $0x20] sm:$0xff]
    %v191 = vld [vmem:[%s185 + $0x28] sm:$0xff]
    %v192 = vld [vmem:[%s185 + $0x30] sm:$0xff]
    %v193 = vld [vmem:[%s185 + $0x38] sm:$0xff]
    %v194 = vld [vmem:[%s185 + $0x40] sm:$0xff]
    %v195 = vld [vmem:[%s185 + $0x48] sm:$0xff]
    %v196 = vld [vmem:[%s185 + $0x50] sm:$0xff]
    %v197 = vld [vmem:[%s185 + $0x58] sm:$0xff]
    %s198 = scalar_lea.vmem [#allocation8], 1
    %v199 = vld [vmem:[%s198] ss:$8 sm:$0x3]
    %v201 = vlaneseq
    %v202 = vshrl.u32 %v201, 7
    %v203 = vsub.s32 0, %v202
    %v204 = vrot.slane %v199, %v203
    %v205 = vlaneseq
    %v206 = vshrl.u32 %v205, 7
    %v207 = vsub.s32 1, %v206
    %v208 = vrot.slane %v199, %v207
    %v212 = vsel %vm101, %v75, 0
    %v215 = vsel %vm101, %v76, 0
    %217 = vmatprep.subr.mxu0 %v187
    %218 = vmatpush1.msra.mxu0 %v186
    %219 = vmatprep.subr.mxu0 %v189
    %220 = vmatpush1.msra.mxu0 %v188
    %221 = vmatprep.subr.mxu0 %v191
    %222 = vmatpush1.msra.mxu0 %v190
    %223 = vmatprep.subr.mxu0 %v193
    %224 = vmatpush1.msra.mxu0 %v192
    %225 = vmatprep.subr.mxu0 %v195
    %226 = vmatpush1.msra.mxu0 %v194
    %227 = vmatprep.subr.mxu0 %v197
    %228 = vmatpush1.msra.mxu0 %v196
    %229 = vmatprep.subr.mxu0 0.0
    %230 = vmatpush1.msra.mxu0 0.0
    %231 = vmatprep.subr.mxu0 0.0
    %232 = vmatpush1.msra.mxu0 0.0
    %233 = vmatprep.subr.mxu0 0.0
    %234 = vmatpush1.msra.mxu0 0.0
    %235 = vmatprep.subr.mxu0 0.0
    %236 = vmatpush1.msra.mxu0 0.0
    %237 = vmatprep.subr.mxu0 0.0
    %238 = vmatpush1.msra.mxu0 0.0
    %239 = vmatprep.subr.mxu0 0.0
    %240 = vmatpush1.msra.mxu0 0.0
    %241 = vmatprep.subr.mxu0 0.0
    %242 = vmatpush1.msra.mxu0 0.0
    %243 = vmatprep.subr.mxu0 0.0
    %244 = vmatpush1.msra.mxu0 0.0
    %245 = vmatprep.subr.mxu0 0.0
    %246 = vmatpush1.msra.mxu0 0.0
    %247 = vmatprep.subr.mxu0 0.0
    %248 = vmatpush1.msra.mxu0 0.0
    %249 = vmatprep.subr.mxu0 0.0
    %250 = vmatpush1.msra.mxu0 0.0
    %251 = vmatprep.subr.mxu0 0.0
    %252 = vmatpush1.msra.mxu0 0.0
    %253 = vmatprep.subr.mxu0 0.0
    %254 = vmatpush1.msra.mxu0 0.0
    %255 = vmatprep.subr.mxu0 0.0
    %256 = vmatpush1.msra.mxu0 0.0
    %257 = vmatprep.subr.mxu0 0.0
    %258 = vmatpush1.msra.mxu0 0.0
    %259 = vmatprep.subr.mxu0 0.0
    %260 = vmatpush1.msra.mxu0 0.0
    %261 = vmatprep.subr.mxu0 0.0
    %262 = vmatpush1.msra.mxu0 0.0
    %263 = vmatprep.subr.mxu0 0.0
    %264 = vmatpush1.msra.mxu0 0.0
    %265 = vmatprep.subr.mxu0 0.0
    %266 = vmatpush1.msra.mxu0 0.0
    %267 = vmatprep.subr.mxu0 0.0
    %268 = vmatpush1.msra.mxu0 0.0
    %269 = vmatprep.subr.mxu0 0.0
    %270 = vmatpush1.msra.mxu0 0.0
    %271 = vmatprep.subr.mxu0 0.0
    %272 = vmatpush1.msra.mxu0 0.0
    %273 = vmatprep.subr.mxu0 0.0
    %274 = vmatpush1.msra.mxu0 0.0
    %275 = vmatprep.subr.mxu0 0.0
    %276 = vmatpush1.msra.mxu0 0.0
    %277 = vmatprep.subr.mxu0 0.0
    %278 = vmatpush1.msra.mxu0 0.0
    %279 = vmatprep.subr.mxu0 0.0
    %280 = vmatpush1.msra.mxu0 0.0
    %281 = vmatprep.mubr.f32.mxu0 0.0
    %282 = vmatmul.mubr.f32.gmra.mrb[0].mxu0 %v212
    %v283 = vpop.f32.mrb[0].mxu0
    %v284 = vadd.f32 %v204, %v283
    %v285 = vpop.f32.mrb[0].mxu0
    %v286 = vadd.f32 %v208, %v285
    %287 = vmatprep.mubr.f32.mxu0 0.0
    %288 = vmatmul.mubr.f32.gmra.mrb[0].mxu0 %v215
    %v289 = vpop.f32.mrb[0].mxu0
    %v290 = vadd.f32 %v204, %v289
    %v291 = vpop.f32.mrb[0].mxu0
    %v292 = vadd.f32 %v208, %v291
    %293 = vdwg.mxu0
    %s294 = scalar_lea.vmem [#allocation7], 3456
    %v295 = vld [vmem:[%s294] sm:$0xff]
    %v296 = vld [vmem:[%s294 + $0x10] sm:$0xff]
    %s297 = scalar_lea.vmem [#allocation7], 768
    %v298 = vld [vmem:[%s297] sm:$0xff]
    %v299 = vld [vmem:[%s297 + $0x10] sm:$0xff]
    %v300 = vld [vmem:[%s297 + $0x20] sm:$0xff]
    %v301 = vld [vmem:[%s297 + $0x30] sm:$0xff]
    %v302 = vld [vmem:[%s297 + $0x40] sm:$0xff]
    %v303 = vld [vmem:[%s297 + $0x50] sm:$0xff]
    %v304 = vld [vmem:[#allocation8 + $0x2] ss:$0 sm:$0xff]
    %s305 = scalar_lea.vmem [#allocation7], 1536
    %v306 = vld [vmem:[%s305] sm:$0xff]
    %v307 = vld [vmem:[%s305 + $0x8] sm:$0xff]
    %v308 = vld [vmem:[%s305 + $0x10] sm:$0xff]
    %v309 = vld [vmem:[%s305 + $0x18] sm:$0xff]
    %v310 = vld [vmem:[%s305 + $0x20] sm:$0xff]
    %v311 = vld [vmem:[%s305 + $0x28] sm:$0xff]
    %v312 = vld [vmem:[%s305 + $0x30] sm:$0xff]
    %v313 = vld [vmem:[%s305 + $0x38] sm:$0xff]
    %v314 = vld [vmem:[%s305 + $0x40] sm:$0xff]
    %v315 = vld [vmem:[%s305 + $0x48] sm:$0xff]
    %v316 = vld [vmem:[%s305 + $0x50] sm:$0xff]
    %v317 = vld [vmem:[%s305 + $0x58] sm:$0xff]
    %s318 = scalar_lea.vmem [#allocation8], 4
    %v319 = vld [vmem:[%s318] ss:$8 sm:$0x3]
    %s320 = scalar_lea.vmem [#allocation7], 2304
    %v321 = vld [vmem:[%s320] sm:$0xff]
    %v322 = vld [vmem:[%s320 + $0x10] sm:$0xff]
    %v323 = vld [vmem:[%s320 + $0x20] sm:$0xff]
    %v324 = vld [vmem:[%s320 + $0x30] sm:$0xff]
    %v325 = vld [vmem:[%s320 + $0x40] sm:$0xff]
    %v326 = vld [vmem:[%s320 + $0x50] sm:$0xff]
    %v327 = vld [vmem:[%s320 + $0x60] sm:$0xff]
    %v328 = vld [vmem:[%s320 + $0x70] sm:$0xff]
    %v329 = vld [vmem:[%s320 + $0x80] sm:$0xff]
    %v330 = vld [vmem:[%s320 + $0x90] sm:$0xff]
    %v331 = vld [vmem:[%s320 + $0xa0] sm:$0xff]
    %v332 = vld [vmem:[%s320 + $0xb0] sm:$0xff]
    %v333 = vld [vmem:[%s320 + $0xc0] sm:$0xff]
    %v334 = vld [vmem:[%s320 + $0xd0] sm:$0xff]
    %v335 = vld [vmem:[%s320 + $0xe0] sm:$0xff]
    %v336 = vld [vmem:[%s320 + $0xf0] sm:$0xff]
    %v337 = vld [vmem:[%s320 + $0x100] sm:$0xff]
    %v338 = vld [vmem:[%s320 + $0x110] sm:$0xff]
    %v339 = vld [vmem:[%s320 + $0x120] sm:$0xff]
    %v340 = vld [vmem:[%s320 + $0x130] sm:$0xff]
    %v341 = vld [vmem:[%s320 + $0x140] sm:$0xff]
    %v342 = vld [vmem:[%s320 + $0x150] sm:$0xff]
    %v343 = vld [vmem:[%s320 + $0x160] sm:$0xff]
    %v344 = vld [vmem:[%s320 + $0x170] sm:$0xff]
    %v345 = vld [vmem:[#allocation8 + $0x6] ss:$0 sm:$0xff]
    %v346 = vld [vmem:[#allocation8 + $0x10] ss:$0 sm:$0xff]
    %v347 = vld [vmem:[#allocation8 + $0x11] ss:$0 sm:$0xff]
    %v348 = vld [vmem:[#allocation8 + $0x12] ss:$0 sm:$0xff]
    %v349 = vld [vmem:[#allocation8 + $0x13] ss:$0 sm:$0xff]
    %vm350 = vcmask 130048
    %v352 = vsel %vm350, %v175, 0
    %v355 = vsel %vm350, %v181, 0
    %v358 = vsel %vm350, %v284, 0
    %v361 = vsel %vm350, %v290, 0
    %363 = vmatprep.subr.mxu0 0.0
    %364 = vmatpush1.xpose.msra.mxu0 %v358
    %365 = vmatprep.subr.mxu0 0.0
    %366 = vmatpush1.xpose.msra.mxu0 %v361
    %367 = vmatprep.subr.mxu0 0.0
    %368 = vmatpush1.xpose.msra.mxu0 0.0
    %369 = vmatprep.subr.mxu0 0.0
    %370 = vmatpush1.xpose.msra.mxu0 0.0
    %371 = vmatprep.subr.mxu0 0.0
    %372 = vmatpush1.xpose.msra.mxu0 0.0
    %373 = vmatprep.subr.mxu0 0.0
    %374 = vmatpush1.xpose.msra.mxu0 0.0
    %375 = vmatprep.subr.mxu0 0.0
    %376 = vmatpush1.xpose.msra.mxu0 0.0
    %377 = vmatprep.subr.mxu0 0.0
    %378 = vmatpush1.xpose.msra.mxu0 0.0
    %379 = vmatprep.subr.mxu0 0.0
    %380 = vmatpush1.xpose.msra.mxu0 0.0
    %381 = vmatprep.subr.mxu0 0.0
    %382 = vmatpush1.xpose.msra.mxu0 0.0
    %383 = vmatprep.subr.mxu0 0.0
    %384 = vmatpush1.xpose.msra.mxu0 0.0
    %385 = vmatprep.subr.mxu0 0.0
    %386 = vmatpush1.xpose.msra.mxu0 0.0
    %387 = vmatprep.subr.mxu0 0.0
    %388 = vmatpush1.xpose.msra.mxu0 0.0
    %389 = vmatprep.subr.mxu0 0.0
    %390 = vmatpush1.xpose.msra.mxu0 0.0
    %391 = vmatprep.subr.mxu0 0.0
    %392 = vmatpush1.xpose.msra.mxu0 0.0
    %393 = vmatprep.subr.mxu0 0.0
    %394 = vmatpush1.xpose.msra.mxu0 0.0
    %395 = vmatprep.subr.mxu0 0.0
    %396 = vmatpush1.xpose.msra.mxu0 0.0
    %397 = vmatprep.subr.mxu0 0.0
    %398 = vmatpush1.xpose.msra.mxu0 0.0
    %399 = vmatprep.subr.mxu0 0.0
    %400 = vmatpush1.xpose.msra.mxu0 0.0
    %401 = vmatprep.subr.mxu0 0.0
    %402 = vmatpush1.xpose.msra.mxu0 0.0
    %403 = vmatprep.subr.mxu0 0.0
    %404 = vmatpush1.xpose.msra.mxu0 0.0
    %405 = vmatprep.subr.mxu0 0.0
    %406 = vmatpush1.xpose.msra.mxu0 0.0
    %407 = vmatprep.subr.mxu0 0.0
    %408 = vmatpush1.xpose.msra.mxu0 0.0
    %409 = vmatprep.subr.mxu0 0.0
    %410 = vmatpush1.xpose.msra.mxu0 0.0
    %411 = vmatprep.subr.mxu0 0.0
    %412 = vmatpush1.xpose.msra.mxu0 0.0
    %413 = vmatprep.subr.mxu0 0.0
    %414 = vmatpush1.xpose.msra.mxu0 0.0
    %415 = vmatprep.subr.mxu0 0.0
    %416 = vmatpush1.xpose.msra.mxu0 0.0
    %417 = vmatprep.subr.mxu0 0.0
    %418 = vmatpush1.xpose.msra.mxu0 0.0
    %419 = vmatprep.subr.mxu0 0.0
    %420 = vmatpush1.xpose.msra.mxu0 0.0
    %421 = vmatprep.subr.mxu0 0.0
    %422 = vmatpush1.xpose.msra.mxu0 0.0
    %423 = vmatprep.subr.mxu0 0.0
    %424 = vmatpush1.xpose.msra.mxu0 0.0
    %425 = vmatprep.subr.mxu0 0.0
    %426 = vmatpush1.xpose.msra.mxu0 0.0
    %427 = vmatprep.mubr.f32.mxu0 0.0
    %428 = vmatmul.mubr.f32.gmra.mrb[0].mxu0 %v352
    %v429 = vpop.f32.mrb[0].mxu0
    %v430 = vadd.f32 0.0, %v429
    %v431 = vpop.f32.mrb[0].mxu0
    %432 = vmatprep.mubr.f32.mxu0 0.0
    %433 = vmatmul.mubr.f32.gmra.mrb[0].mxu0 %v355
    %v434 = vpop.f32.mrb[0].mxu0
    %v435 = vadd.f32 0.0, %v434
    %v436 = vpop.f32.mrb[0].mxu0
    %437 = vdwg.mxu0
    %v438 = vmul.f32 %v430, 0.25
    %v439 = vmul.f32 %v435, 0.25
    %v440 = vadd.f32 %v438, %v295
    %v441 = vadd.f32 %v439, %v296
    %vm442 = vcmask 97280
    %v443 = vsel %vm442, %v440, -inf
    %444 = vmax.xlane.f32.xlu0 %v443
    %v445 = vpop.xlane.xlu0 %444
    %v446 = vsel %vm442, %v441, -inf
    %447 = vmax.xlane.f32.xlu0 %v446
    %v448 = vpop.xlane.xlu0 %447
    %v449 = vsub.f32 %v440, %v445
    %v450 = vsub.f32 %v441, %v448
    %v451 = vmul.f32 %v449, 1.442695
    %v452 = vpow.pop %v451
    %v453 = vmul.f32 %v450, 1.442695
    %v454 = vpow.pop %v453
    %v455 = vsel %vm442, %v452, 0.0
    %456 = vadd.xlane.f32.xlu0 %v455
    %v457 = vpop.xlane.xlu0 %456
    %v458 = vsel %vm442, %v454, 0.0
    %459 = vadd.xlane.f32.xlu0 %v458
    %v460 = vpop.xlane.xlu0 %459
    %v461 = vrcp.pop %v457
    %v462 = vrcp.pop %v460
    %v463 = vmul.f32 %v452, %v461
    %v464 = vmul.f32 %v454, %v462
    %465 = vrot.lane.b32.xlu0 %v284, 80
    %v466 = vpop.permute.xlu0 %465
    %467 = vrot.lane.b32.xlu0 %v290, 80
    %v468 = vpop.permute.xlu0 %467
    %v471 = vsel %vm442, %v463, 0
    %v474 = vsel %vm442, %v464, 0
    %vm476 = vcmask 1043456
    %v477 = vsel %vm476, %v468, 0
    %479 = vmatprep.subr.mxu0 0.0
    %480 = vmatpush1.msra.mxu0 %v466
    %481 = vmatprep.subr.mxu0 0.0
    %482 = vmatpush1.msra.mxu0 %v477
    %483 = vmatprep.subr.mxu0 0.0
    %484 = vmatpush1.msra.mxu0 0.0
    %485 = vmatprep.subr.mxu0 0.0
    %486 = vmatpush1.msra.mxu0 0.0
    %487 = vmatprep.subr.mxu0 0.0
    %488 = vmatpush1.msra.mxu0 0.0
    %489 = vmatprep.subr.mxu0 0.0
    %490 = vmatpush1.msra.mxu0 0.0
    %491 = vmatprep.subr.mxu0 0.0
    %492 = vmatpush1.msra.mxu0 0.0
    %493 = vmatprep.subr.mxu0 0.0
    %494 = vmatpush1.msra.mxu0 0.0
    %495 = vmatprep.subr.mxu0 0.0
    %496 = vmatpush1.msra.mxu0 0.0
    %497 = vmatprep.subr.mxu0 0.0
    %498 = vmatpush1.msra.mxu0 0.0
    %499 = vmatprep.subr.mxu0 0.0
    %500 = vmatpush1.msra.mxu0 0.0
    %501 = vmatprep.subr.mxu0 0.0
    %502 = vmatpush1.msra.mxu0 0.0
    %503 = vmatprep.subr.mxu0 0.0
    %504 = vmatpush1.msra.mxu0 0.0
    %505 = vmatprep.subr.mxu0 0.0
    %506 = vmatpush1.msra.mxu0 0.0
    %507 = vmatprep.subr.mxu0 0.0
    %508 = vmatpush1.msra.mxu0 0.0
    %509 = vmatprep.subr.mxu0 0.0
    %510 = vmatpush1.msra.mxu0 0.0
    %511 = vmatprep.subr.mxu0 0.0
    %512 = vmatpush1.msra.mxu0 0.0
    %513 = vmatprep.subr.mxu0 0.0
    %514 = vmatpush1.msra.mxu0 0.0
    %515 = vmatprep.subr.mxu0 0.0
    %516 = vmatpush1.msra.mxu0 0.0
    %517 = vmatprep.subr.mxu0 0.0
    %518 = vmatpush1.msra.mxu0 0.0
    %519 = vmatprep.subr.mxu0 0.0
    %520 = vmatpush1.msra.mxu0 0.0
    %521 = vmatprep.subr.mxu0 0.0
    %522 = vmatpush1.msra.mxu0 0.0
    %523 = vmatprep.subr.mxu0 0.0
    %524 = vmatpush1.msra.mxu0 0.0
    %525 = vmatprep.subr.mxu0 0.0
    %526 = vmatpush1.msra.mxu0 0.0
    %527 = vmatprep.subr.mxu0 0.0
    %528 = vmatpush1.msra.mxu0 0.0
    %529 = vmatprep.subr.mxu0 0.0
    %530 = vmatpush1.msra.mxu0 0.0
    %531 = vmatprep.subr.mxu0 0.0
    %532 = vmatpush1.msra.mxu0 0.0
    %533 = vmatprep.subr.mxu0 0.0
    %534 = vmatpush1.msra.mxu0 0.0
    %535 = vmatprep.subr.mxu0 0.0
    %536 = vmatpush1.msra.mxu0 0.0
    %537 = vmatprep.subr.mxu0 0.0
    %538 = vmatpush1.msra.mxu0 0.0
    %539 = vmatprep.subr.mxu0 0.0
    %540 = vmatpush1.msra.mxu0 0.0
    %541 = vmatprep.subr.mxu0 0.0
    %542 = vmatpush1.msra.mxu0 0.0
    %543 = vmatprep.mubr.f32.mxu0 0.0
    %544 = vmatmul.mubr.f32.gmra.mrb[0].mxu0 %v471
    %v545 = vpop.f32.mrb[0].mxu0
    %v546 = vadd.f32 0.0, %v545
    %v547 = vpop.f32.mrb[0].mxu0
    %548 = vmatprep.mubr.f32.mxu0 0.0
    %549 = vmatmul.mubr.f32.gmra.mrb[0].mxu0 %v474
    %v550 = vpop.f32.mrb[0].mxu0
    %v551 = vadd.f32 0.0, %v550
    %v552 = vpop.f32.mrb[0].mxu0
    %553 = vdwg.mxu0
    %554 = vrot.lane.b32.xlu0 %v175, 112
    %v555 = vpop.permute.xlu0 %554
    %556 = vrot.lane.b32.xlu0 %v181, 112
    %v557 = vpop.permute.xlu0 %556
    %558 = vrot.lane.b32.xlu0 %v284, 112
    %v559 = vpop.permute.xlu0 %558
    %560 = vrot.lane.b32.xlu0 %v290, 112
    %v561 = vpop.permute.xlu0 %560
    %v562 = vsel %vm350, %v555, 0
    %v564 = vsel %vm350, %v557, 0
    %v566 = vsel %vm350, %v559, 0
    %v568 = vsel %vm350, %v561, 0
    %570 = vmatprep.subr.mxu0 0.0
    %571 = vmatpush1.xpose.msra.mxu0 %v566
    %572 = vmatprep.subr.mxu0 0.0
    %573 = vmatpush1.xpose.msra.mxu0 %v568
    %574 = vmatprep.subr.mxu0 0.0
    %575 = vmatpush1.xpose.msra.mxu0 0.0
    %576 = vmatprep.subr.mxu0 0.0
    %577 = vmatpush1.xpose.msra.mxu0 0.0
    %578 = vmatprep.subr.mxu0 0.0
    %579 = vmatpush1.xpose.msra.mxu0 0.0
    %580 = vmatprep.subr.mxu0 0.0
    %581 = vmatpush1.xpose.msra.mxu0 0.0
    %582 = vmatprep.subr.mxu0 0.0
    %583 = vmatpush1.xpose.msra.mxu0 0.0
    %584 = vmatprep.subr.mxu0 0.0
    %585 = vmatpush1.xpose.msra.mxu0 0.0
    %586 = vmatprep.subr.mxu0 0.0
    %587 = vmatpush1.xpose.msra.mxu0 0.0
    %588 = vmatprep.subr.mxu0 0.0
    %589 = vmatpush1.xpose.msra.mxu0 0.0
    %590 = vmatprep.subr.mxu0 0.0
    %591 = vmatpush1.xpose.msra.mxu0 0.0
    %592 = vmatprep.subr.mxu0 0.0
    %593 = vmatpush1.xpose.msra.mxu0 0.0
    %594 = vmatprep.subr.mxu0 0.0
    %595 = vmatpush1.xpose.msra.mxu0 0.0
    %596 = vmatprep.subr.mxu0 0.0
    %597 = vmatpush1.xpose.msra.mxu0 0.0
    %598 = vmatprep.subr.mxu0 0.0
    %599 = vmatpush1.xpose.msra.mxu0 0.0
    %600 = vmatprep.subr.mxu0 0.0
    %601 = vmatpush1.xpose.msra.mxu0 0.0
    %602 = vmatprep.subr.mxu0 0.0
    %603 = vmatpush1.xpose.msra.mxu0 0.0
    %604 = vmatprep.subr.mxu0 0.0
    %605 = vmatpush1.xpose.msra.mxu0 0.0
    %606 = vmatprep.subr.mxu0 0.0
    %607 = vmatpush1.xpose.msra.mxu0 0.0
    %608 = vmatprep.subr.mxu0 0.0
    %609 = vmatpush1.xpose.msra.mxu0 0.0
    %610 = vmatprep.subr.mxu0 0.0
    %611 = vmatpush1.xpose.msra.mxu0 0.0
    %612 = vmatprep.subr.mxu0 0.0
    %613 = vmatpush1.xpose.msra.mxu0 0.0
    %614 = vmatprep.subr.mxu0 0.0
    %615 = vmatpush1.xpose.msra.mxu0 0.0
    %616 = vmatprep.subr.mxu0 0.0
    %617 = vmatpush1.xpose.msra.mxu0 0.0
    %618 = vmatprep.subr.mxu0 0.0
    %619 = vmatpush1.xpose.msra.mxu0 0.0
    %620 = vmatprep.subr.mxu0 0.0
    %621 = vmatpush1.xpose.msra.mxu0 0.0
    %622 = vmatprep.subr.mxu0 0.0
    %623 = vmatpush1.xpose.msra.mxu0 0.0
    %624 = vmatprep.subr.mxu0 0.0
    %625 = vmatpush1.xpose.msra.mxu0 0.0
    %626 = vmatprep.subr.mxu0 0.0
    %627 = vmatpush1.xpose.msra.mxu0 0.0
    %628 = vmatprep.subr.mxu0 0.0
    %629 = vmatpush1.xpose.msra.mxu0 0.0
    %630 = vmatprep.subr.mxu0 0.0
    %631 = vmatpush1.xpose.msra.mxu0 0.0
    %632 = vmatprep.subr.mxu0 0.0
    %633 = vmatpush1.xpose.msra.mxu0 0.0
    %634 = vmatprep.mubr.f32.mxu0 0.0
    %635 = vmatmul.mubr.f32.gmra.mrb[0].mxu0 %v562
    %v636 = vpop.f32.mrb[0].mxu0
    %v637 = vadd.f32 0.0, %v636
    %v638 = vpop.f32.mrb[0].mxu0
    %639 = vmatprep.mubr.f32.mxu0 0.0
    %640 = vmatmul.mubr.f32.gmra.mrb[0].mxu0 %v564
    %v641 = vpop.f32.mrb[0].mxu0
    %v642 = vadd.f32 0.0, %v641
    %v643 = vpop.f32.mrb[0].mxu0
    %644 = vdwg.mxu0
    %v645 = vmul.f32 %v637, 0.25
    %v646 = vmul.f32 %v642, 0.25
    %v647 = vadd.f32 %v645, %v295
    %v648 = vadd.f32 %v646, %v296
    %v649 = vsel %vm442, %v647, -inf
    %650 = vmax.xlane.f32.xlu0 %v649
    %v651 = vpop.xlane.xlu0 %650
    %v652 = vsel %vm442, %v648, -inf
    %653 = vmax.xlane.f32.xlu0 %v652
    %v654 = vpop.xlane.xlu0 %653
    %v655 = vsub.f32 %v647, %v651
    %v656 = vsub.f32 %v648, %v654
    %v657 = vmul.f32 %v655, 1.442695
    %v658 = vpow.pop %v657
    %v659 = vmul.f32 %v656, 1.442695
    %v660 = vpow.pop %v659
    %v661 = vsel %vm442, %v658, 0.0
    %662 = vadd.xlane.f32.xlu0 %v661
    %v663 = vpop.xlane.xlu0 %662
    %v664 = vsel %vm442, %v660, 0.0
    %665 = vadd.xlane.f32.xlu0 %v664
    %v666 = vpop.xlane.xlu0 %665
    %v667 = vrcp.pop %v663
    %v668 = vrcp.pop %v666
    %v669 = vmul.f32 %v658, %v667
    %v670 = vmul.f32 %v660, %v668
    %671 = vrot.lane.b32.xlu0 %v284, 64
    %v672 = vpop.permute.xlu0 %671
    %673 = vrot.lane.b32.xlu0 %v290, 64
    %v674 = vpop.permute.xlu0 %673
    %v677 = vsel %vm442, %v669, 0
    %v680 = vsel %vm442, %v670, 0
    %v682 = vsel %vm476, %v674, 0
    %684 = vmatprep.subr.mxu0 0.0
    %685 = vmatpush1.msra.mxu0 %v672
    %686 = vmatprep.subr.mxu0 0.0
    %687 = vmatpush1.msra.mxu0 %v682
    %688 = vmatprep.subr.mxu0 0.0
    %689 = vmatpush1.msra.mxu0 0.0
    %690 = vmatprep.subr.mxu0 0.0
    %691 = vmatpush1.msra.mxu0 0.0
    %692 = vmatprep.subr.mxu0 0.0
    %693 = vmatpush1.msra.mxu0 0.0
    %694 = vmatprep.subr.mxu0 0.0
    %695 = vmatpush1.msra.mxu0 0.0
    %696 = vmatprep.subr.mxu0 0.0
    %697 = vmatpush1.msra.mxu0 0.0
    %698 = vmatprep.subr.mxu0 0.0
    %699 = vmatpush1.msra.mxu0 0.0
    %700 = vmatprep.subr.mxu0 0.0
    %701 = vmatpush1.msra.mxu0 0.0
    %702 = vmatprep.subr.mxu0 0.0
    %703 = vmatpush1.msra.mxu0 0.0
    %704 = vmatprep.subr.mxu0 0.0
    %705 = vmatpush1.msra.mxu0 0.0
    %706 = vmatprep.subr.mxu0 0.0
    %707 = vmatpush1.msra.mxu0 0.0
    %708 = vmatprep.subr.mxu0 0.0
    %709 = vmatpush1.msra.mxu0 0.0
    %710 = vmatprep.subr.mxu0 0.0
    %711 = vmatpush1.msra.mxu0 0.0
    %712 = vmatprep.subr.mxu0 0.0
    %713 = vmatpush1.msra.mxu0 0.0
    %714 = vmatprep.subr.mxu0 0.0
    %715 = vmatpush1.msra.mxu0 0.0
    %716 = vmatprep.subr.mxu0 0.0
    %717 = vmatpush1.msra.mxu0 0.0
    %718 = vmatprep.subr.mxu0 0.0
    %719 = vmatpush1.msra.mxu0 0.0
    %720 = vmatprep.subr.mxu0 0.0
    %721 = vmatpush1.msra.mxu0 0.0
    %722 = vmatprep.subr.mxu0 0.0
    %723 = vmatpush1.msra.mxu0 0.0
    %724 = vmatprep.subr.mxu0 0.0
    %725 = vmatpush1.msra.mxu0 0.0
    %726 = vmatprep.subr.mxu0 0.0
    %727 = vmatpush1.msra.mxu0 0.0
    %728 = vmatprep.subr.mxu0 0.0
    %729 = vmatpush1.msra.mxu0 0.0
    %730 = vmatprep.subr.mxu0 0.0
    %731 = vmatpush1.msra.mxu0 0.0
    %732 = vmatprep.subr.mxu0 0.0
    %733 = vmatpush1.msra.mxu0 0.0
    %734 = vmatprep.subr.mxu0 0.0
    %735 = vmatpush1.msra.mxu0 0.0
    %736 = vmatprep.subr.mxu0 0.0
    %737 = vmatpush1.msra.mxu0 0.0
    %738 = vmatprep.subr.mxu0 0.0
    %739 = vmatpush1.msra.mxu0 0.0
    %740 = vmatprep.subr.mxu0 0.0
    %741 = vmatpush1.msra.mxu0 0.0
    %742 = vmatprep.subr.mxu0 0.0
    %743 = vmatpush1.msra.mxu0 0.0
    %744 = vmatprep.subr.mxu0 0.0
    %745 = vmatpush1.msra.mxu0 0.0
    %746 = vmatprep.subr.mxu0 0.0
    %747 = vmatpush1.msra.mxu0 0.0
    %748 = vmatprep.mubr.f32.mxu0 0.0
    %749 = vmatmul.mubr.f32.gmra.mrb[0].mxu0 %v677
    %v750 = vpop.f32.mrb[0].mxu0
    %v751 = vadd.f32 0.0, %v750
    %v752 = vpop.f32.mrb[0].mxu0
    %753 = vmatprep.mubr.f32.mxu0 0.0
    %754 = vmatmul.mubr.f32.gmra.mrb[0].mxu0 %v680
    %v755 = vpop.f32.mrb[0].mxu0
    %v756 = vadd.f32 0.0, %v755
    %v757 = vpop.f32.mrb[0].mxu0
    %758 = vdwg.mxu0
    %v760 = vsel %vm350, %v751, 0
    %v763 = vsel %vm350, %v756, 0
    %765 = vmatprep.subr.mxu0 0.0
    %766 = vmatpush1.msra.mxu0 %v300
    %767 = vmatprep.subr.mxu0 0.0
    %768 = vmatpush1.msra.mxu0 %v301
    %769 = vmatprep.subr.mxu0 0.0
    %770 = vmatpush1.msra.mxu0 0.0
    %771 = vmatprep.subr.mxu0 0.0
    %772 = vmatpush1.msra.mxu0 0.0
    %773 = vmatprep.subr.mxu0 0.0
    %774 = vmatpush1.msra.mxu0 0.0
    %775 = vmatprep.subr.mxu0 0.0
    %776 = vmatpush1.msra.mxu0 0.0
    %777 = vmatprep.subr.mxu0 0.0
    %778 = vmatpush1.msra.mxu0 0.0
    %779 = vmatprep.subr.mxu0 0.0
    %780 = vmatpush1.msra.mxu0 0.0
    %781 = vmatprep.subr.mxu0 0.0
    %782 = vmatpush1.msra.mxu0 0.0
    %783 = vmatprep.subr.mxu0 0.0
    %784 = vmatpush1.msra.mxu0 0.0
    %785 = vmatprep.subr.mxu0 0.0
    %786 = vmatpush1.msra.mxu0 0.0
    %787 = vmatprep.subr.mxu0 0.0
    %788 = vmatpush1.msra.mxu0 0.0
    %789 = vmatprep.subr.mxu0 0.0
    %790 = vmatpush1.msra.mxu0 0.0
    %791 = vmatprep.subr.mxu0 0.0
    %792 = vmatpush1.msra.mxu0 0.0
    %793 = vmatprep.subr.mxu0 0.0
    %794 = vmatpush1.msra.mxu0 0.0
    %795 = vmatprep.subr.mxu0 0.0
    %796 = vmatpush1.msra.mxu0 0.0
    %797 = vmatprep.subr.mxu0 0.0
    %798 = vmatpush1.msra.mxu0 0.0
    %799 = vmatprep.subr.mxu0 0.0
    %800 = vmatpush1.msra.mxu0 0.0
    %801 = vmatprep.subr.mxu0 0.0
    %802 = vmatpush1.msra.mxu0 0.0
    %803 = vmatprep.subr.mxu0 0.0
    %804 = vmatpush1.msra.mxu0 0.0
    %805 = vmatprep.subr.mxu0 0.0
    %806 = vmatpush1.msra.mxu0 0.0
    %807 = vmatprep.subr.mxu0 0.0
    %808 = vmatpush1.msra.mxu0 0.0
    %809 = vmatprep.subr.mxu0 0.0
    %810 = vmatpush1.msra.mxu0 0.0
    %811 = vmatprep.subr.mxu0 0.0
    %812 = vmatpush1.msra.mxu0 0.0
    %813 = vmatprep.subr.mxu0 0.0
    %814 = vmatpush1.msra.mxu0 0.0
    %815 = vmatprep.subr.mxu0 0.0
    %816 = vmatpush1.msra.mxu0 0.0
    %817 = vmatprep.subr.mxu0 0.0
    %818 = vmatpush1.msra.mxu0 0.0
    %819 = vmatprep.subr.mxu0 0.0
    %820 = vmatpush1.msra.mxu0 0.0
    %821 = vmatprep.subr.mxu0 0.0
    %822 = vmatpush1.msra.mxu0 0.0
    %823 = vmatprep.subr.mxu0 0.0
    %824 = vmatpush1.msra.mxu0 0.0
    %825 = vmatprep.subr.mxu0 0.0
    %826 = vmatpush1.msra.mxu0 0.0
    %827 = vmatprep.subr.mxu0 0.0
    %828 = vmatpush1.msra.mxu0 0.0
    %829 = vmatprep.mubr.f32.mxu0 0.0
    %830 = vmatmul.mubr.f32.gmra.mrb[0].mxu0 %v760
    %v831 = vpop.f32.mrb[0].mxu0
    %v832 = vadd.f32 0.0, %v831
    %v833 = vpop.f32.mrb[0].mxu0
    %834 = vmatprep.mubr.f32.mxu0 0.0
    %835 = vmatmul.mubr.f32.gmra.mrb[0].mxu0 %v763
    %v836 = vpop.f32.mrb[0].mxu0
    %v837 = vadd.f32 0.0, %v836
    %v838 = vpop.f32.mrb[0].mxu0
    %839 = vdwg.mxu0
    %v841 = vsel %vm350, %v546, 0
    %v844 = vsel %vm350, %v551, 0
    %846 = vmatprep.subr.mxu0 0.0
    %847 = vmatpush1.msra.mxu0 %v298
    %848 = vmatprep.subr.mxu0 0.0
    %849 = vmatpush1.msra.mxu0 %v299
    %850 = vmatprep.subr.mxu0 0.0
    %851 = vmatpush1.msra.mxu0 0.0
    %852 = vmatprep.subr.mxu0 0.0
    %853 = vmatpush1.msra.mxu0 0.0
    %854 = vmatprep.subr.mxu0 0.0
    %855 = vmatpush1.msra.mxu0 0.0
    %856 = vmatprep.subr.mxu0 0.0
    %857 = vmatpush1.msra.mxu0 0.0
    %858 = vmatprep.subr.mxu0 0.0
    %859 = vmatpush1.msra.mxu0 0.0
    %860 = vmatprep.subr.mxu0 0.0
    %861 = vmatpush1.msra.mxu0 0.0
    %862 = vmatprep.subr.mxu0 0.0
    %863 = vmatpush1.msra.mxu0 0.0
    %864 = vmatprep.subr.mxu0 0.0
    %865 = vmatpush1.msra.mxu0 0.0
    %866 = vmatprep.subr.mxu0 0.0
    %867 = vmatpush1.msra.mxu0 0.0
    %868 = vmatprep.subr.mxu0 0.0
    %869 = vmatpush1.msra.mxu0 0.0
    %870 = vmatprep.subr.mxu0 0.0
    %871 = vmatpush1.msra.mxu0 0.0
    %872 = vmatprep.subr.mxu0 0.0
    %873 = vmatpush1.msra.mxu0 0.0
    %874 = vmatprep.subr.mxu0 0.0
    %875 = vmatpush1.msra.mxu0 0.0
    %876 = vmatprep.subr.mxu0 0.0
    %877 = vmatpush1.msra.mxu0 0.0
    %878 = vmatprep.subr.mxu0 0.0
    %879 = vmatpush1.msra.mxu0 0.0
    %880 = vmatprep.subr.mxu0 0.0
    %881 = vmatpush1.msra.mxu0 0.0
    %882 = vmatprep.subr.mxu0 0.0
    %883 = vmatpush1.msra.mxu0 0.0
    %884 = vmatprep.subr.mxu0 0.0
    %885 = vmatpush1.msra.mxu0 0.0
    %886 = vmatprep.subr.mxu0 0.0
    %887 = vmatpush1.msra.mxu0 0.0
    %888 = vmatprep.subr.mxu0 0.0
    %889 = vmatpush1.msra.mxu0 0.0
    %890 = vmatprep.subr.mxu0 0.0
    %891 = vmatpush1.msra.mxu0 0.0
    %892 = vmatprep.subr.mxu0 0.0
    %893 = vmatpush1.msra.mxu0 0.0
    %894 = vmatprep.subr.mxu0 0.0
    %895 = vmatpush1.msra.mxu0 0.0
    %896 = vmatprep.subr.mxu0 0.0
    %897 = vmatpush1.msra.mxu0 0.0
    %898 = vmatprep.subr.mxu0 0.0
    %899 = vmatpush1.msra.mxu0 0.0
    %900 = vmatprep.subr.mxu0 0.0
    %901 = vmatpush1.msra.mxu0 0.0
    %902 = vmatprep.subr.mxu0 0.0
    %903 = vmatpush1.msra.mxu0 0.0
    %904 = vmatprep.subr.mxu0 0.0
    %905 = vmatpush1.msra.mxu0 0.0
    %906 = vmatprep.subr.mxu0 0.0
    %907 = vmatpush1.msra.mxu0 0.0
    %908 = vmatprep.subr.mxu0 0.0
    %909 = vmatpush1.msra.mxu0 0.0
    %910 = vmatprep.mubr.f32.mxu0 0.0
    %911 = vmatmul.mubr.f32.gmra.mrb[0].mxu0 %v841
    %v912 = vpop.f32.mrb[0].mxu0
    %v913 = vadd.f32 %v832, %v912
    %v914 = vpop.f32.mrb[0].mxu0
    %915 = vmatprep.mubr.f32.mxu0 0.0
    %916 = vmatmul.mubr.f32.gmra.mrb[0].mxu0 %v844
    %v917 = vpop.f32.mrb[0].mxu0
    %v918 = vadd.f32 %v837, %v917
    %v919 = vpop.f32.mrb[0].mxu0
    %920 = vdwg.mxu0
    %921 = vrot.lane.b32.xlu0 %v175, 96
    %v922 = vpop.permute.xlu0 %921
    %923 = vrot.lane.b32.xlu0 %v181, 96
    %v924 = vpop.permute.xlu0 %923
    %925 = vrot.lane.b32.xlu0 %v284, 96
    %v926 = vpop.permute.xlu0 %925
    %927 = vrot.lane.b32.xlu0 %v290, 96
    %v928 = vpop.permute.xlu0 %927
    %v929 = vsel %vm350, %v922, 0
    %v931 = vsel %vm350, %v924, 0
    %v933 = vsel %vm350, %v926, 0
    %v935 = vsel %vm350, %v928, 0
    %937 = vmatprep.subr.mxu0 0.0
    %938 = vmatpush1.xpose.msra.mxu0 %v933
    %939 = vmatprep.subr.mxu0 0.0
    %940 = vmatpush1.xpose.msra.mxu0 %v935
    %941 = vmatprep.subr.mxu0 0.0
    %942 = vmatpush1.xpose.msra.mxu0 0.0
    %943 = vmatprep.subr.mxu0 0.0
    %944 = vmatpush1.xpose.msra.mxu0 0.0
    %945 = vmatprep.subr.mxu0 0.0
    %946 = vmatpush1.xpose.msra.mxu0 0.0
    %947 = vmatprep.subr.mxu0 0.0
    %948 = vmatpush1.xpose.msra.mxu0 0.0
    %949 = vmatprep.subr.mxu0 0.0
    %950 = vmatpush1.xpose.msra.mxu0 0.0
    %951 = vmatprep.subr.mxu0 0.0
    %952 = vmatpush1.xpose.msra.mxu0 0.0
    %953 = vmatprep.subr.mxu0 0.0
    %954 = vmatpush1.xpose.msra.mxu0 0.0
    %955 = vmatprep.subr.mxu0 0.0
    %956 = vmatpush1.xpose.msra.mxu0 0.0
    %957 = vmatprep.subr.mxu0 0.0
    %958 = vmatpush1.xpose.msra.mxu0 0.0
    %959 = vmatprep.subr.mxu0 0.0
    %960 = vmatpush1.xpose.msra.mxu0 0.0
    %961 = vmatprep.subr.mxu0 0.0
    %962 = vmatpush1.xpose.msra.mxu0 0.0
    %963 = vmatprep.subr.mxu0 0.0
    %964 = vmatpush1.xpose.msra.mxu0 0.0
    %965 = vmatprep.subr.mxu0 0.0
    %966 = vmatpush1.xpose.msra.mxu0 0.0
    %967 = vmatprep.subr.mxu0 0.0
    %968 = vmatpush1.xpose.msra.mxu0 0.0
    %969 = vmatprep.subr.mxu0 0.0
    %970 = vmatpush1.xpose.msra.mxu0 0.0
    %971 = vmatprep.subr.mxu0 0.0
    %972 = vmatpush1.xpose.msra.mxu0 0.0
    %973 = vmatprep.subr.mxu0 0.0
    %974 = vmatpush1.xpose.msra.mxu0 0.0
    %975 = vmatprep.subr.mxu0 0.0
    %976 = vmatpush1.xpose.msra.mxu0 0.0
    %977 = vmatprep.subr.mxu0 0.0
    %978 = vmatpush1.xpose.msra.mxu0 0.0
    %979 = vmatprep.subr.mxu0 0.0
    %980 = vmatpush1.xpose.msra.mxu0 0.0
    %981 = vmatprep.subr.mxu0 0.0
    %982 = vmatpush1.xpose.msra.mxu0 0.0
    %983 = vmatprep.subr.mxu0 0.0
    %984 = vmatpush1.xpose.msra.mxu0 0.0
    %985 = vmatprep.subr.mxu0 0.0
    %986 = vmatpush1.xpose.msra.mxu0 0.0
    %987 = vmatprep.subr.mxu0 0.0
    %988 = vmatpush1.xpose.msra.mxu0 0.0
    %989 = vmatprep.subr.mxu0 0.0
    %990 = vmatpush1.xpose.msra.mxu0 0.0
    %991 = vmatprep.subr.mxu0 0.0
    %992 = vmatpush1.xpose.msra.mxu0 0.0
    %993 = vmatprep.subr.mxu0 0.0
    %994 = vmatpush1.xpose.msra.mxu0 0.0
    %995 = vmatprep.subr.mxu0 0.0
    %996 = vmatpush1.xpose.msra.mxu0 0.0
    %997 = vmatprep.subr.mxu0 0.0
    %998 = vmatpush1.xpose.msra.mxu0 0.0
    %999 = vmatprep.subr.mxu0 0.0
    %1000 = vmatpush1.xpose.msra.mxu0 0.0
    %1001 = vmatprep.mubr.f32.mxu0 0.0
    %1002 = vmatmul.mubr.f32.gmra.mrb[0].mxu0 %v929
    %v1003 = vpop.f32.mrb[0].mxu0
    %v1004 = vadd.f32 0.0, %v1003
    %v1005 = vpop.f32.mrb[0].mxu0
    %1006 = vmatprep.mubr.f32.mxu0 0.0
    %1007 = vmatmul.mubr.f32.gmra.mrb[0].mxu0 %v931
    %v1008 = vpop.f32.mrb[0].mxu0
    %v1009 = vadd.f32 0.0, %v1008
    %v1010 = vpop.f32.mrb[0].mxu0
    %1011 = vdwg.mxu0
    %v1012 = vmul.f32 %v1004, 0.25
    %v1013 = vmul.f32 %v1009, 0.25
    %v1014 = vadd.f32 %v1012, %v295
    %v1015 = vadd.f32 %v1013, %v296
    %v1016 = vsel %vm442, %v1014, -inf
    %1017 = vmax.xlane.f32.xlu0 %v1016
    %v1018 = vpop.xlane.xlu0 %1017
    %v1019 = vsel %vm442, %v1015, -inf
    %1020 = vmax.xlane.f32.xlu0 %v1019
    %v1021 = vpop.xlane.xlu0 %1020
    %v1022 = vsub.f32 %v1014, %v1018
    %v1023 = vsub.f32 %v1015, %v1021
    %v1024 = vmul.f32 %v1022, 1.442695
    %v1025 = vpow.pop %v1024
    %v1026 = vmul.f32 %v1023, 1.442695
    %v1027 = vpow.pop %v1026
    %v1028 = vsel %vm442, %v1025, 0.0
    %1029 = vadd.xlane.f32.xlu0 %v1028
    %v1030 = vpop.xlane.xlu0 %1029
    %v1031 = vsel %vm442, %v1027, 0.0
    %1032 = vadd.xlane.f32.xlu0 %v1031
    %v1033 = vpop.xlane.xlu0 %1032
    %v1034 = vrcp.pop %v1030
    %v1035 = vrcp.pop %v1033
    %v1036 = vmul.f32 %v1025, %v1034
    %v1037 = vmul.f32 %v1027, %v1035
    %1038 = vrot.lane.b32.xlu0 %v284, 48
    %v1039 = vpop.permute.xlu0 %1038
    %1040 = vrot.lane.b32.xlu0 %v290, 48
    %v1041 = vpop.permute.xlu0 %1040
    %v1044 = vsel %vm442, %v1036, 0
    %v1047 = vsel %vm442, %v1037, 0
    %v1049 = vsel %vm476, %v1041, 0
    %1051 = vmatprep.subr.mxu0 0.0
    %1052 = vmatpush1.msra.mxu0 %v1039
    %1053 = vmatprep.subr.mxu0 0.0
    %1054 = vmatpush1.msra.mxu0 %v1049
    %1055 = vmatprep.subr.mxu0 0.0
    %1056 = vmatpush1.msra.mxu0 0.0
    %1057 = vmatprep.subr.mxu0 0.0
    %1058 = vmatpush1.msra.mxu0 0.0
    %1059 = vmatprep.subr.mxu0 0.0
    %1060 = vmatpush1.msra.mxu0 0.0
    %1061 = vmatprep.subr.mxu0 0.0
    %1062 = vmatpush1.msra.mxu0 0.0
    %1063 = vmatprep.subr.mxu0 0.0
    %1064 = vmatpush1.msra.mxu0 0.0
    %1065 = vmatprep.subr.mxu0 0.0
    %1066 = vmatpush1.msra.mxu0 0.0
    %1067 = vmatprep.subr.mxu0 0.0
    %1068 = vmatpush1.msra.mxu0 0.0
    %1069 = vmatprep.subr.mxu0 0.0
    %1070 = vmatpush1.msra.mxu0 0.0
    %1071 = vmatprep.subr.mxu0 0.0
    %1072 = vmatpush1.msra.mxu0 0.0
    %1073 = vmatprep.subr.mxu0 0.0
    %1074 = vmatpush1.msra.mxu0 0.0
    %1075 = vmatprep.subr.mxu0 0.0
    %1076 = vmatpush1.msra.mxu0 0.0
    %1077 = vmatprep.subr.mxu0 0.0
    %1078 = vmatpush1.msra.mxu0 0.0
    %1079 = vmatprep.subr.mxu0 0.0
    %1080 = vmatpush1.msra.mxu0 0.0
    %1081 = vmatprep.subr.mxu0 0.0
    %1082 = vmatpush1.msra.mxu0 0.0
    %1083 = vmatprep.subr.mxu0 0.0
    %1084 = vmatpush1.msra.mxu0 0.0
    %1085 = vmatprep.subr.mxu0 0.0
    %1086 = vmatpush1.msra.mxu0 0.0
    %1087 = vmatprep.subr.mxu0 0.0
    %1088 = vmatpush1.msra.mxu0 0.0
    %1089 = vmatprep.subr.mxu0 0.0
    %1090 = vmatpush1.msra.mxu0 0.0
    %1091 = vmatprep.subr.mxu0 0.0
    %1092 = vmatpush1.msra.mxu0 0.0
    %1093 = vmatprep.subr.mxu0 0.0
    %1094 = vmatpush1.msra.mxu0 0.0
    %1095 = vmatprep.subr.mxu0 0.0
    %1096 = vmatpush1.msra.mxu0 0.0
    %1097 = vmatprep.subr.mxu0 0.0
    %1098 = vmatpush1.msra.mxu0 0.0
    %1099 = vmatprep.subr.mxu0 0.0
    %1100 = vmatpush1.msra.mxu0 0.0
    %1101 = vmatprep.subr.mxu0 0.0
    %1102 = vmatpush1.msra.mxu0 0.0
    %1103 = vmatprep.subr.mxu0 0.0
    %1104 = vmatpush1.msra.mxu0 0.0
    %1105 = vmatprep.subr.mxu0 0.0
    %1106 = vmatpush1.msra.mxu0 0.0
    %1107 = vmatprep.subr.mxu0 0.0
    %1108 = vmatpush1.msra.mxu0 0.0
    %1109 = vmatprep.subr.mxu0 0.0
    %1110 = vmatpush1.msra.mxu0 0.0
    %1111 = vmatprep.subr.mxu0 0.0
    %1112 = vmatpush1.msra.mxu0 0.0
    %1113 = vmatprep.subr.mxu0 0.0
    %1114 = vmatpush1.msra.mxu0 0.0
    %1115 = vmatprep.mubr.f32.mxu0 0.0
    %1116 = vmatmul.mubr.f32.gmra.mrb[0].mxu0 %v1044
    %v1117 = vpop.f32.mrb[0].mxu0
    %v1118 = vadd.f32 0.0, %v1117
    %v1119 = vpop.f32.mrb[0].mxu0
    %1120 = vmatprep.mubr.f32.mxu0 0.0
    %1121 = vmatmul.mubr.f32.gmra.mrb[0].mxu0 %v1047
    %v1122 = vpop.f32.mrb[0].mxu0
    %v1123 = vadd.f32 0.0, %v1122
    %v1124 = vpop.f32.mrb[0].mxu0
    %1125 = vdwg.mxu0
    %v1127 = vsel %vm350, %v1118, 0
    %v1130 = vsel %vm350, %v1123, 0
    %1132 = vmatprep.subr.mxu0 0.0
    %1133 = vmatpush1.msra.mxu0 %v302
    %1134 = vmatprep.subr.mxu0 0.0
    %1135 = vmatpush1.msra.mxu0 %v303
    %1136 = vmatprep.subr.mxu0 0.0
    %1137 = vmatpush1.msra.mxu0 0.0
    %1138 = vmatprep.subr.mxu0 0.0
    %1139 = vmatpush1.msra.mxu0 0.0
    %1140 = vmatprep.subr.mxu0 0.0
    %1141 = vmatpush1.msra.mxu0 0.0
    %1142 = vmatprep.subr.mxu0 0.0
    %1143 = vmatpush1.msra.mxu0 0.0
    %1144 = vmatprep.subr.mxu0 0.0
    %1145 = vmatpush1.msra.mxu0 0.0
    %1146 = vmatprep.subr.mxu0 0.0
    %1147 = vmatpush1.msra.mxu0 0.0
    %1148 = vmatprep.subr.mxu0 0.0
    %1149 = vmatpush1.msra.mxu0 0.0
    %1150 = vmatprep.subr.mxu0 0.0
    %1151 = vmatpush1.msra.mxu0 0.0
    %1152 = vmatprep.subr.mxu0 0.0
    %1153 = vmatpush1.msra.mxu0 0.0
    %1154 = vmatprep.subr.mxu0 0.0
    %1155 = vmatpush1.msra.mxu0 0.0
    %1156 = vmatprep.subr.mxu0 0.0
    %1157 = vmatpush1.msra.mxu0 0.0
    %1158 = vmatprep.subr.mxu0 0.0
    %1159 = vmatpush1.msra.mxu0 0.0
    %1160 = vmatprep.subr.mxu0 0.0
    %1161 = vmatpush1.msra.mxu0 0.0
    %1162 = vmatprep.subr.mxu0 0.0
    %1163 = vmatpush1.msra.mxu0 0.0
    %1164 = vmatprep.subr.mxu0 0.0
    %1165 = vmatpush1.msra.mxu0 0.0
    %1166 = vmatprep.subr.mxu0 0.0
    %1167 = vmatpush1.msra.mxu0 0.0
    %1168 = vmatprep.subr.mxu0 0.0
    %1169 = vmatpush1.msra.mxu0 0.0
    %1170 = vmatprep.subr.mxu0 0.0
    %1171 = vmatpush1.msra.mxu0 0.0
    %1172 = vmatprep.subr.mxu0 0.0
    %1173 = vmatpush1.msra.mxu0 0.0
    %1174 = vmatprep.subr.mxu0 0.0
    %1175 = vmatpush1.msra.mxu0 0.0
    %1176 = vmatprep.subr.mxu0 0.0
    %1177 = vmatpush1.msra.mxu0 0.0
    %1178 = vmatprep.subr.mxu0 0.0
    %1179 = vmatpush1.msra.mxu0 0.0
    %1180 = vmatprep.subr.mxu0 0.0
    %1181 = vmatpush1.msra.mxu0 0.0
    %1182 = vmatprep.subr.mxu0 0.0
    %1183 = vmatpush1.msra.mxu0 0.0
    %1184 = vmatprep.subr.mxu0 0.0
    %1185 = vmatpush1.msra.mxu0 0.0
    %1186 = vmatprep.subr.mxu0 0.0
    %1187 = vmatpush1.msra.mxu0 0.0
    %1188 = vmatprep.subr.mxu0 0.0
    %1189 = vmatpush1.msra.mxu0 0.0
    %1190 = vmatprep.subr.mxu0 0.0
    %1191 = vmatpush1.msra.mxu0 0.0
    %1192 = vmatprep.subr.mxu0 0.0
    %1193 = vmatpush1.msra.mxu0 0.0
    %1194 = vmatprep.subr.mxu0 0.0
    %1195 = vmatpush1.msra.mxu0 0.0
    %1196 = vmatprep.mubr.f32.mxu0 0.0
    %1197 = vmatmul.mubr.f32.gmra.mrb[0].mxu0 %v1127
    %v1198 = vpop.f32.mrb[0].mxu0
    %v1199 = vadd.f32 0.0, %v1198
    %v1200 = vpop.f32.mrb[0].mxu0
    %1201 = vmatprep.mubr.f32.mxu0 0.0
    %1202 = vmatmul.mubr.f32.gmra.mrb[0].mxu0 %v1130
    %v1203 = vpop.f32.mrb[0].mxu0
    %v1204 = vadd.f32 0.0, %v1203
    %v1205 = vpop.f32.mrb[0].mxu0
    %1206 = vdwg.mxu0
    %v1207 = vadd.f32 %v913, %v1199
    %v1208 = vadd.f32 %v918, %v1204
    %v1209 = vadd.f32 %v1207, %v304
    %v1210 = vadd.f32 %v1208, %v304
    %v1211 = vadd.f32 %v73, %v1209
    %v1212 = vadd.f32 %v74, %v1210
    %v1213 = vsel %vm101, %v1211, 0.0
    %1214 = vadd.xlane.f32.xlu0 %v1213
    %v1215 = vpop.xlane.xlu0 %1214
    %v1216 = vsel %vm101, %v1212, 0.0
    %1217 = vadd.xlane.f32.xlu0 %v1216
    %v1218 = vpop.xlane.xlu0 %1217
    %v1219 = vrcp.pop 48.0
    %v1220 = vmul.f32 %v1215, %v1219
    %v1221 = vmul.f32 %v1218, %v1219
    %v1222 = vsub.f32 %v1211, %v1220
    %v1223 = vsub.f32 %v1212, %v1221
    %v1224 = vmul.f32 %v1222, %v1222
    %v1225 = vmul.f32 %v1223, %v1223
    %v1226 = vsel %vm101, %v1224, 0.0
    %1227 = vadd.xlane.f32.xlu0 %v1226
    %v1228 = vpop.xlane.xlu0 %1227
    %v1229 = vsel %vm101, %v1225, 0.0
    %1230 = vadd.xlane.f32.xlu0 %v1229
    %v1231 = vpop.xlane.xlu0 %1230
    %v1232 = vmul.f32 %v1228, %v1219
    %v1233 = vmul.f32 %v1231, %v1219
    %v1234 = vadd.f32 %v1232, 1e-05
    %v1235 = vadd.f32 %v1233, 1e-05
    %v1236 = vrsqrt.pop %v1234
    %v1237 = vrsqrt.pop %v1235
    %v1238 = vmul.f32 %v1222, %v1236
    %v1239 = vmul.f32 %v1223, %v1237
    %v1240 = vmul.f32 %v1238, %v346
    %v1241 = vmul.f32 %v1239, %v346
    %v1242 = vadd.f32 %v1240, %v347
    %v1243 = vadd.f32 %v1241, %v347
    %v1245 = vlaneseq
    %v1246 = vshrl.u32 %v1245, 7
    %v1247 = vsub.s32 0, %v1246
    %v1248 = vrot.slane %v319, %v1247
    %v1249 = vlaneseq
    %v1250 = vshrl.u32 %v1249, 7
    %v1251 = vsub.s32 1, %v1250
    %v1252 = vrot.slane %v319, %v1251
    %v1256 = vsel %vm101, %v1242, 0
    %v1259 = vsel %vm101, %v1243, 0
    %1261 = vmatprep.subr.mxu0 %v307
    %1262 = vmatpush1.msra.mxu0 %v306
    %1263 = vmatprep.subr.mxu0 %v309
    %1264 = vmatpush1.msra.mxu0 %v308
    %1265 = vmatprep.subr.mxu0 %v311
    %1266 = vmatpush1.msra.mxu0 %v310
    %1267 = vmatprep.subr.mxu0 %v313
    %1268 = vmatpush1.msra.mxu0 %v312
    %1269 = vmatprep.subr.mxu0 %v315
    %1270 = vmatpush1.msra.mxu0 %v314
    %1271 = vmatprep.subr.mxu0 %v317
    %1272 = vmatpush1.msra.mxu0 %v316
    %1273 = vmatprep.subr.mxu0 0.0
    %1274 = vmatpush1.msra.mxu0 0.0
    %1275 = vmatprep.subr.mxu0 0.0
    %1276 = vmatpush1.msra.mxu0 0.0
    %1277 = vmatprep.subr.mxu0 0.0
    %1278 = vmatpush1.msra.mxu0 0.0
    %1279 = vmatprep.subr.mxu0 0.0
    %1280 = vmatpush1.msra.mxu0 0.0
    %1281 = vmatprep.subr.mxu0 0.0
    %1282 = vmatpush1.msra.mxu0 0.0
    %1283 = vmatprep.subr.mxu0 0.0
    %1284 = vmatpush1.msra.mxu0 0.0
    %1285 = vmatprep.subr.mxu0 0.0
    %1286 = vmatpush1.msra.mxu0 0.0
    %1287 = vmatprep.subr.mxu0 0.0
    %1288 = vmatpush1.msra.mxu0 0.0
    %1289 = vmatprep.subr.mxu0 0.0
    %1290 = vmatpush1.msra.mxu0 0.0
    %1291 = vmatprep.subr.mxu0 0.0
    %1292 = vmatpush1.msra.mxu0 0.0
    %1293 = vmatprep.subr.mxu0 0.0
    %1294 = vmatpush1.msra.mxu0 0.0
    %1295 = vmatprep.subr.mxu0 0.0
    %1296 = vmatpush1.msra.mxu0 0.0
    %1297 = vmatprep.subr.mxu0 0.0
    %1298 = vmatpush1.msra.mxu0 0.0
    %1299 = vmatprep.subr.mxu0 0.0
    %1300 = vmatpush1.msra.mxu0 0.0
    %1301 = vmatprep.subr.mxu0 0.0
    %1302 = vmatpush1.msra.mxu0 0.0
    %1303 = vmatprep.subr.mxu0 0.0
    %1304 = vmatpush1.msra.mxu0 0.0
    %1305 = vmatprep.subr.mxu0 0.0
    %1306 = vmatpush1.msra.mxu0 0.0
    %1307 = vmatprep.subr.mxu0 0.0
    %1308 = vmatpush1.msra.mxu0 0.0
    %1309 = vmatprep.subr.mxu0 0.0
    %1310 = vmatpush1.msra.mxu0 0.0
    %1311 = vmatprep.subr.mxu0 0.0
    %1312 = vmatpush1.msra.mxu0 0.0
    %1313 = vmatprep.subr.mxu0 0.0
    %1314 = vmatpush1.msra.mxu0 0.0
    %1315 = vmatprep.subr.mxu0 0.0
    %1316 = vmatpush1.msra.mxu0 0.0
    %1317 = vmatprep.subr.mxu0 0.0
    %1318 = vmatpush1.msra.mxu0 0.0
    %1319 = vmatprep.subr.mxu0 0.0
    %1320 = vmatpush1.msra.mxu0 0.0
    %1321 = vmatprep.subr.mxu0 0.0
    %1322 = vmatpush1.msra.mxu0 0.0
    %1323 = vmatprep.subr.mxu0 0.0
    %1324 = vmatpush1.msra.mxu0 0.0
    %1325 = vmatprep.mubr.f32.mxu0 0.0
    %1326 = vmatmul.mubr.f32.gmra.mrb[0].mxu0 %v1256
    %v1327 = vpop.f32.mrb[0].mxu0
    %v1328 = vadd.f32 %v1248, %v1327
    %v1329 = vpop.f32.mrb[0].mxu0
    %v1330 = vadd.f32 %v1252, %v1329
    %1331 = vmatprep.mubr.f32.mxu0 0.0
    %1332 = vmatmul.mubr.f32.gmra.mrb[0].mxu0 %v1259
    %v1333 = vpop.f32.mrb[0].mxu0
    %v1334 = vadd.f32 %v1248, %v1333
    %v1335 = vpop.f32.mrb[0].mxu0
    %v1336 = vadd.f32 %v1252, %v1335
    %1337 = vdwg.mxu0
    %v1338 = vmax.f32 %v1328, 0.0
    %v1339 = vmax.f32 %v1330, 0.0
    %v1340 = vmax.f32 %v1334, 0.0
    %v1341 = vmax.f32 %v1336, 0.0
    %vm1342 = vcmask 523264
    %v1344 = vsel %vm1342, %v1339, 0
    %v1347 = vsel %vm1342, %v1341, 0
    %1349 = vmatprep.subr.mxu0 0.0
    %1350 = vmatpush1.msra.mxu0 %v321
    %1351 = vmatprep.subr.mxu0 0.0
    %1352 = vmatpush1.msra.mxu0 %v322
    %1353 = vmatprep.subr.mxu0 0.0
    %1354 = vmatpush1.msra.mxu0 %v323
    %1355 = vmatprep.subr.mxu0 0.0
    %1356 = vmatpush1.msra.mxu0 %v324
    %1357 = vmatprep.subr.mxu0 0.0
    %1358 = vmatpush1.msra.mxu0 %v325
    %1359 = vmatprep.subr.mxu0 0.0
    %1360 = vmatpush1.msra.mxu0 %v326
    %1361 = vmatprep.subr.mxu0 0.0
    %1362 = vmatpush1.msra.mxu0 %v327
    %1363 = vmatprep.subr.mxu0 0.0
    %1364 = vmatpush1.msra.mxu0 %v328
    %1365 = vmatprep.subr.mxu0 0.0
    %1366 = vmatpush1.msra.mxu0 %v329
    %1367 = vmatprep.subr.mxu0 0.0
    %1368 = vmatpush1.msra.mxu0 %v330
    %1369 = vmatprep.subr.mxu0 0.0
    %1370 = vmatpush1.msra.mxu0 %v331
    %1371 = vmatprep.subr.mxu0 0.0
    %1372 = vmatpush1.msra.mxu0 %v332
    %1373 = vmatprep.subr.mxu0 0.0
    %1374 = vmatpush1.msra.mxu0 %v333
    %1375 = vmatprep.subr.mxu0 0.0
    %1376 = vmatpush1.msra.mxu0 %v334
    %1377 = vmatprep.subr.mxu0 0.0
    %1378 = vmatpush1.msra.mxu0 %v335
    %1379 = vmatprep.subr.mxu0 0.0
    %1380 = vmatpush1.msra.mxu0 %v336
    %1381 = vmatprep.subr.mxu0 0.0
    %1382 = vmatpush1.msra.mxu0 %v337
    %1383 = vmatprep.subr.mxu0 0.0
    %1384 = vmatpush1.msra.mxu0 %v338
    %1385 = vmatprep.subr.mxu0 0.0
    %1386 = vmatpush1.msra.mxu0 %v339
    %1387 = vmatprep.subr.mxu0 0.0
    %1388 = vmatpush1.msra.mxu0 %v340
    %1389 = vmatprep.subr.mxu0 0.0
    %1390 = vmatpush1.msra.mxu0 %v341
    %1391 = vmatprep.subr.mxu0 0.0
    %1392 = vmatpush1.msra.mxu0 %v342
    %1393 = vmatprep.subr.mxu0 0.0
    %1394 = vmatpush1.msra.mxu0 %v343
    %1395 = vmatprep.subr.mxu0 0.0
    %1396 = vmatpush1.msra.mxu0 %v344
    %1397 = vmatprep.subr.mxu0 0.0
    %1398 = vmatpush1.msra.mxu0 0.0
    %1399 = vmatprep.subr.mxu0 0.0
    %1400 = vmatpush1.msra.mxu0 0.0
    %1401 = vmatprep.subr.mxu0 0.0
    %1402 = vmatpush1.msra.mxu0 0.0
    %1403 = vmatprep.subr.mxu0 0.0
    %1404 = vmatpush1.msra.mxu0 0.0
    %1405 = vmatprep.subr.mxu0 0.0
    %1406 = vmatpush1.msra.mxu0 0.0
    %1407 = vmatprep.subr.mxu0 0.0
    %1408 = vmatpush1.msra.mxu0 0.0
    %1409 = vmatprep.subr.mxu0 0.0
    %1410 = vmatpush1.msra.mxu0 0.0
    %1411 = vmatprep.subr.mxu0 0.0
    %1412 = vmatpush1.msra.mxu0 0.0
    %1413 = vmatprep.mubr.f32.mxu0 %v1344
    %1414 = vmatmul.mubr.f32.gmra.mrb[0].mxu0 %v1338
    %v1415 = vpop.f32.mrb[0].mxu0
    %v1416 = vadd.f32 %v345, %v1415
    %v1417 = vpop.f32.mrb[0].mxu0
    %1418 = vmatprep.mubr.f32.mxu0 %v1347
    %1419 = vmatmul.mubr.f32.gmra.mrb[0].mxu0 %v1340
    %v1420 = vpop.f32.mrb[0].mxu0
    %v1421 = vadd.f32 %v345, %v1420
    %v1422 = vpop.f32.mrb[0].mxu0
    %1423 = vdwg.mxu0
    %v1424 = vadd.f32 %v1242, %v1416
    %v1425 = vadd.f32 %v1243, %v1421
    %v1426 = vsel %vm101, %v1424, 0.0
    %1427 = vadd.xlane.f32.xlu0 %v1426
    %v1428 = vpop.xlane.xlu0 %1427
    %v1429 = vsel %vm101, %v1425, 0.0
    %1430 = vadd.xlane.f32.xlu0 %v1429
    %v1431 = vpop.xlane.xlu0 %1430
    %v1432 = vmul.f32 %v1428, %v1219
    %v1433 = vmul.f32 %v1431, %v1219
    %v1434 = vsub.f32 %v1424, %v1432
    %v1435 = vsub.f32 %v1425, %v1433
    %v1436 = vmul.f32 %v1434, %v1434
    %v1437 = vmul.f32 %v1435, %v1435
    %v1438 = vsel %vm101, %v1436, 0.0
    %1439 = vadd.xlane.f32.xlu0 %v1438
    %v1440 = vpop.xlane.xlu0 %1439
    %v1441 = vsel %vm101, %v1437, 0.0
    %1442 = vadd.xlane.f32.xlu0 %v1441
    %v1443 = vpop.xlane.xlu0 %1442
    %v1444 = vmul.f32 %v1440, %v1219
    %v1445 = vmul.f32 %v1443, %v1219
    %v1446 = vadd.f32 %v1444, 1e-05
    %v1447 = vadd.f32 %v1445, 1e-05
    %v1448 = vrsqrt.pop %v1446
    %v1449 = vrsqrt.pop %v1447
    %v1450 = vmul.f32 %v1434, %v1448
    %v1451 = vmul.f32 %v1435, %v1449
    %v1452 = vmul.f32 %v1450, %v348
    %v1453 = vmul.f32 %v1451, %v348
    %v1454 = vadd.f32 %v1452, %v349
    %v1455 = vadd.f32 %v1453, %v349
    %s1456 = scalar_lea.vmem [#allocation7], 3840
    %v1457 = vld [vmem:[%s1456] sm:$0xff]
    %v1458 = vld [vmem:[%s1456 + $0x10] sm:$0xf]
    %s1459 = scalar_lea.vmem [#allocation7], 1152
    %v1460 = vld [vmem:[%s1459] sm:$0xff]
    %v1461 = vld [vmem:[%s1459 + $0x10] sm:$0xff]
    %v1462 = vld [vmem:[%s1459 + $0x20] sm:$0xff]
    %v1463 = vld [vmem:[%s1459 + $0x30] sm:$0xff]
    %v1464 = vld [vmem:[%s1459 + $0x40] sm:$0xff]
    %v1465 = vld [vmem:[%s1459 + $0x50] sm:$0xff]
    %v1466 = vld [vmem:[#allocation8 + $0x3] ss:$0 sm:$0xff]
    %s1467 = scalar_lea.vmem [#allocation7], 1920
    %v1468 = vld [vmem:[%s1467] sm:$0xff]
    %v1469 = vld [vmem:[%s1467 + $0x8] sm:$0xff]
    %v1470 = vld [vmem:[%s1467 + $0x10] sm:$0xff]
    %v1471 = vld [vmem:[%s1467 + $0x18] sm:$0xff]
    %v1472 = vld [vmem:[%s1467 + $0x20] sm:$0xff]
    %v1473 = vld [vmem:[%s1467 + $0x28] sm:$0xff]
    %v1474 = vld [vmem:[%s1467 + $0x30] sm:$0xff]
    %v1475 = vld [vmem:[%s1467 + $0x38] sm:$0xff]
    %v1476 = vld [vmem:[%s1467 + $0x40] sm:$0xff]
    %v1477 = vld [vmem:[%s1467 + $0x48] sm:$0xff]
    %v1478 = vld [vmem:[%s1467 + $0x50] sm:$0xff]
    %v1479 = vld [vmem:[%s1467 + $0x58] sm:$0xff]
    %s1480 = scalar_lea.vmem [#allocation8], 5
    %v1481 = vld [vmem:[%s1480] ss:$8 sm:$0x3]
    %s1482 = scalar_lea.vmem [#allocation7], 2688
    %v1483 = vld [vmem:[%s1482] sm:$0xff]
    %v1484 = vld [vmem:[%s1482 + $0x10] sm:$0xff]
    %v1485 = vld [vmem:[%s1482 + $0x20] sm:$0xff]
    %v1486 = vld [vmem:[%s1482 + $0x30] sm:$0xff]
    %v1487 = vld [vmem:[%s1482 + $0x40] sm:$0xff]
    %v1488 = vld [vmem:[%s1482 + $0x50] sm:$0xff]
    %v1489 = vld [vmem:[%s1482 + $0x60] sm:$0xff]
    %v1490 = vld [vmem:[%s1482 + $0x70] sm:$0xff]
    %v1491 = vld [vmem:[%s1482 + $0x80] sm:$0xff]
    %v1492 = vld [vmem:[%s1482 + $0x90] sm:$0xff]
    %v1493 = vld [vmem:[%s1482 + $0xa0] sm:$0xff]
    %v1494 = vld [vmem:[%s1482 + $0xb0] sm:$0xff]
    %v1495 = vld [vmem:[%s1482 + $0xc0] sm:$0xff]
    %v1496 = vld [vmem:[%s1482 + $0xd0] sm:$0xff]
    %v1497 = vld [vmem:[%s1482 + $0xe0] sm:$0xff]
    %v1498 = vld [vmem:[%s1482 + $0xf0] sm:$0xff]
    %v1499 = vld [vmem:[%s1482 + $0x100] sm:$0xff]
    %v1500 = vld [vmem:[%s1482 + $0x110] sm:$0xff]
    %v1501 = vld [vmem:[%s1482 + $0x120] sm:$0xff]
    %v1502 = vld [vmem:[%s1482 + $0x130] sm:$0xff]
    %v1503 = vld [vmem:[%s1482 + $0x140] sm:$0xff]
    %v1504 = vld [vmem:[%s1482 + $0x150] sm:$0xff]
    %v1505 = vld [vmem:[%s1482 + $0x160] sm:$0xff]
    %v1506 = vld [vmem:[%s1482 + $0x170] sm:$0xff]
    %v1507 = vld [vmem:[#allocation8 + $0x7] ss:$0 sm:$0xff]
    %v1508 = vld [vmem:[#allocation8 + $0x14] ss:$0 sm:$0xff]
    %v1509 = vld [vmem:[#allocation8 + $0x15] ss:$0 sm:$0xff]
    %v1510 = vld [vmem:[#allocation8 + $0x16] ss:$0 sm:$0xff]
    %v1511 = vld [vmem:[#allocation8 + $0x17] ss:$0 sm:$0xff]
    %1512 = vrot.lane.b32.xlu0 %v284, 32
    %v1513 = vpop.permute.xlu0 %1512
    %1514 = vrot.lane.b32.xlu0 %v290, 32
    %v1515 = vpop.permute.xlu0 %1514
    %1516 = vrot.lane.b32.xlu0 %v175, 80
    %v1517 = vpop.permute.xlu0 %1516
    %1518 = vrot.lane.b32.xlu0 %v181, 80
    %v1519 = vpop.permute.xlu0 %1518
    %v1520 = vsel %vm350, %v1513, 0
    %v1522 = vsel %vm350, %v1515, 0
    %v1524 = vsel %vm350, %v1517, 0
    %v1526 = vsel %vm350, %v1519, 0
    %1528 = vmatprep.subr.mxu0 0.0
    %1529 = vmatpush1.xpose.msra.mxu0 %v1524
    %1530 = vmatprep.subr.mxu0 0.0
    %1531 = vmatpush1.xpose.msra.mxu0 %v1526
    %1532 = vmatprep.subr.mxu0 0.0
    %1533 = vmatpush1.xpose.msra.mxu0 0.0
    %1534 = vmatprep.subr.mxu0 0.0
    %1535 = vmatpush1.xpose.msra.mxu0 0.0
    %1536 = vmatprep.subr.mxu0 0.0
    %1537 = vmatpush1.xpose.msra.mxu0 0.0
    %1538 = vmatprep.subr.mxu0 0.0
    %1539 = vmatpush1.xpose.msra.mxu0 0.0
    %1540 = vmatprep.subr.mxu0 0.0
    %1541 = vmatpush1.xpose.msra.mxu0 0.0
    %1542 = vmatprep.subr.mxu0 0.0
    %1543 = vmatpush1.xpose.msra.mxu0 0.0
    %1544 = vmatprep.subr.mxu0 0.0
    %1545 = vmatpush1.xpose.msra.mxu0 0.0
    %1546 = vmatprep.subr.mxu0 0.0
    %1547 = vmatpush1.xpose.msra.mxu0 0.0
    %1548 = vmatprep.subr.mxu0 0.0
    %1549 = vmatpush1.xpose.msra.mxu0 0.0
    %1550 = vmatprep.subr.mxu0 0.0
    %1551 = vmatpush1.xpose.msra.mxu0 0.0
    %1552 = vmatprep.subr.mxu0 0.0
    %1553 = vmatpush1.xpose.msra.mxu0 0.0
    %1554 = vmatprep.subr.mxu0 0.0
    %1555 = vmatpush1.xpose.msra.mxu0 0.0
    %1556 = vmatprep.subr.mxu0 0.0
    %1557 = vmatpush1.xpose.msra.mxu0 0.0
    %1558 = vmatprep.subr.mxu0 0.0
    %1559 = vmatpush1.xpose.msra.mxu0 0.0
    %1560 = vmatprep.subr.mxu0 0.0
    %1561 = vmatpush1.xpose.msra.mxu0 0.0
    %1562 = vmatprep.subr.mxu0 0.0
    %1563 = vmatpush1.xpose.msra.mxu0 0.0
    %1564 = vmatprep.subr.mxu0 0.0
    %1565 = vmatpush1.xpose.msra.mxu0 0.0
    %1566 = vmatprep.subr.mxu0 0.0
    %1567 = vmatpush1.xpose.msra.mxu0 0.0
    %1568 = vmatprep.subr.mxu0 0.0
    %1569 = vmatpush1.xpose.msra.mxu0 0.0
    %1570 = vmatprep.subr.mxu0 0.0
    %1571 = vmatpush1.xpose.msra.mxu0 0.0
    %1572 = vmatprep.subr.mxu0 0.0
    %1573 = vmatpush1.xpose.msra.mxu0 0.0
    %1574 = vmatprep.subr.mxu0 0.0
    %1575 = vmatpush1.xpose.msra.mxu0 0.0
    %1576 = vmatprep.subr.mxu0 0.0
    %1577 = vmatpush1.xpose.msra.mxu0 0.0
    %1578 = vmatprep.subr.mxu0 0.0
    %1579 = vmatpush1.xpose.msra.mxu0 0.0
    %1580 = vmatprep.subr.mxu0 0.0
    %1581 = vmatpush1.xpose.msra.mxu0 0.0
    %1582 = vmatprep.subr.mxu0 0.0
    %1583 = vmatpush1.xpose.msra.mxu0 0.0
    %1584 = vmatprep.subr.mxu0 0.0
    %1585 = vmatpush1.xpose.msra.mxu0 0.0
    %1586 = vmatprep.subr.mxu0 0.0
    %1587 = vmatpush1.xpose.msra.mxu0 0.0
    %1588 = vmatprep.subr.mxu0 0.0
    %1589 = vmatpush1.xpose.msra.mxu0 0.0
    %1590 = vmatprep.subr.mxu0 0.0
    %1591 = vmatpush1.xpose.msra.mxu0 0.0
    %1592 = vmatprep.mubr.f32.mxu0 0.0
    %1593 = vmatmul.mubr.f32.gmra.mrb[0].mxu0 %v1520
    %v1594 = vpop.f32.mrb[0].mxu0
    %v1595 = vadd.f32 0.0, %v1594
    %v1596 = vpop.f32.mrb[0].mxu0
    %1597 = vmatprep.mubr.f32.mxu0 0.0
    %1598 = vmatmul.mubr.f32.gmra.mrb[0].mxu0 %v1522
    %v1599 = vpop.f32.mrb[0].mxu0
    %v1600 = vadd.f32 0.0, %v1599
    %v1601 = vpop.f32.mrb[0].mxu0
    %1602 = vdwg.mxu0
    %v1603 = vmul.f32 %v1595, 0.25
    %v1604 = vmul.f32 %v1600, 0.25
    %v1605 = vadd.f32 %v1603, %v1457
    %v1606 = vadd.f32 %v1604, %v1458
    %v1607 = vsel %vm350, %v1605, -inf
    %1608 = vmax.xlane.f32.xlu0 %v1607
    %v1609 = vpop.xlane.xlu0 %1608
    %vm1610 = vcmask 125952
    %v1611 = vsel %vm1610, %v1606, -inf
    %1612 = vmax.xlane.f32.xlu0 %v1611
    %v1613 = vpop.xlane.xlu0 %1612
    %v1614 = vsub.f32 %v1605, %v1609
    %v1615 = vsub.f32 %v1606, %v1613
    %v1616 = vmul.f32 %v1614, 1.442695
    %v1617 = vpow.pop %v1616
    %v1618 = vmul.f32 %v1615, 1.442695
    %v1619 = vpow.pop %v1618
    %v1620 = vsel %vm350, %v1617, 0.0
    %1621 = vadd.xlane.f32.xlu0 %v1620
    %v1622 = vpop.xlane.xlu0 %1621
    %v1623 = vsel %vm1610, %v1619, 0.0
    %1624 = vadd.xlane.f32.xlu0 %v1623
    %v1625 = vpop.xlane.xlu0 %1624
    %v1626 = vrcp.pop %v1622
    %v1627 = vrcp.pop %v1625
    %v1628 = vmul.f32 %v1617, %v1626
    %v1629 = vmul.f32 %v1619, %v1627
    %1630 = vrot.lane.b32.xlu0 %v175, 32
    %v1631 = vpop.permute.xlu0 %1630
    %1632 = vrot.lane.b32.xlu0 %v181, 32
    %v1633 = vpop.permute.xlu0 %1632
    %v1637 = vsel %vm350, %v1628, 0
    %v1640 = vsel %vm350, %v1629, 0
    %1642 = vmatprep.subr.mxu0 0.0
    %1643 = vmatpush1.msra.mxu0 %v1631
    %1644 = vmatprep.subr.mxu0 0.0
    %1645 = vmatpush1.msra.mxu0 %v1633
    %1646 = vmatprep.subr.mxu0 0.0
    %1647 = vmatpush1.msra.mxu0 0.0
    %1648 = vmatprep.subr.mxu0 0.0
    %1649 = vmatpush1.msra.mxu0 0.0
    %1650 = vmatprep.subr.mxu0 0.0
    %1651 = vmatpush1.msra.mxu0 0.0
    %1652 = vmatprep.subr.mxu0 0.0
    %1653 = vmatpush1.msra.mxu0 0.0
    %1654 = vmatprep.subr.mxu0 0.0
    %1655 = vmatpush1.msra.mxu0 0.0
    %1656 = vmatprep.subr.mxu0 0.0
    %1657 = vmatpush1.msra.mxu0 0.0
    %1658 = vmatprep.subr.mxu0 0.0
    %1659 = vmatpush1.msra.mxu0 0.0
    %1660 = vmatprep.subr.mxu0 0.0
    %1661 = vmatpush1.msra.mxu0 0.0
    %1662 = vmatprep.subr.mxu0 0.0
    %1663 = vmatpush1.msra.mxu0 0.0
    %1664 = vmatprep.subr.mxu0 0.0
    %1665 = vmatpush1.msra.mxu0 0.0
    %1666 = vmatprep.subr.mxu0 0.0
    %1667 = vmatpush1.msra.mxu0 0.0
    %1668 = vmatprep.subr.mxu0 0.0
    %1669 = vmatpush1.msra.mxu0 0.0
    %1670 = vmatprep.subr.mxu0 0.0
    %1671 = vmatpush1.msra.mxu0 0.0
    %1672 = vmatprep.subr.mxu0 0.0
    %1673 = vmatpush1.msra.mxu0 0.0
    %1674 = vmatprep.subr.mxu0 0.0
    %1675 = vmatpush1.msra.mxu0 0.0
    %1676 = vmatprep.subr.mxu0 0.0
    %1677 = vmatpush1.msra.mxu0 0.0
    %1678 = vmatprep.subr.mxu0 0.0
    %1679 = vmatpush1.msra.mxu0 0.0
    %1680 = vmatprep.subr.mxu0 0.0
    %1681 = vmatpush1.msra.mxu0 0.0
    %1682 = vmatprep.subr.mxu0 0.0
    %1683 = vmatpush1.msra.mxu0 0.0
    %1684 = vmatprep.subr.mxu0 0.0
    %1685 = vmatpush1.msra.mxu0 0.0
    %1686 = vmatprep.subr.mxu0 0.0
    %1687 = vmatpush1.msra.mxu0 0.0
    %1688 = vmatprep.subr.mxu0 0.0
    %1689 = vmatpush1.msra.mxu0 0.0
    %1690 = vmatprep.subr.mxu0 0.0
    %1691 = vmatpush1.msra.mxu0 0.0
    %1692 = vmatprep.subr.mxu0 0.0
    %1693 = vmatpush1.msra.mxu0 0.0
    %1694 = vmatprep.subr.mxu0 0.0
    %1695 = vmatpush1.msra.mxu0 0.0
    %1696 = vmatprep.subr.mxu0 0.0
    %1697 = vmatpush1.msra.mxu0 0.0
    %1698 = vmatprep.subr.mxu0 0.0
    %1699 = vmatpush1.msra.mxu0 0.0
    %1700 = vmatprep.subr.mxu0 0.0
    %1701 = vmatpush1.msra.mxu0 0.0
    %1702 = vmatprep.subr.mxu0 0.0
    %1703 = vmatpush1.msra.mxu0 0.0
    %1704 = vmatprep.subr.mxu0 0.0
    %1705 = vmatpush1.msra.mxu0 0.0
    %1706 = vmatprep.mubr.f32.mxu0 0.0
    %1707 = vmatmul.mubr.f32.gmra.mrb[0].mxu0 %v1637
    %v1708 = vpop.f32.mrb[0].mxu0
    %v1709 = vadd.f32 0.0, %v1708
    %v1710 = vpop.f32.mrb[0].mxu0
    %1711 = vmatprep.mubr.f32.mxu0 0.0
    %1712 = vmatmul.mubr.f32.gmra.mrb[0].mxu0 %v1640
    %v1713 = vpop.f32.mrb[0].mxu0
    %v1714 = vadd.f32 0.0, %v1713
    %v1715 = vpop.f32.mrb[0].mxu0
    %1716 = vdwg.mxu0
    %1717 = vrot.lane.b32.xlu0 %v284, 16
    %v1718 = vpop.permute.xlu0 %1717
    %1719 = vrot.lane.b32.xlu0 %v290, 16
    %v1720 = vpop.permute.xlu0 %1719
    %1721 = vrot.lane.b32.xlu0 %v175, 64
    %v1722 = vpop.permute.xlu0 %1721
    %1723 = vrot.lane.b32.xlu0 %v181, 64
    %v1724 = vpop.permute.xlu0 %1723
    %v1725 = vsel %vm350, %v1718, 0
    %v1727 = vsel %vm350, %v1720, 0
    %v1729 = vsel %vm350, %v1722, 0
    %v1731 = vsel %vm350, %v1724, 0
    %1733 = vmatprep.subr.mxu0 0.0
    %1734 = vmatpush1.xpose.msra.mxu0 %v1729
    %1735 = vmatprep.subr.mxu0 0.0
    %1736 = vmatpush1.xpose.msra.mxu0 %v1731
    %1737 = vmatprep.subr.mxu0 0.0
    %1738 = vmatpush1.xpose.msra.mxu0 0.0
    %1739 = vmatprep.subr.mxu0 0.0
    %1740 = vmatpush1.xpose.msra.mxu0 0.0
    %1741 = vmatprep.subr.mxu0 0.0
    %1742 = vmatpush1.xpose.msra.mxu0 0.0
    %1743 = vmatprep.subr.mxu0 0.0
    %1744 = vmatpush1.xpose.msra.mxu0 0.0
    %1745 = vmatprep.subr.mxu0 0.0
    %1746 = vmatpush1.xpose.msra.mxu0 0.0
    %1747 = vmatprep.subr.mxu0 0.0
    %1748 = vmatpush1.xpose.msra.mxu0 0.0
    %1749 = vmatprep.subr.mxu0 0.0
    %1750 = vmatpush1.xpose.msra.mxu0 0.0
    %1751 = vmatprep.subr.mxu0 0.0
    %1752 = vmatpush1.xpose.msra.mxu0 0.0
    %1753 = vmatprep.subr.mxu0 0.0
    %1754 = vmatpush1.xpose.msra.mxu0 0.0
    %1755 = vmatprep.subr.mxu0 0.0
    %1756 = vmatpush1.xpose.msra.mxu0 0.0
    %1757 = vmatprep.subr.mxu0 0.0
    %1758 = vmatpush1.xpose.msra.mxu0 0.0
    %1759 = vmatprep.subr.mxu0 0.0
    %1760 = vmatpush1.xpose.msra.mxu0 0.0
    %1761 = vmatprep.subr.mxu0 0.0
    %1762 = vmatpush1.xpose.msra.mxu0 0.0
    %1763 = vmatprep.subr.mxu0 0.0
    %1764 = vmatpush1.xpose.msra.mxu0 0.0
    %1765 = vmatprep.subr.mxu0 0.0
    %1766 = vmatpush1.xpose.msra.mxu0 0.0
    %1767 = vmatprep.subr.mxu0 0.0
    %1768 = vmatpush1.xpose.msra.mxu0 0.0
    %1769 = vmatprep.subr.mxu0 0.0
    %1770 = vmatpush1.xpose.msra.mxu0 0.0
    %1771 = vmatprep.subr.mxu0 0.0
    %1772 = vmatpush1.xpose.msra.mxu0 0.0
    %1773 = vmatprep.subr.mxu0 0.0
    %1774 = vmatpush1.xpose.msra.mxu0 0.0
    %1775 = vmatprep.subr.mxu0 0.0
    %1776 = vmatpush1.xpose.msra.mxu0 0.0
    %1777 = vmatprep.subr.mxu0 0.0
    %1778 = vmatpush1.xpose.msra.mxu0 0.0
    %1779 = vmatprep.subr.mxu0 0.0
    %1780 = vmatpush1.xpose.msra.mxu0 0.0
    %1781 = vmatprep.subr.mxu0 0.0
    %1782 = vmatpush1.xpose.msra.mxu0 0.0
    %1783 = vmatprep.subr.mxu0 0.0
    %1784 = vmatpush1.xpose.msra.mxu0 0.0
    %1785 = vmatprep.subr.mxu0 0.0
    %1786 = vmatpush1.xpose.msra.mxu0 0.0
    %1787 = vmatprep.subr.mxu0 0.0
    %1788 = vmatpush1.xpose.msra.mxu0 0.0
    %1789 = vmatprep.subr.mxu0 0.0
    %1790 = vmatpush1.xpose.msra.mxu0 0.0
    %1791 = vmatprep.subr.mxu0 0.0
    %1792 = vmatpush1.xpose.msra.mxu0 0.0
    %1793 = vmatprep.subr.mxu0 0.0
    %1794 = vmatpush1.xpose.msra.mxu0 0.0
    %1795 = vmatprep.subr.mxu0 0.0
    %1796 = vmatpush1.xpose.msra.mxu0 0.0
    %1797 = vmatprep.mubr.f32.mxu0 0.0
    %1798 = vmatmul.mubr.f32.gmra.mrb[0].mxu0 %v1725
    %v1799 = vpop.f32.mrb[0].mxu0
    %v1800 = vadd.f32 0.0, %v1799
    %v1801 = vpop.f32.mrb[0].mxu0
    %1802 = vmatprep.mubr.f32.mxu0 0.0
    %1803 = vmatmul.mubr.f32.gmra.mrb[0].mxu0 %v1727
    %v1804 = vpop.f32.mrb[0].mxu0
    %v1805 = vadd.f32 0.0, %v1804
    %v1806 = vpop.f32.mrb[0].mxu0
    %1807 = vdwg.mxu0
    %v1808 = vmul.f32 %v1800, 0.25
    %v1809 = vmul.f32 %v1805, 0.25
    %v1810 = vadd.f32 %v1808, %v1457
    %v1811 = vadd.f32 %v1809, %v1458
    %v1812 = vsel %vm350, %v1810, -inf
    %1813 = vmax.xlane.f32.xlu0 %v1812
    %v1814 = vpop.xlane.xlu0 %1813
    %v1815 = vsel %vm1610, %v1811, -inf
    %1816 = vmax.xlane.f32.xlu0 %v1815
    %v1817 = vpop.xlane.xlu0 %1816
    %v1818 = vsub.f32 %v1810, %v1814
    %v1819 = vsub.f32 %v1811, %v1817
    %v1820 = vmul.f32 %v1818, 1.442695
    %v1821 = vpow.pop %v1820
    %v1822 = vmul.f32 %v1819, 1.442695
    %v1823 = vpow.pop %v1822
    %v1824 = vsel %vm350, %v1821, 0.0
    %1825 = vadd.xlane.f32.xlu0 %v1824
    %v1826 = vpop.xlane.xlu0 %1825
    %v1827 = vsel %vm1610, %v1823, 0.0
    %1828 = vadd.xlane.f32.xlu0 %v1827
    %v1829 = vpop.xlane.xlu0 %1828
    %v1830 = vrcp.pop %v1826
    %v1831 = vrcp.pop %v1829
    %v1832 = vmul.f32 %v1821, %v1830
    %v1833 = vmul.f32 %v1823, %v1831
    %1834 = vrot.lane.b32.xlu0 %v175, 16
    %v1835 = vpop.permute.xlu0 %1834
    %1836 = vrot.lane.b32.xlu0 %v181, 16
    %v1837 = vpop.permute.xlu0 %1836
    %v1841 = vsel %vm350, %v1832, 0
    %v1844 = vsel %vm350, %v1833, 0
    %1846 = vmatprep.subr.mxu0 0.0
    %1847 = vmatpush1.msra.mxu0 %v1835
    %1848 = vmatprep.subr.mxu0 0.0
    %1849 = vmatpush1.msra.mxu0 %v1837
    %1850 = vmatprep.subr.mxu0 0.0
    %1851 = vmatpush1.msra.mxu0 0.0
    %1852 = vmatprep.subr.mxu0 0.0
    %1853 = vmatpush1.msra.mxu0 0.0
    %1854 = vmatprep.subr.mxu0 0.0
    %1855 = vmatpush1.msra.mxu0 0.0
    %1856 = vmatprep.subr.mxu0 0.0
    %1857 = vmatpush1.msra.mxu0 0.0
    %1858 = vmatprep.subr.mxu0 0.0
    %1859 = vmatpush1.msra.mxu0 0.0
    %1860 = vmatprep.subr.mxu0 0.0
    %1861 = vmatpush1.msra.mxu0 0.0
    %1862 = vmatprep.subr.mxu0 0.0
    %1863 = vmatpush1.msra.mxu0 0.0
    %1864 = vmatprep.subr.mxu0 0.0
    %1865 = vmatpush1.msra.mxu0 0.0
    %1866 = vmatprep.subr.mxu0 0.0
    %1867 = vmatpush1.msra.mxu0 0.0
    %1868 = vmatprep.subr.mxu0 0.0
    %1869 = vmatpush1.msra.mxu0 0.0
    %1870 = vmatprep.subr.mxu0 0.0
    %1871 = vmatpush1.msra.mxu0 0.0
    %1872 = vmatprep.subr.mxu0 0.0
    %1873 = vmatpush1.msra.mxu0 0.0
    %1874 = vmatprep.subr.mxu0 0.0
    %1875 = vmatpush1.msra.mxu0 0.0
    %1876 = vmatprep.subr.mxu0 0.0
    %1877 = vmatpush1.msra.mxu0 0.0
    %1878 = vmatprep.subr.mxu0 0.0
    %1879 = vmatpush1.msra.mxu0 0.0
    %1880 = vmatprep.subr.mxu0 0.0
    %1881 = vmatpush1.msra.mxu0 0.0
    %1882 = vmatprep.subr.mxu0 0.0
    %1883 = vmatpush1.msra.mxu0 0.0
    %1884 = vmatprep.subr.mxu0 0.0
    %1885 = vmatpush1.msra.mxu0 0.0
    %1886 = vmatprep.subr.mxu0 0.0
    %1887 = vmatpush1.msra.mxu0 0.0
    %1888 = vmatprep.subr.mxu0 0.0
    %1889 = vmatpush1.msra.mxu0 0.0
    %1890 = vmatprep.subr.mxu0 0.0
    %1891 = vmatpush1.msra.mxu0 0.0
    %1892 = vmatprep.subr.mxu0 0.0
    %1893 = vmatpush1.msra.mxu0 0.0
    %1894 = vmatprep.subr.mxu0 0.0
    %1895 = vmatpush1.msra.mxu0 0.0
    %1896 = vmatprep.subr.mxu0 0.0
    %1897 = vmatpush1.msra.mxu0 0.0
    %1898 = vmatprep.subr.mxu0 0.0
    %1899 = vmatpush1.msra.mxu0 0.0
    %1900 = vmatprep.subr.mxu0 0.0
    %1901 = vmatpush1.msra.mxu0 0.0
    %1902 = vmatprep.subr.mxu0 0.0
    %1903 = vmatpush1.msra.mxu0 0.0
    %1904 = vmatprep.subr.mxu0 0.0
    %1905 = vmatpush1.msra.mxu0 0.0
    %1906 = vmatprep.subr.mxu0 0.0
    %1907 = vmatpush1.msra.mxu0 0.0
    %1908 = vmatprep.subr.mxu0 0.0
    %1909 = vmatpush1.msra.mxu0 0.0
    %1910 = vmatprep.mubr.f32.mxu0 0.0
    %1911 = vmatmul.mubr.f32.gmra.mrb[0].mxu0 %v1841
    %v1912 = vpop.f32.mrb[0].mxu0
    %v1913 = vadd.f32 0.0, %v1912
    %v1914 = vpop.f32.mrb[0].mxu0
    %1915 = vmatprep.mubr.f32.mxu0 0.0
    %1916 = vmatmul.mubr.f32.gmra.mrb[0].mxu0 %v1844
    %v1917 = vpop.f32.mrb[0].mxu0
    %v1918 = vadd.f32 0.0, %v1917
    %v1919 = vpop.f32.mrb[0].mxu0
    %1920 = vdwg.mxu0
    %v1922 = vsel %vm350, %v1913, 0
    %v1925 = vsel %vm350, %v1918, 0
    %1927 = vmatprep.subr.mxu0 0.0
    %1928 = vmatpush1.msra.mxu0 %v1462
    %1929 = vmatprep.subr.mxu0 0.0
    %1930 = vmatpush1.msra.mxu0 %v1463
    %1931 = vmatprep.subr.mxu0 0.0
    %1932 = vmatpush1.msra.mxu0 0.0
    %1933 = vmatprep.subr.mxu0 0.0
    %1934 = vmatpush1.msra.mxu0 0.0
    %1935 = vmatprep.subr.mxu0 0.0
    %1936 = vmatpush1.msra.mxu0 0.0
    %1937 = vmatprep.subr.mxu0 0.0
    %1938 = vmatpush1.msra.mxu0 0.0
    %1939 = vmatprep.subr.mxu0 0.0
    %1940 = vmatpush1.msra.mxu0 0.0
    %1941 = vmatprep.subr.mxu0 0.0
    %1942 = vmatpush1.msra.mxu0 0.0
    %1943 = vmatprep.subr.mxu0 0.0
    %1944 = vmatpush1.msra.mxu0 0.0
    %1945 = vmatprep.subr.mxu0 0.0
    %1946 = vmatpush1.msra.mxu0 0.0
    %1947 = vmatprep.subr.mxu0 0.0
    %1948 = vmatpush1.msra.mxu0 0.0
    %1949 = vmatprep.subr.mxu0 0.0
    %1950 = vmatpush1.msra.mxu0 0.0
    %1951 = vmatprep.subr.mxu0 0.0
    %1952 = vmatpush1.msra.mxu0 0.0
    %1953 = vmatprep.subr.mxu0 0.0
    %1954 = vmatpush1.msra.mxu0 0.0
    %1955 = vmatprep.subr.mxu0 0.0
    %1956 = vmatpush1.msra.mxu0 0.0
    %1957 = vmatprep.subr.mxu0 0.0
    %1958 = vmatpush1.msra.mxu0 0.0
    %1959 = vmatprep.subr.mxu0 0.0
    %1960 = vmatpush1.msra.mxu0 0.0
    %1961 = vmatprep.subr.mxu0 0.0
    %1962 = vmatpush1.msra.mxu0 0.0
    %1963 = vmatprep.subr.mxu0 0.0
    %1964 = vmatpush1.msra.mxu0 0.0
    %1965 = vmatprep.subr.mxu0 0.0
    %1966 = vmatpush1.msra.mxu0 0.0
    %1967 = vmatprep.subr.mxu0 0.0
    %1968 = vmatpush1.msra.mxu0 0.0
    %1969 = vmatprep.subr.mxu0 0.0
    %1970 = vmatpush1.msra.mxu0 0.0
    %1971 = vmatprep.subr.mxu0 0.0
    %1972 = vmatpush1.msra.mxu0 0.0
    %1973 = vmatprep.subr.mxu0 0.0
    %1974 = vmatpush1.msra.mxu0 0.0
    %1975 = vmatprep.subr.mxu0 0.0
    %1976 = vmatpush1.msra.mxu0 0.0
    %1977 = vmatprep.subr.mxu0 0.0
    %1978 = vmatpush1.msra.mxu0 0.0
    %1979 = vmatprep.subr.mxu0 0.0
    %1980 = vmatpush1.msra.mxu0 0.0
    %1981 = vmatprep.subr.mxu0 0.0
    %1982 = vmatpush1.msra.mxu0 0.0
    %1983 = vmatprep.subr.mxu0 0.0
    %1984 = vmatpush1.msra.mxu0 0.0
    %1985 = vmatprep.subr.mxu0 0.0
    %1986 = vmatpush1.msra.mxu0 0.0
    %1987 = vmatprep.subr.mxu0 0.0
    %1988 = vmatpush1.msra.mxu0 0.0
    %1989 = vmatprep.subr.mxu0 0.0
    %1990 = vmatpush1.msra.mxu0 0.0
    %1991 = vmatprep.mubr.f32.mxu0 0.0
    %1992 = vmatmul.mubr.f32.gmra.mrb[0].mxu0 %v1922
    %v1993 = vpop.f32.mrb[0].mxu0
    %v1994 = vadd.f32 0.0, %v1993
    %v1995 = vpop.f32.mrb[0].mxu0
    %1996 = vmatprep.mubr.f32.mxu0 0.0
    %1997 = vmatmul.mubr.f32.gmra.mrb[0].mxu0 %v1925
    %v1998 = vpop.f32.mrb[0].mxu0
    %v1999 = vadd.f32 0.0, %v1998
    %v2000 = vpop.f32.mrb[0].mxu0
    %2001 = vdwg.mxu0
    %v2003 = vsel %vm350, %v1709, 0
    %v2006 = vsel %vm350, %v1714, 0
    %2008 = vmatprep.subr.mxu0 0.0
    %2009 = vmatpush1.msra.mxu0 %v1460
    %2010 = vmatprep.subr.mxu0 0.0
    %2011 = vmatpush1.msra.mxu0 %v1461
    %2012 = vmatprep.subr.mxu0 0.0
    %2013 = vmatpush1.msra.mxu0 0.0
    %2014 = vmatprep.subr.mxu0 0.0
    %2015 = vmatpush1.msra.mxu0 0.0
    %2016 = vmatprep.subr.mxu0 0.0
    %2017 = vmatpush1.msra.mxu0 0.0
    %2018 = vmatprep.subr.mxu0 0.0
    %2019 = vmatpush1.msra.mxu0 0.0
    %2020 = vmatprep.subr.mxu0 0.0
    %2021 = vmatpush1.msra.mxu0 0.0
    %2022 = vmatprep.subr.mxu0 0.0
    %2023 = vmatpush1.msra.mxu0 0.0
    %2024 = vmatprep.subr.mxu0 0.0
    %2025 = vmatpush1.msra.mxu0 0.0
    %2026 = vmatprep.subr.mxu0 0.0
    %2027 = vmatpush1.msra.mxu0 0.0
    %2028 = vmatprep.subr.mxu0 0.0
    %2029 = vmatpush1.msra.mxu0 0.0
    %2030 = vmatprep.subr.mxu0 0.0
    %2031 = vmatpush1.msra.mxu0 0.0
    %2032 = vmatprep.subr.mxu0 0.0
    %2033 = vmatpush1.msra.mxu0 0.0
    %2034 = vmatprep.subr.mxu0 0.0
    %2035 = vmatpush1.msra.mxu0 0.0
    %2036 = vmatprep.subr.mxu0 0.0
    %2037 = vmatpush1.msra.mxu0 0.0
    %2038 = vmatprep.subr.mxu0 0.0
    %2039 = vmatpush1.msra.mxu0 0.0
    %2040 = vmatprep.subr.mxu0 0.0
    %2041 = vmatpush1.msra.mxu0 0.0
    %2042 = vmatprep.subr.mxu0 0.0
    %2043 = vmatpush1.msra.mxu0 0.0
    %2044 = vmatprep.subr.mxu0 0.0
    %2045 = vmatpush1.msra.mxu0 0.0
    %2046 = vmatprep.subr.mxu0 0.0
    %2047 = vmatpush1.msra.mxu0 0.0
    %2048 = vmatprep.subr.mxu0 0.0
    %2049 = vmatpush1.msra.mxu0 0.0
    %2050 = vmatprep.subr.mxu0 0.0
    %2051 = vmatpush1.msra.mxu0 0.0
    %2052 = vmatprep.subr.mxu0 0.0
    %2053 = vmatpush1.msra.mxu0 0.0
    %2054 = vmatprep.subr.mxu0 0.0
    %2055 = vmatpush1.msra.mxu0 0.0
    %2056 = vmatprep.subr.mxu0 0.0
    %2057 = vmatpush1.msra.mxu0 0.0
    %2058 = vmatprep.subr.mxu0 0.0
    %2059 = vmatpush1.msra.mxu0 0.0
    %2060 = vmatprep.subr.mxu0 0.0
    %2061 = vmatpush1.msra.mxu0 0.0
    %2062 = vmatprep.subr.mxu0 0.0
    %2063 = vmatpush1.msra.mxu0 0.0
    %2064 = vmatprep.subr.mxu0 0.0
    %2065 = vmatpush1.msra.mxu0 0.0
    %2066 = vmatprep.subr.mxu0 0.0
    %2067 = vmatpush1.msra.mxu0 0.0
    %2068 = vmatprep.subr.mxu0 0.0
    %2069 = vmatpush1.msra.mxu0 0.0
    %2070 = vmatprep.subr.mxu0 0.0
    %2071 = vmatpush1.msra.mxu0 0.0
    %2072 = vmatprep.mubr.f32.mxu0 0.0
    %2073 = vmatmul.mubr.f32.gmra.mrb[0].mxu0 %v2003
    %v2074 = vpop.f32.mrb[0].mxu0
    %v2075 = vadd.f32 %v1994, %v2074
    %v2076 = vpop.f32.mrb[0].mxu0
    %2077 = vmatprep.mubr.f32.mxu0 0.0
    %2078 = vmatmul.mubr.f32.gmra.mrb[0].mxu0 %v2006
    %v2079 = vpop.f32.mrb[0].mxu0
    %v2080 = vadd.f32 %v1999, %v2079
    %v2081 = vpop.f32.mrb[0].mxu0
    %2082 = vdwg.mxu0
    %2083 = vrot.lane.b32.xlu0 %v175, 48
    %v2084 = vpop.permute.xlu0 %2083
    %2085 = vrot.lane.b32.xlu0 %v181, 48
    %v2086 = vpop.permute.xlu0 %2085
    %v2088 = vsel %vm350, %v286, 0
    %v2091 = vsel %vm350, %v292, 0
    %v2093 = vsel %vm350, %v2084, 0
    %v2095 = vsel %vm350, %v2086, 0
    %2097 = vmatprep.subr.mxu0 0.0
    %2098 = vmatpush1.xpose.msra.mxu0 %v2093
    %2099 = vmatprep.subr.mxu0 0.0
    %2100 = vmatpush1.xpose.msra.mxu0 %v2095
    %2101 = vmatprep.subr.mxu0 0.0
    %2102 = vmatpush1.xpose.msra.mxu0 0.0
    %2103 = vmatprep.subr.mxu0 0.0
    %2104 = vmatpush1.xpose.msra.mxu0 0.0
    %2105 = vmatprep.subr.mxu0 0.0
    %2106 = vmatpush1.xpose.msra.mxu0 0.0
    %2107 = vmatprep.subr.mxu0 0.0
    %2108 = vmatpush1.xpose.msra.mxu0 0.0
    %2109 = vmatprep.subr.mxu0 0.0
    %2110 = vmatpush1.xpose.msra.mxu0 0.0
    %2111 = vmatprep.subr.mxu0 0.0
    %2112 = vmatpush1.xpose.msra.mxu0 0.0
    %2113 = vmatprep.subr.mxu0 0.0
    %2114 = vmatpush1.xpose.msra.mxu0 0.0
    %2115 = vmatprep.subr.mxu0 0.0
    %2116 = vmatpush1.xpose.msra.mxu0 0.0
    %2117 = vmatprep.subr.mxu0 0.0
    %2118 = vmatpush1.xpose.msra.mxu0 0.0
    %2119 = vmatprep.subr.mxu0 0.0
    %2120 = vmatpush1.xpose.msra.mxu0 0.0
    %2121 = vmatprep.subr.mxu0 0.0
    %2122 = vmatpush1.xpose.msra.mxu0 0.0
    %2123 = vmatprep.subr.mxu0 0.0
    %2124 = vmatpush1.xpose.msra.mxu0 0.0
    %2125 = vmatprep.subr.mxu0 0.0
    %2126 = vmatpush1.xpose.msra.mxu0 0.0
    %2127 = vmatprep.subr.mxu0 0.0
    %2128 = vmatpush1.xpose.msra.mxu0 0.0
    %2129 = vmatprep.subr.mxu0 0.0
    %2130 = vmatpush1.xpose.msra.mxu0 0.0
    %2131 = vmatprep.subr.mxu0 0.0
    %2132 = vmatpush1.xpose.msra.mxu0 0.0
    %2133 = vmatprep.subr.mxu0 0.0
    %2134 = vmatpush1.xpose.msra.mxu0 0.0
    %2135 = vmatprep.subr.mxu0 0.0
    %2136 = vmatpush1.xpose.msra.mxu0 0.0
    %2137 = vmatprep.subr.mxu0 0.0
    %2138 = vmatpush1.xpose.msra.mxu0 0.0
    %2139 = vmatprep.subr.mxu0 0.0
    %2140 = vmatpush1.xpose.msra.mxu0 0.0
    %2141 = vmatprep.subr.mxu0 0.0
    %2142 = vmatpush1.xpose.msra.mxu0 0.0
    %2143 = vmatprep.subr.mxu0 0.0
    %2144 = vmatpush1.xpose.msra.mxu0 0.0
    %2145 = vmatprep.subr.mxu0 0.0
    %2146 = vmatpush1.xpose.msra.mxu0 0.0
    %2147 = vmatprep.subr.mxu0 0.0
    %2148 = vmatpush1.xpose.msra.mxu0 0.0
    %2149 = vmatprep.subr.mxu0 0.0
    %2150 = vmatpush1.xpose.msra.mxu0 0.0
    %2151 = vmatprep.subr.mxu0 0.0
    %2152 = vmatpush1.xpose.msra.mxu0 0.0
    %2153 = vmatprep.subr.mxu0 0.0
    %2154 = vmatpush1.xpose.msra.mxu0 0.0
    %2155 = vmatprep.subr.mxu0 0.0
    %2156 = vmatpush1.xpose.msra.mxu0 0.0
    %2157 = vmatprep.subr.mxu0 0.0
    %2158 = vmatpush1.xpose.msra.mxu0 0.0
    %2159 = vmatprep.subr.mxu0 0.0
    %2160 = vmatpush1.xpose.msra.mxu0 0.0
    %2161 = vmatprep.mubr.f32.mxu0 0.0
    %2162 = vmatmul.mubr.f32.gmra.mrb[0].mxu0 %v2088
    %v2163 = vpop.f32.mrb[0].mxu0
    %v2164 = vadd.f32 0.0, %v2163
    %v2165 = vpop.f32.mrb[0].mxu0
    %2166 = vmatprep.mubr.f32.mxu0 0.0
    %2167 = vmatmul.mubr.f32.gmra.mrb[0].mxu0 %v2091
    %v2168 = vpop.f32.mrb[0].mxu0
    %v2169 = vadd.f32 0.0, %v2168
    %v2170 = vpop.f32.mrb[0].mxu0
    %2171 = vdwg.mxu0
    %v2172 = vmul.f32 %v2164, 0.25
    %v2173 = vmul.f32 %v2169, 0.25
    %v2174 = vadd.f32 %v2172, %v1457
    %v2175 = vadd.f32 %v2173, %v1458
    %v2176 = vsel %vm350, %v2174, -inf
    %2177 = vmax.xlane.f32.xlu0 %v2176
    %v2178 = vpop.xlane.xlu0 %2177
    %v2179 = vsel %vm1610, %v2175, -inf
    %2180 = vmax.xlane.f32.xlu0 %v2179
    %v2181 = vpop.xlane.xlu0 %2180
    %v2182 = vsub.f32 %v2174, %v2178
    %v2183 = vsub.f32 %v2175, %v2181
    %v2184 = vmul.f32 %v2182, 1.442695
    %v2185 = vpow.pop %v2184
    %v2186 = vmul.f32 %v2183, 1.442695
    %v2187 = vpow.pop %v2186
    %v2188 = vsel %vm350, %v2185, 0.0
    %2189 = vadd.xlane.f32.xlu0 %v2188
    %v2190 = vpop.xlane.xlu0 %2189
    %v2191 = vsel %vm1610, %v2187, 0.0
    %2192 = vadd.xlane.f32.xlu0 %v2191
    %v2193 = vpop.xlane.xlu0 %2192
    %v2194 = vrcp.pop %v2190
    %v2195 = vrcp.pop %v2193
    %v2196 = vmul.f32 %v2185, %v2194
    %v2197 = vmul.f32 %v2187, %v2195
    %v2199 = vsel %vm350, %v2196, 0
    %v2202 = vsel %vm350, %v2197, 0
    %2204 = vmatprep.subr.mxu0 0.0
    %2205 = vmatpush1.msra.mxu0 %v177
    %2206 = vmatprep.subr.mxu0 0.0
    %2207 = vmatpush1.msra.mxu0 %v183
    %2208 = vmatprep.subr.mxu0 0.0
    %2209 = vmatpush1.msra.mxu0 0.0
    %2210 = vmatprep.subr.mxu0 0.0
    %2211 = vmatpush1.msra.mxu0 0.0
    %2212 = vmatprep.subr.mxu0 0.0
    %2213 = vmatpush1.msra.mxu0 0.0
    %2214 = vmatprep.subr.mxu0 0.0
    %2215 = vmatpush1.msra.mxu0 0.0
    %2216 = vmatprep.subr.mxu0 0.0
    %2217 = vmatpush1.msra.mxu0 0.0
    %2218 = vmatprep.subr.mxu0 0.0
    %2219 = vmatpush1.msra.mxu0 0.0
    %2220 = vmatprep.subr.mxu0 0.0
    %2221 = vmatpush1.msra.mxu0 0.0
    %2222 = vmatprep.subr.mxu0 0.0
    %2223 = vmatpush1.msra.mxu0 0.0
    %2224 = vmatprep.subr.mxu0 0.0
    %2225 = vmatpush1.msra.mxu0 0.0
    %2226 = vmatprep.subr.mxu0 0.0
    %2227 = vmatpush1.msra.mxu0 0.0
    %2228 = vmatprep.subr.mxu0 0.0
    %2229 = vmatpush1.msra.mxu0 0.0
    %2230 = vmatprep.subr.mxu0 0.0
    %2231 = vmatpush1.msra.mxu0 0.0
    %2232 = vmatprep.subr.mxu0 0.0
    %2233 = vmatpush1.msra.mxu0 0.0
    %2234 = vmatprep.subr.mxu0 0.0
    %2235 = vmatpush1.msra.mxu0 0.0
    %2236 = vmatprep.subr.mxu0 0.0
    %2237 = vmatpush1.msra.mxu0 0.0
    %2238 = vmatprep.subr.mxu0 0.0
    %2239 = vmatpush1.msra.mxu0 0.0
    %2240 = vmatprep.subr.mxu0 0.0
    %2241 = vmatpush1.msra.mxu0 0.0
    %2242 = vmatprep.subr.mxu0 0.0
    %2243 = vmatpush1.msra.mxu0 0.0
    %2244 = vmatprep.subr.mxu0 0.0
    %2245 = vmatpush1.msra.mxu0 0.0
    %2246 = vmatprep.subr.mxu0 0.0
    %2247 = vmatpush1.msra.mxu0 0.0
    %2248 = vmatprep.subr.mxu0 0.0
    %2249 = vmatpush1.msra.mxu0 0.0
    %2250 = vmatprep.subr.mxu0 0.0
    %2251 = vmatpush1.msra.mxu0 0.0
    %2252 = vmatprep.subr.mxu0 0.0
    %2253 = vmatpush1.msra.mxu0 0.0
    %2254 = vmatprep.subr.mxu0 0.0
    %2255 = vmatpush1.msra.mxu0 0.0
    %2256 = vmatprep.subr.mxu0 0.0
    %2257 = vmatpush1.msra.mxu0 0.0
    %2258 = vmatprep.subr.mxu0 0.0
    %2259 = vmatpush1.msra.mxu0 0.0
    %2260 = vmatprep.subr.mxu0 0.0
    %2261 = vmatpush1.msra.mxu0 0.0
    %2262 = vmatprep.subr.mxu0 0.0
    %2263 = vmatpush1.msra.mxu0 0.0
    %2264 = vmatprep.subr.mxu0 0.0
    %2265 = vmatpush1.msra.mxu0 0.0
    %2266 = vmatprep.subr.mxu0 0.0
    %2267 = vmatpush1.msra.mxu0 0.0
    %2268 = vmatprep.mubr.f32.mxu0 0.0
    %2269 = vmatmul.mubr.f32.gmra.mrb[0].mxu0 %v2199
    %v2270 = vpop.f32.mrb[0].mxu0
    %v2271 = vadd.f32 0.0, %v2270
    %v2272 = vpop.f32.mrb[0].mxu0
    %2273 = vmatprep.mubr.f32.mxu0 0.0
    %2274 = vmatmul.mubr.f32.gmra.mrb[0].mxu0 %v2202
    %v2275 = vpop.f32.mrb[0].mxu0
    %v2276 = vadd.f32 0.0, %v2275
    %v2277 = vpop.f32.mrb[0].mxu0
    %2278 = vdwg.mxu0
    %v2280 = vsel %vm350, %v2271, 0
    %v2283 = vsel %vm350, %v2276, 0
    %2285 = vmatprep.subr.mxu0 0.0
    %2286 = vmatpush1.msra.mxu0 %v1464
    %2287 = vmatprep.subr.mxu0 0.0
    %2288 = vmatpush1.msra.mxu0 %v1465
    %2289 = vmatprep.subr.mxu0 0.0
    %2290 = vmatpush1.msra.mxu0 0.0
    %2291 = vmatprep.subr.mxu0 0.0
    %2292 = vmatpush1.msra.mxu0 0.0
    %2293 = vmatprep.subr.mxu0 0.0
    %2294 = vmatpush1.msra.mxu0 0.0
    %2295 = vmatprep.subr.mxu0 0.0
    %2296 = vmatpush1.msra.mxu0 0.0
    %2297 = vmatprep.subr.mxu0 0.0
    %2298 = vmatpush1.msra.mxu0 0.0
    %2299 = vmatprep.subr.mxu0 0.0
    %2300 = vmatpush1.msra.mxu0 0.0
    %2301 = vmatprep.subr.mxu0 0.0
    %2302 = vmatpush1.msra.mxu0 0.0
    %2303 = vmatprep.subr.mxu0 0.0
    %2304 = vmatpush1.msra.mxu0 0.0
    %2305 = vmatprep.subr.mxu0 0.0
    %2306 = vmatpush1.msra.mxu0 0.0
    %2307 = vmatprep.subr.mxu0 0.0
    %2308 = vmatpush1.msra.mxu0 0.0
    %2309 = vmatprep.subr.mxu0 0.0
    %2310 = vmatpush1.msra.mxu0 0.0
    %2311 = vmatprep.subr.mxu0 0.0
    %2312 = vmatpush1.msra.mxu0 0.0
    %2313 = vmatprep.subr.mxu0 0.0
    %2314 = vmatpush1.msra.mxu0 0.0
    %2315 = vmatprep.subr.mxu0 0.0
    %2316 = vmatpush1.msra.mxu0 0.0
    %2317 = vmatprep.subr.mxu0 0.0
    %2318 = vmatpush1.msra.mxu0 0.0
    %2319 = vmatprep.subr.mxu0 0.0
    %2320 = vmatpush1.msra.mxu0 0.0
    %2321 = vmatprep.subr.mxu0 0.0
    %2322 = vmatpush1.msra.mxu0 0.0
    %2323 = vmatprep.subr.mxu0 0.0
    %2324 = vmatpush1.msra.mxu0 0.0
    %2325 = vmatprep.subr.mxu0 0.0
    %2326 = vmatpush1.msra.mxu0 0.0
    %2327 = vmatprep.subr.mxu0 0.0
    %2328 = vmatpush1.msra.mxu0 0.0
    %2329 = vmatprep.subr.mxu0 0.0
    %2330 = vmatpush1.msra.mxu0 0.0
    %2331 = vmatprep.subr.mxu0 0.0
    %2332 = vmatpush1.msra.mxu0 0.0
    %2333 = vmatprep.subr.mxu0 0.0
    %2334 = vmatpush1.msra.mxu0 0.0
    %2335 = vmatprep.subr.mxu0 0.0
    %2336 = vmatpush1.msra.mxu0 0.0
    %2337 = vmatprep.subr.mxu0 0.0
    %2338 = vmatpush1.msra.mxu0 0.0
    %2339 = vmatprep.subr.mxu0 0.0
    %2340 = vmatpush1.msra.mxu0 0.0
    %2341 = vmatprep.subr.mxu0 0.0
    %2342 = vmatpush1.msra.mxu0 0.0
    %2343 = vmatprep.subr.mxu0 0.0
    %2344 = vmatpush1.msra.mxu0 0.0
    %2345 = vmatprep.subr.mxu0 0.0
    %2346 = vmatpush1.msra.mxu0 0.0
    %2347 = vmatprep.subr.mxu0 0.0
    %2348 = vmatpush1.msra.mxu0 0.0
    %2349 = vmatprep.mubr.f32.mxu0 0.0
    %2350 = vmatmul.mubr.f32.gmra.mrb[0].mxu0 %v2280
    %v2351 = vpop.f32.mrb[0].mxu0
    %v2352 = vadd.f32 0.0, %v2351
    %v2353 = vpop.f32.mrb[0].mxu0
    %2354 = vmatprep.mubr.f32.mxu0 0.0
    %2355 = vmatmul.mubr.f32.gmra.mrb[0].mxu0 %v2283
    %v2356 = vpop.f32.mrb[0].mxu0
    %v2357 = vadd.f32 0.0, %v2356
    %v2358 = vpop.f32.mrb[0].mxu0
    %2359 = vdwg.mxu0
    %v2360 = vadd.f32 %v2075, %v2352
    %v2361 = vadd.f32 %v2080, %v2357
    %v2362 = vadd.f32 %v2360, %v1466
    %v2363 = vadd.f32 %v2361, %v1466
    %v2364 = vadd.f32 %v75, %v2362
    %v2365 = vadd.f32 %v76, %v2363
    %v2366 = vsel %vm101, %v2364, 0.0
    %2367 = vadd.xlane.f32.xlu0 %v2366
    %v2368 = vpop.xlane.xlu0 %2367
    %vm2369 = vcmask 388096
    %v2370 = vsel %vm2369, %v2365, 0.0
    %2371 = vadd.xlane.f32.xlu0 %v2370
    %v2372 = vpop.xlane.xlu0 %2371
    %v2373 = vmul.f32 %v2368, %v1219
    %v2374 = vmul.f32 %v2372, %v1219
    %v2375 = vsub.f32 %v2364, %v2373
    %v2376 = vsub.f32 %v2365, %v2374
    %v2377 = vmul.f32 %v2375, %v2375
    %v2378 = vmul.f32 %v2376, %v2376
    %v2379 = vsel %vm101, %v2377, 0.0
    %2380 = vadd.xlane.f32.xlu0 %v2379
    %v2381 = vpop.xlane.xlu0 %2380
    %v2382 = vsel %vm2369, %v2378, 0.0
    %2383 = vadd.xlane.f32.xlu0 %v2382
    %v2384 = vpop.xlane.xlu0 %2383
    %v2385 = vmul.f32 %v2381, %v1219
    %v2386 = vmul.f32 %v2384, %v1219
    %v2387 = vadd.f32 %v2385, 1e-05
    %v2388 = vadd.f32 %v2386, 1e-05
    %v2389 = vrsqrt.pop %v2387
    %v2390 = vrsqrt.pop %v2388
    %v2391 = vmul.f32 %v2375, %v2389
    %v2392 = vmul.f32 %v2376, %v2390
    %v2393 = vmul.f32 %v2391, %v1508
    %v2394 = vmul.f32 %v2392, %v1508
    %v2395 = vadd.f32 %v2393, %v1509
    %v2396 = vadd.f32 %v2394, %v1509
    %v2398 = vlaneseq
    %v2399 = vshrl.u32 %v2398, 7
    %v2400 = vsub.s32 0, %v2399
    %v2401 = vrot.slane %v1481, %v2400
    %v2402 = vlaneseq
    %v2403 = vshrl.u32 %v2402, 7
    %v2404 = vsub.s32 1, %v2403
    %v2405 = vrot.slane %v1481, %v2404
    %v2409 = vsel %vm101, %v2395, 0
    %v2412 = vsel %vm101, %v2396, 0
    %2414 = vmatprep.subr.mxu0 %v1469
    %2415 = vmatpush1.msra.mxu0 %v1468
    %2416 = vmatprep.subr.mxu0 %v1471
    %2417 = vmatpush1.msra.mxu0 %v1470
    %2418 = vmatprep.subr.mxu0 %v1473
    %2419 = vmatpush1.msra.mxu0 %v1472
    %2420 = vmatprep.subr.mxu0 %v1475
    %2421 = vmatpush1.msra.mxu0 %v1474
    %2422 = vmatprep.subr.mxu0 %v1477
    %2423 = vmatpush1.msra.mxu0 %v1476
    %2424 = vmatprep.subr.mxu0 %v1479
    %2425 = vmatpush1.msra.mxu0 %v1478
    %2426 = vmatprep.subr.mxu0 0.0
    %2427 = vmatpush1.msra.mxu0 0.0
    %2428 = vmatprep.subr.mxu0 0.0
    %2429 = vmatpush1.msra.mxu0 0.0
    %2430 = vmatprep.subr.mxu0 0.0
    %2431 = vmatpush1.msra.mxu0 0.0
    %2432 = vmatprep.subr.mxu0 0.0
    %2433 = vmatpush1.msra.mxu0 0.0
    %2434 = vmatprep.subr.mxu0 0.0
    %2435 = vmatpush1.msra.mxu0 0.0
    %2436 = vmatprep.subr.mxu0 0.0
    %2437 = vmatpush1.msra.mxu0 0.0
    %2438 = vmatprep.subr.mxu0 0.0
    %2439 = vmatpush1.msra.mxu0 0.0
    %2440 = vmatprep.subr.mxu0 0.0
    %2441 = vmatpush1.msra.mxu0 0.0
    %2442 = vmatprep.subr.mxu0 0.0
    %2443 = vmatpush1.msra.mxu0 0.0
    %2444 = vmatprep.subr.mxu0 0.0
    %2445 = vmatpush1.msra.mxu0 0.0
    %2446 = vmatprep.subr.mxu0 0.0
    %2447 = vmatpush1.msra.mxu0 0.0
    %2448 = vmatprep.subr.mxu0 0.0
    %2449 = vmatpush1.msra.mxu0 0.0
    %2450 = vmatprep.subr.mxu0 0.0
    %2451 = vmatpush1.msra.mxu0 0.0
    %2452 = vmatprep.subr.mxu0 0.0
    %2453 = vmatpush1.msra.mxu0 0.0
    %2454 = vmatprep.subr.mxu0 0.0
    %2455 = vmatpush1.msra.mxu0 0.0
    %2456 = vmatprep.subr.mxu0 0.0
    %2457 = vmatpush1.msra.mxu0 0.0
    %2458 = vmatprep.subr.mxu0 0.0
    %2459 = vmatpush1.msra.mxu0 0.0
    %2460 = vmatprep.subr.mxu0 0.0
    %2461 = vmatpush1.msra.mxu0 0.0
    %2462 = vmatprep.subr.mxu0 0.0
    %2463 = vmatpush1.msra.mxu0 0.0
    %2464 = vmatprep.subr.mxu0 0.0
    %2465 = vmatpush1.msra.mxu0 0.0
    %2466 = vmatprep.subr.mxu0 0.0
    %2467 = vmatpush1.msra.mxu0 0.0
    %2468 = vmatprep.subr.mxu0 0.0
    %2469 = vmatpush1.msra.mxu0 0.0
    %2470 = vmatprep.subr.mxu0 0.0
    %2471 = vmatpush1.msra.mxu0 0.0
    %2472 = vmatprep.subr.mxu0 0.0
    %2473 = vmatpush1.msra.mxu0 0.0
    %2474 = vmatprep.subr.mxu0 0.0
    %2475 = vmatpush1.msra.mxu0 0.0
    %2476 = vmatprep.subr.mxu0 0.0
    %2477 = vmatpush1.msra.mxu0 0.0
    %2478 = vmatprep.mubr.f32.mxu0 0.0
    %2479 = vmatmul.mubr.f32.gmra.mrb[0].mxu0 %v2409
    %v2480 = vpop.f32.mrb[0].mxu0
    %v2481 = vadd.f32 %v2401, %v2480
    %v2482 = vpop.f32.mrb[0].mxu0
    %v2483 = vadd.f32 %v2405, %v2482
    %2484 = vmatprep.mubr.f32.mxu0 0.0
    %2485 = vmatmul.mubr.f32.gmra.mrb[0].mxu0 %v2412
    %v2486 = vpop.f32.mrb[0].mxu0
    %v2487 = vadd.f32 %v2401, %v2486
    %v2488 = vpop.f32.mrb[0].mxu0
    %v2489 = vadd.f32 %v2405, %v2488
    %2490 = vdwg.mxu0
    %v2491 = vmax.f32 %v2481, 0.0
    %v2492 = vmax.f32 %v2483, 0.0
    %v2493 = vmax.f32 %v2487, 0.0
    %v2494 = vmax.f32 %v2489, 0.0
    %v2496 = vsel %vm1342, %v2492, 0
    %v2499 = vsel %vm1342, %v2494, 0
    %2501 = vmatprep.subr.mxu0 0.0
    %2502 = vmatpush1.msra.mxu0 %v1483
    %2503 = vmatprep.subr.mxu0 0.0
    %2504 = vmatpush1.msra.mxu0 %v1484
    %2505 = vmatprep.subr.mxu0 0.0
    %2506 = vmatpush1.msra.mxu0 %v1485
    %2507 = vmatprep.subr.mxu0 0.0
    %2508 = vmatpush1.msra.mxu0 %v1486
    %2509 = vmatprep.subr.mxu0 0.0
    %2510 = vmatpush1.msra.mxu0 %v1487
    %2511 = vmatprep.subr.mxu0 0.0
    %2512 = vmatpush1.msra.mxu0 %v1488
    %2513 = vmatprep.subr.mxu0 0.0
    %2514 = vmatpush1.msra.mxu0 %v1489
    %2515 = vmatprep.subr.mxu0 0.0
    %2516 = vmatpush1.msra.mxu0 %v1490
    %2517 = vmatprep.subr.mxu0 0.0
    %2518 = vmatpush1.msra.mxu0 %v1491
    %2519 = vmatprep.subr.mxu0 0.0
    %2520 = vmatpush1.msra.mxu0 %v1492
    %2521 = vmatprep.subr.mxu0 0.0
    %2522 = vmatpush1.msra.mxu0 %v1493
    %2523 = vmatprep.subr.mxu0 0.0
    %2524 = vmatpush1.msra.mxu0 %v1494
    %2525 = vmatprep.subr.mxu0 0.0
    %2526 = vmatpush1.msra.mxu0 %v1495
    %2527 = vmatprep.subr.mxu0 0.0
    %2528 = vmatpush1.msra.mxu0 %v1496
    %2529 = vmatprep.subr.mxu0 0.0
    %2530 = vmatpush1.msra.mxu0 %v1497
    %2531 = vmatprep.subr.mxu0 0.0
    %2532 = vmatpush1.msra.mxu0 %v1498
    %2533 = vmatprep.subr.mxu0 0.0
    %2534 = vmatpush1.msra.mxu0 %v1499
    %2535 = vmatprep.subr.mxu0 0.0
    %2536 = vmatpush1.msra.mxu0 %v1500
    %2537 = vmatprep.subr.mxu0 0.0
    %2538 = vmatpush1.msra.mxu0 %v1501
    %2539 = vmatprep.subr.mxu0 0.0
    %2540 = vmatpush1.msra.mxu0 %v1502
    %2541 = vmatprep.subr.mxu0 0.0
    %2542 = vmatpush1.msra.mxu0 %v1503
    %2543 = vmatprep.subr.mxu0 0.0
    %2544 = vmatpush1.msra.mxu0 %v1504
    %2545 = vmatprep.subr.mxu0 0.0
    %2546 = vmatpush1.msra.mxu0 %v1505
    %2547 = vmatprep.subr.mxu0 0.0
    %2548 = vmatpush1.msra.mxu0 %v1506
    %2549 = vmatprep.subr.mxu0 0.0
    %2550 = vmatpush1.msra.mxu0 0.0
    %2551 = vmatprep.subr.mxu0 0.0
    %2552 = vmatpush1.msra.mxu0 0.0
    %2553 = vmatprep.subr.mxu0 0.0
    %2554 = vmatpush1.msra.mxu0 0.0
    %2555 = vmatprep.subr.mxu0 0.0
    %2556 = vmatpush1.msra.mxu0 0.0
    %2557 = vmatprep.subr.mxu0 0.0
    %2558 = vmatpush1.msra.mxu0 0.0
    %2559 = vmatprep.subr.mxu0 0.0
    %2560 = vmatpush1.msra.mxu0 0.0
    %2561 = vmatprep.subr.mxu0 0.0
    %2562 = vmatpush1.msra.mxu0 0.0
    %2563 = vmatprep.subr.mxu0 0.0
    %2564 = vmatpush1.msra.mxu0 0.0
    %2565 = vmatprep.mubr.f32.mxu0 %v2496
    %2566 = vmatmul.mubr.f32.gmra.mrb[0].mxu0 %v2491
    %v2567 = vpop.f32.mrb[0].mxu0
    %v2568 = vadd.f32 %v1507, %v2567
    %v2569 = vpop.f32.mrb[0].mxu0
    %2570 = vmatprep.mubr.f32.mxu0 %v2499
    %2571 = vmatmul.mubr.f32.gmra.mrb[0].mxu0 %v2493
    %v2572 = vpop.f32.mrb[0].mxu0
    %v2573 = vadd.f32 %v1507, %v2572
    %v2574 = vpop.f32.mrb[0].mxu0
    %2575 = vdwg.mxu0
    %v2576 = vadd.f32 %v2395, %v2568
    %v2577 = vadd.f32 %v2396, %v2573
    %v2578 = vsel %vm101, %v2576, 0.0
    %2579 = vadd.xlane.f32.xlu0 %v2578
    %v2580 = vpop.xlane.xlu0 %2579
    %v2581 = vsel %vm2369, %v2577, 0.0
    %2582 = vadd.xlane.f32.xlu0 %v2581
    %v2583 = vpop.xlane.xlu0 %2582
    %v2584 = vmul.f32 %v2580, %v1219
    %v2585 = vmul.f32 %v2583, %v1219
    %v2586 = vsub.f32 %v2576, %v2584
    %v2587 = vsub.f32 %v2577, %v2585
    %v2588 = vmul.f32 %v2586, %v2586
    %v2589 = vmul.f32 %v2587, %v2587
    %v2590 = vsel %vm101, %v2588, 0.0
    %2591 = vadd.xlane.f32.xlu0 %v2590
    %v2592 = vpop.xlane.xlu0 %2591
    %v2593 = vsel %vm2369, %v2589, 0.0
    %2594 = vadd.xlane.f32.xlu0 %v2593
    %v2595 = vpop.xlane.xlu0 %2594
    %v2596 = vmul.f32 %v2592, %v1219
    %v2597 = vmul.f32 %v2595, %v1219
    %v2598 = vadd.f32 %v2596, 1e-05
    %v2599 = vadd.f32 %v2597, 1e-05
    %v2600 = vrsqrt.pop %v2598
    %v2601 = vrsqrt.pop %v2599
    %v2602 = vmul.f32 %v2586, %v2600
    %v2603 = vmul.f32 %v2587, %v2601
    %v2604 = vmul.f32 %v2602, %v1510
    %v2605 = vmul.f32 %v2603, %v1510
    %v2606 = vadd.f32 %v2604, %v1511
    %v2607 = vadd.f32 %v2605, %v1511
    %s2608 = scalar_lea.vmem [#allocation7], 4224
    %v2609 = vld [vmem:[%s2608] sm:$0x3]
    %v2611 = vsel %vm350, %v2609, 0
    %2613 = vmatprep.subr.mxu0 0.0
    %2614 = vmatpush1.msra.mxu0 %v1454
    %2615 = vmatprep.subr.mxu0 0.0
    %2616 = vmatpush1.msra.mxu0 %v1455
    %2617 = vmatprep.subr.mxu0 0.0
    %2618 = vmatpush1.msra.mxu0 0.0
    %2619 = vmatprep.subr.mxu0 0.0
    %2620 = vmatpush1.msra.mxu0 0.0
    %2621 = vmatprep.subr.mxu0 0.0
    %2622 = vmatpush1.msra.mxu0 0.0
    %2623 = vmatprep.subr.mxu0 0.0
    %2624 = vmatpush1.msra.mxu0 0.0
    %2625 = vmatprep.subr.mxu0 0.0
    %2626 = vmatpush1.msra.mxu0 0.0
    %2627 = vmatprep.subr.mxu0 0.0
    %2628 = vmatpush1.msra.mxu0 0.0
    %2629 = vmatprep.subr.mxu0 0.0
    %2630 = vmatpush1.msra.mxu0 0.0
    %2631 = vmatprep.subr.mxu0 0.0
    %2632 = vmatpush1.msra.mxu0 0.0
    %2633 = vmatprep.subr.mxu0 0.0
    %2634 = vmatpush1.msra.mxu0 0.0
    %2635 = vmatprep.subr.mxu0 0.0
    %2636 = vmatpush1.msra.mxu0 0.0
    %2637 = vmatprep.subr.mxu0 0.0
    %2638 = vmatpush1.msra.mxu0 0.0
    %2639 = vmatprep.subr.mxu0 0.0
    %2640 = vmatpush1.msra.mxu0 0.0
    %2641 = vmatprep.subr.mxu0 0.0
    %2642 = vmatpush1.msra.mxu0 0.0
    %2643 = vmatprep.subr.mxu0 0.0
    %2644 = vmatpush1.msra.mxu0 0.0
    %2645 = vmatprep.subr.mxu0 0.0
    %2646 = vmatpush1.msra.mxu0 0.0
    %2647 = vmatprep.subr.mxu0 0.0
    %2648 = vmatpush1.msra.mxu0 0.0
    %2649 = vmatprep.subr.mxu0 0.0
    %2650 = vmatpush1.msra.mxu0 0.0
    %2651 = vmatprep.subr.mxu0 0.0
    %2652 = vmatpush1.msra.mxu0 0.0
    %2653 = vmatprep.subr.mxu0 0.0
    %2654 = vmatpush1.msra.mxu0 0.0
    %2655 = vmatprep.subr.mxu0 0.0
    %2656 = vmatpush1.msra.mxu0 0.0
    %2657 = vmatprep.subr.mxu0 0.0
    %2658 = vmatpush1.msra.mxu0 0.0
    %2659 = vmatprep.subr.mxu0 0.0
    %2660 = vmatpush1.msra.mxu0 0.0
    %2661 = vmatprep.subr.mxu0 0.0
    %2662 = vmatpush1.msra.mxu0 0.0
    %2663 = vmatprep.subr.mxu0 0.0
    %2664 = vmatpush1.msra.mxu0 0.0
    %2665 = vmatprep.subr.mxu0 0.0
    %2666 = vmatpush1.msra.mxu0 0.0
    %2667 = vmatprep.subr.mxu0 0.0
    %2668 = vmatpush1.msra.mxu0 0.0
    %2669 = vmatprep.subr.mxu0 0.0
    %2670 = vmatpush1.msra.mxu0 0.0
    %2671 = vmatprep.subr.mxu0 0.0
    %2672 = vmatpush1.msra.mxu0 0.0
    %2673 = vmatprep.subr.mxu0 0.0
    %2674 = vmatpush1.msra.mxu0 0.0
    %2675 = vmatprep.subr.mxu0 0.0
    %2676 = vmatpush1.msra.mxu0 0.0
    %2677 = vmatprep.mubr.f32.mxu0 0.0
    %2678 = vmatmul.mubr.f32.gmra.mrb[0].mxu0 %v2611
    %v2679 = vpop.f32.mrb[0].mxu0
    %v2680 = vadd.f32 0.0, %v2679
    %v2681 = vpop.f32.mrb[0].mxu0
    %2682 = vdwg.mxu0
    %s2683 = scalar_lea.vmem [#allocation7], 4608
    %v2684 = vld [vmem:[%s2683] sm:$0x3]
    %v2686 = vsel %vm442, %v2684, 0
    %v2689 = vsel %vm476, %v2607, 0
    %2691 = vmatprep.subr.mxu0 0.0
    %2692 = vmatpush1.msra.mxu0 %v2606
    %2693 = vmatprep.subr.mxu0 0.0
    %2694 = vmatpush1.msra.mxu0 %v2689
    %2695 = vmatprep.subr.mxu0 0.0
    %2696 = vmatpush1.msra.mxu0 0.0
    %2697 = vmatprep.subr.mxu0 0.0
    %2698 = vmatpush1.msra.mxu0 0.0
    %2699 = vmatprep.subr.mxu0 0.0
    %2700 = vmatpush1.msra.mxu0 0.0
    %2701 = vmatprep.subr.mxu0 0.0
    %2702 = vmatpush1.msra.mxu0 0.0
    %2703 = vmatprep.subr.mxu0 0.0
    %2704 = vmatpush1.msra.mxu0 0.0
    %2705 = vmatprep.subr.mxu0 0.0
    %2706 = vmatpush1.msra.mxu0 0.0
    %2707 = vmatprep.subr.mxu0 0.0
    %2708 = vmatpush1.msra.mxu0 0.0
    %2709 = vmatprep.subr.mxu0 0.0
    %2710 = vmatpush1.msra.mxu0 0.0
    %2711 = vmatprep.subr.mxu0 0.0
    %2712 = vmatpush1.msra.mxu0 0.0
    %2713 = vmatprep.subr.mxu0 0.0
    %2714 = vmatpush1.msra.mxu0 0.0
    %2715 = vmatprep.subr.mxu0 0.0
    %2716 = vmatpush1.msra.mxu0 0.0
    %2717 = vmatprep.subr.mxu0 0.0
    %2718 = vmatpush1.msra.mxu0 0.0
    %2719 = vmatprep.subr.mxu0 0.0
    %2720 = vmatpush1.msra.mxu0 0.0
    %2721 = vmatprep.subr.mxu0 0.0
    %2722 = vmatpush1.msra.mxu0 0.0
    %2723 = vmatprep.subr.mxu0 0.0
    %2724 = vmatpush1.msra.mxu0 0.0
    %2725 = vmatprep.subr.mxu0 0.0
    %2726 = vmatpush1.msra.mxu0 0.0
    %2727 = vmatprep.subr.mxu0 0.0
    %2728 = vmatpush1.msra.mxu0 0.0
    %2729 = vmatprep.subr.mxu0 0.0
    %2730 = vmatpush1.msra.mxu0 0.0
    %2731 = vmatprep.subr.mxu0 0.0
    %2732 = vmatpush1.msra.mxu0 0.0
    %2733 = vmatprep.subr.mxu0 0.0
    %2734 = vmatpush1.msra.mxu0 0.0
    %2735 = vmatprep.subr.mxu0 0.0
    %2736 = vmatpush1.msra.mxu0 0.0
    %2737 = vmatprep.subr.mxu0 0.0
    %2738 = vmatpush1.msra.mxu0 0.0
    %2739 = vmatprep.subr.mxu0 0.0
    %2740 = vmatpush1.msra.mxu0 0.0
    %2741 = vmatprep.subr.mxu0 0.0
    %2742 = vmatpush1.msra.mxu0 0.0
    %2743 = vmatprep.subr.mxu0 0.0
    %2744 = vmatpush1.msra.mxu0 0.0
    %2745 = vmatprep.subr.mxu0 0.0
    %2746 = vmatpush1.msra.mxu0 0.0
    %2747 = vmatprep.subr.mxu0 0.0
    %2748 = vmatpush1.msra.mxu0 0.0
    %2749 = vmatprep.subr.mxu0 0.0
    %2750 = vmatpush1.msra.mxu0 0.0
    %2751 = vmatprep.subr.mxu0 0.0
    %2752 = vmatpush1.msra.mxu0 0.0
    %2753 = vmatprep.subr.mxu0 0.0
    %2754 = vmatpush1.msra.mxu0 0.0
    %2755 = vmatprep.mubr.f32.mxu0 0.0
    %2756 = vmatmul.mubr.f32.gmra.mrb[0].mxu0 %v2686
    %v2757 = vpop.f32.mrb[0].mxu0
    %v2758 = vadd.f32 0.0, %v2757
    %v2759 = vpop.f32.mrb[0].mxu0
    %2760 = vdwg.mxu0
    %s2761 = scalar_lea.vmem [#allocation7], 3072
    %v2762 = vld [vmem:[%s2761] sm:$0xff]
    %v2763 = vld [vmem:[%s2761 + $0x10] sm:$0xff]
    %v2764 = vld [vmem:[%s2761 + $0x20] sm:$0xff]
    %v2765 = vld [vmem:[%s2761 + $0x30] sm:$0xff]
    %v2766 = vld [vmem:[%s2761 + $0x40] sm:$0xff]
    %v2767 = vld [vmem:[%s2761 + $0x50] sm:$0xff]
    %v2768 = vld [vmem:[%s2761 + $0x60] sm:$0xff]
    %v2769 = vld [vmem:[%s2761 + $0x70] sm:$0xff]
    %v2770 = vld [vmem:[%s2761 + $0x80] sm:$0xff]
    %v2771 = vld [vmem:[%s2761 + $0x90] sm:$0xff]
    %v2772 = vld [vmem:[%s2761 + $0xa0] sm:$0xff]
    %v2773 = vld [vmem:[%s2761 + $0xb0] sm:$0xff]
    %v2775 = vsel %vm101, %v2758, 0
    %2777 = vmatprep.subr.mxu0 0.0
    %2778 = vmatpush1.msra.mxu0 %v2768
    %2779 = vmatprep.subr.mxu0 0.0
    %2780 = vmatpush1.msra.mxu0 %v2769
    %2781 = vmatprep.subr.mxu0 0.0
    %2782 = vmatpush1.msra.mxu0 %v2770
    %2783 = vmatprep.subr.mxu0 0.0
    %2784 = vmatpush1.msra.mxu0 %v2771
    %2785 = vmatprep.subr.mxu0 0.0
    %2786 = vmatpush1.msra.mxu0 %v2772
    %2787 = vmatprep.subr.mxu0 0.0
    %2788 = vmatpush1.msra.mxu0 %v2773
    %2789 = vmatprep.subr.mxu0 0.0
    %2790 = vmatpush1.msra.mxu0 0.0
    %2791 = vmatprep.subr.mxu0 0.0
    %2792 = vmatpush1.msra.mxu0 0.0
    %2793 = vmatprep.subr.mxu0 0.0
    %2794 = vmatpush1.msra.mxu0 0.0
    %2795 = vmatprep.subr.mxu0 0.0
    %2796 = vmatpush1.msra.mxu0 0.0
    %2797 = vmatprep.subr.mxu0 0.0
    %2798 = vmatpush1.msra.mxu0 0.0
    %2799 = vmatprep.subr.mxu0 0.0
    %2800 = vmatpush1.msra.mxu0 0.0
    %2801 = vmatprep.subr.mxu0 0.0
    %2802 = vmatpush1.msra.mxu0 0.0
    %2803 = vmatprep.subr.mxu0 0.0
    %2804 = vmatpush1.msra.mxu0 0.0
    %2805 = vmatprep.subr.mxu0 0.0
    %2806 = vmatpush1.msra.mxu0 0.0
    %2807 = vmatprep.subr.mxu0 0.0
    %2808 = vmatpush1.msra.mxu0 0.0
    %2809 = vmatprep.subr.mxu0 0.0
    %2810 = vmatpush1.msra.mxu0 0.0
    %2811 = vmatprep.subr.mxu0 0.0
    %2812 = vmatpush1.msra.mxu0 0.0
    %2813 = vmatprep.subr.mxu0 0.0
    %2814 = vmatpush1.msra.mxu0 0.0
    %2815 = vmatprep.subr.mxu0 0.0
    %2816 = vmatpush1.msra.mxu0 0.0
    %2817 = vmatprep.subr.mxu0 0.0
    %2818 = vmatpush1.msra.mxu0 0.0
    %2819 = vmatprep.subr.mxu0 0.0
    %2820 = vmatpush1.msra.mxu0 0.0
    %2821 = vmatprep.subr.mxu0 0.0
    %2822 = vmatpush1.msra.mxu0 0.0
    %2823 = vmatprep.subr.mxu0 0.0
    %2824 = vmatpush1.msra.mxu0 0.0
    %2825 = vmatprep.subr.mxu0 0.0
    %2826 = vmatpush1.msra.mxu0 0.0
    %2827 = vmatprep.subr.mxu0 0.0
    %2828 = vmatpush1.msra.mxu0 0.0
    %2829 = vmatprep.subr.mxu0 0.0
    %2830 = vmatpush1.msra.mxu0 0.0
    %2831 = vmatprep.subr.mxu0 0.0
    %2832 = vmatpush1.msra.mxu0 0.0
    %2833 = vmatprep.subr.mxu0 0.0
    %2834 = vmatpush1.msra.mxu0 0.0
    %2835 = vmatprep.subr.mxu0 0.0
    %2836 = vmatpush1.msra.mxu0 0.0
    %2837 = vmatprep.subr.mxu0 0.0
    %2838 = vmatpush1.msra.mxu0 0.0
    %2839 = vmatprep.subr.mxu0 0.0
    %2840 = vmatpush1.msra.mxu0 0.0
    %2841 = vmatprep.mubr.f32.mxu0 0.0
    %2842 = vmatmul.mubr.f32.gmra.mrb[0].mxu0 %v2775
    %v2843 = vpop.f32.mrb[0].mxu0
    %v2844 = vadd.f32 0.0, %v2843
    %v2845 = vpop.f32.mrb[0].mxu0
    %2846 = vdwg.mxu0
    %v2848 = vsel %vm101, %v2680, 0
    %2850 = vmatprep.subr.mxu0 0.0
    %2851 = vmatpush1.msra.mxu0 %v2762
    %2852 = vmatprep.subr.mxu0 0.0
    %2853 = vmatpush1.msra.mxu0 %v2763
    %2854 = vmatprep.subr.mxu0 0.0
    %2855 = vmatpush1.msra.mxu0 %v2764
    %2856 = vmatprep.subr.mxu0 0.0
    %2857 = vmatpush1.msra.mxu0 %v2765
    %2858 = vmatprep.subr.mxu0 0.0
    %2859 = vmatpush1.msra.mxu0 %v2766
    %2860 = vmatprep.subr.mxu0 0.0
    %2861 = vmatpush1.msra.mxu0 %v2767
    %2862 = vmatprep.subr.mxu0 0.0
    %2863 = vmatpush1.msra.mxu0 0.0
    %2864 = vmatprep.subr.mxu0 0.0
    %2865 = vmatpush1.msra.mxu0 0.0
    %2866 = vmatprep.subr.mxu0 0.0
    %2867 = vmatpush1.msra.mxu0 0.0
    %2868 = vmatprep.subr.mxu0 0.0
    %2869 = vmatpush1.msra.mxu0 0.0
    %2870 = vmatprep.subr.mxu0 0.0
    %2871 = vmatpush1.msra.mxu0 0.0
    %2872 = vmatprep.subr.mxu0 0.0
    %2873 = vmatpush1.msra.mxu0 0.0
    %2874 = vmatprep.subr.mxu0 0.0
    %2875 = vmatpush1.msra.mxu0 0.0
    %2876 = vmatprep.subr.mxu0 0.0
    %2877 = vmatpush1.msra.mxu0 0.0
    %2878 = vmatprep.subr.mxu0 0.0
    %2879 = vmatpush1.msra.mxu0 0.0
    %2880 = vmatprep.subr.mxu0 0.0
    %2881 = vmatpush1.msra.mxu0 0.0
    %2882 = vmatprep.subr.mxu0 0.0
    %2883 = vmatpush1.msra.mxu0 0.0
    %2884 = vmatprep.subr.mxu0 0.0
    %2885 = vmatpush1.msra.mxu0 0.0
    %2886 = vmatprep.subr.mxu0 0.0
    %2887 = vmatpush1.msra.mxu0 0.0
    %2888 = vmatprep.subr.mxu0 0.0
    %2889 = vmatpush1.msra.mxu0 0.0
    %2890 = vmatprep.subr.mxu0 0.0
    %2891 = vmatpush1.msra.mxu0 0.0
    %2892 = vmatprep.subr.mxu0 0.0
    %2893 = vmatpush1.msra.mxu0 0.0
    %2894 = vmatprep.subr.mxu0 0.0
    %2895 = vmatpush1.msra.mxu0 0.0
    %2896 = vmatprep.subr.mxu0 0.0
    %2897 = vmatpush1.msra.mxu0 0.0
    %2898 = vmatprep.subr.mxu0 0.0
    %2899 = vmatpush1.msra.mxu0 0.0
    %2900 = vmatprep.subr.mxu0 0.0
    %2901 = vmatpush1.msra.mxu0 0.0
    %2902 = vmatprep.subr.mxu0 0.0
    %2903 = vmatpush1.msra.mxu0 0.0
    %2904 = vmatprep.subr.mxu0 0.0
    %2905 = vmatpush1.msra.mxu0 0.0
    %2906 = vmatprep.subr.mxu0 0.0
    %2907 = vmatpush1.msra.mxu0 0.0
    %2908 = vmatprep.subr.mxu0 0.0
    %2909 = vmatpush1.msra.mxu0 0.0
    %2910 = vmatprep.subr.mxu0 0.0
    %2911 = vmatpush1.msra.mxu0 0.0
    %2912 = vmatprep.subr.mxu0 0.0
    %2913 = vmatpush1.msra.mxu0 0.0
    %2914 = vmatprep.mubr.f32.mxu0 0.0
    %2915 = vmatmul.mubr.f32.gmra.mrb[0].mxu0 %v2848
    %v2916 = vpop.f32.mrb[0].mxu0
    %v2917 = vadd.f32 %v2844, %v2916
    %v2918 = vpop.f32.mrb[0].mxu0
    %2919 = vdwg.mxu0
    %v2920 = vld [vmem:[#allocation8 + $0x20] ss:$0 sm:$0xff]
    %v2921 = vadd.f32 %v2917, %v2920
    %v2922 = vxor.u32 %v2921, 2147483648
    %v2923 = vmul.f32 %v2922, 1.442695
    %v2924 = vpow.pop %v2923
    %v2925 = vadd.f32 %v2924, 1.0
    %v2926 = vrcp.pop %v2925
    %v2927 = vmul.f32 1.0, %v2926
    %2928 = vst [vmem:[#allocation10] sm:$0x3] %v2927
    // Predicated region
    $region34: #{tpu_custom_call.1} parent=1 // pred_check
      _
    $region35: #{tpu_custom_call.1} parent=1 // pred_check_branch
      %2930 = sbr.rel (0) target = $region37
    $region36: #{tpu_custom_call.1} parent=1 // pred_region
      %s2932 = ssub.s32 32, 32
      %2933 = vsyncadd [#allocation4], %s2932
      %s2935 = sshll.u32 [#allocation10], 4
      %s2936 = int_to_ptr.vmem [resolvable:$true] %s2935
      %2938 = dma.vmem_to_hbm [thread:$0]  %s2936, 32, %s4, [#allocation4]
    $region37: #{tpu_custom_call.1} parent=1 // pred_fallthru
      _
    // Predicated region
    $region38: #{tpu_custom_call.1} parent=1 // pred_check
      _
    $region39: #{tpu_custom_call.1} parent=1 // pred_check_branch
      %2940 = sbr.rel (0) target = $region41
    $region40: #{tpu_custom_call.1} parent=1 // pred_region
      %2941 = dma.done [#allocation4], 32
    $region41: #{tpu_custom_call.1} parent=1 // pred_fallthru
      _
    %2942 = vsyncpa [#allocation3], 1
    %2943 = vsyncpa [#allocation6], 1
    %2944 = vsyncpa [#allocation9], 1
    %2945 = vsyncpa [#allocation4], 1

</llo_original>
